<compile_context>
chip_gen: v6e
topology: v6e:2x2x1
jax: 0.10.0
libtpu: 0.0.40
codegen_flags: <defaults>
</compile_context>

<pallas_src>
import functools

import jax
import jax.numpy as jnp
from jax.experimental import pallas as pl
from jax.experimental.pallas import tpu as pltpu

_EPS = 1e-6
_SPLIT_MIN_BYTES = 256 * 1024  # only force >=2 grid steps above this size


def _prod(xs):
    out = 1
    for d in xs:
        out *= int(d)
    return out


def _round_down(x, m):
    return (x // m) * m


def _round_up(x, m):
    return ((x + m - 1) // m) * m


def _sublane_multiple(dtype):
    # sublane packing: 8 rows for 4-byte, 16 for 2-byte, 32 for 1-byte dtypes
    return max(8, 32 // jnp.dtype(dtype).itemsize)


def _fold_factor(C, M):
    # channels_last lane-folding factor: pack k=128//C logical rows per vreg row
    if 0 < C < 128 and 128 % C == 0:
        k = 128 // C
        if k > 1 and M % k == 0 and M > 0:
            return k
    return 1


@functools.lru_cache(maxsize=None)
def _vmem_capacity_bytes():
    try:
        cap = int(pltpu.get_tpu_info().vmem_capacity_bytes)
        if cap > 0:
            return cap
    except Exception:
        pass
    return 64 * 1024 * 1024  # conservative: v7x per-TensorCore VMEM


@functools.lru_cache(maxsize=None)
def _activation_tile_budget_elems():
    # f32 working-set elements per tile; ~1-4 MiB tiles sit near the HBM roofline
    if _vmem_capacity_bytes() <= 64 * 1024 * 1024:
        return (4 * 1024 * 1024) // 4   # v7x-class: 64 MiB VMEM per TC
    return (6 * 1024 * 1024) // 4       # v5e / v6e: 128 MiB physical VMEM


def _vmem_limit_bytes(io_tile_bytes, f32_tile_elems):
    # double-buffered in+out tiles + headroom for f32 temporaries + slack,
    # floored at the default scoped limit, capped well below physical VMEM.
    want = 4 * io_tile_bytes + 12 * f32_tile_elems + (2 << 20)
    want = max(want, 32 << 20)
    return int(min(want, _vmem_capacity_bytes() * 3 // 4))


@functools.lru_cache(maxsize=None)
def _fold_indicator(k):
    # (128,k) 0/1 group-indicator G (lanes -> logical rows) and its transpose
    C = 128 // k
    lane = jnp.arange(128, dtype=jnp.int32)[:, None]
    grp = jnp.arange(k, dtype=jnp.int32)[None, :]
    g = (lane // C == grp).astype(jnp.float32)
    return g, jnp.transpose(g)


# -----------------------------------------------------------------------------
# channels_last: rows of shape (..., C) normalized over the last (lane) axis
# -----------------------------------------------------------------------------
def _ln_last_kernel(x_ref, w_ref, b_ref, o_ref, *, eps):
    x = x_ref[...].astype(jnp.float32)                   # (tm, C)
    mean = jnp.mean(x, axis=-1, keepdims=True)
    xc = x - mean
    var = jnp.mean(xc * xc, axis=-1, keepdims=True)      # biased variance
    inv = jax.lax.rsqrt(var + eps)                       # EUP
    o_ref[...] = (xc * inv * w_ref[...] + b_ref[...]).astype(o_ref.dtype)


def _ln_last_fold_kernel(x_ref, w_ref, b_ref, g_ref, gt_ref, o_ref, *, eps, inv_c):
    # each vreg row holds k logical rows of C channels, packed along 128 lanes;
    # grouped mean/var via block-indicator matmuls on the otherwise idle MXU.
    hi = jax.lax.Precision.HIGHEST
    x = x_ref[...].astype(jnp.float32)                   # (tm, 128)
    g = g_ref[...]                                       # (128, k)
    gt = gt_ref[...]                                     # (k, 128)
    mean = jnp.dot(x, g, precision=hi,
                   preferred_element_type=jnp.float32) * inv_c          # (tm, k)
    mean_b = jnp.dot(mean, gt, precision=hi,
                     preferred_element_type=jnp.float32)                # (tm, 128)
    xc = x - mean_b
    var = jnp.dot(xc * xc, g, precision=hi,
                  preferred_element_type=jnp.float32) * inv_c
    var_b = jnp.dot(var, gt, precision=hi,
                    preferred_element_type=jnp.float32)
    inv = jax.lax.rsqrt(var_b + eps)                     # EUP
    o_ref[...] = (xc * inv * w_ref[...] + b_ref[...]).astype(o_ref.dtype)


@functools.lru_cache(maxsize=None)
def _ln_last_call(M, C, tm, dtype_name, eps, vmem_limit):
    dtype = jnp.dtype(dtype_name)
    kernel = functools.partial(_ln_last_kernel, eps=eps)
    return pl.pallas_call(
        kernel,
        out_shape=jax.ShapeDtypeStruct((M, C), dtype),
        grid=(pl.cdiv(M, tm),),
        in_specs=[
            pl.BlockSpec((tm, C), lambda i: (i, 0)),
            pl.BlockSpec((1, C), lambda i: (0, 0)),
            pl.BlockSpec((1, C), lambda i: (0, 0)),
        ],
        out_specs=pl.BlockSpec((tm, C), lambda i: (i, 0)),
        compiler_params=pltpu.CompilerParams(
            dimension_semantics=("parallel",),
            vmem_limit_bytes=vmem_limit),
    )


@functools.lru_cache(maxsize=None)
def _ln_last_fold_call(Mf, k, tm, dtype_name, eps, vmem_limit):
    dtype = jnp.dtype(dtype_name)
    C = 128 // k
    kernel = functools.partial(_ln_last_fold_kernel, eps=eps, inv_c=1.0 / C)
    return pl.pallas_call(
        kernel,
        out_shape=jax.ShapeDtypeStruct((Mf, 128), dtype),
        grid=(pl.cdiv(Mf, tm),),
        in_specs=[
            pl.BlockSpec((tm, 128), lambda i: (i, 0)),
            pl.BlockSpec((1, 128), lambda i: (0, 0)),
            pl.BlockSpec((1, 128), lambda i: (0, 0)),
            pl.BlockSpec((128, k), lambda i: (0, 0)),
            pl.BlockSpec((k, 128), lambda i: (0, 0)),
        ],
        out_specs=pl.BlockSpec((tm, 128), lambda i: (i, 0)),
        compiler_params=pltpu.CompilerParams(
            dimension_semantics=("parallel",),
            vmem_limit_bytes=vmem_limit),
    )


def layer_norm_channels_last(x, weight, bias, eps=_EPS, *, packed=None):
    orig_shape = x.shape
    C = int(orig_shape[-1])
    M = _prod(orig_shape[:-1])
    dtype = jnp.dtype(x.dtype)
    sub = _sublane_multiple(dtype)
    budget_elems = _activation_tile_budget_elems()

    k = _fold_factor(C, M)
    if k > 1:
        Mf, Cw = M // k, 128
    else:
        Mf, Cw = M, C
    xm = x.reshape(Mf, Cw)

    # tile rows: as large as the budget allows (no artificial caps)
    if Mf >= sub:
        rows_budget = max(sub, budget_elems // max(Cw, 1))
        tm = max(sub, _round_down(min(Mf, rows_budget), sub))
        # keep >=2 grid steps on mid/large shapes so both v7x TCs get work
        if (tm >= Mf and Mf >= 2 * sub
                and Mf * Cw * dtype.itemsize >= _SPLIT_MIN_BYTES):
            tm = min(tm, _round_up((Mf + 1) // 2, sub))
    else:
        tm = Mf  # block dim equal to the full array dim is always legal

    vmem_limit = _vmem_limit_bytes(tm * Cw * dtype.itemsize, tm * Cw)

    if packed is None:
        w = weight.astype(jnp.float32).reshape(-1)
        b = bias.astype(jnp.float32).reshape(-1)
        if k > 1:
            packed = (jnp.tile(w, k).reshape(1, 128), jnp.tile(b, k).reshape(1, 128))
        else:
            packed = (w.reshape(1, C), b.reshape(1, C))
    w2d, b2d = packed

    if k > 1:
        g, gt = _fold_indicator(k)
        out = _ln_last_fold_call(Mf, k, tm, dtype.name, float(eps), vmem_limit)(
            xm, w2d, b2d, g, gt)
    else:
        out = _ln_last_call(Mf, Cw, tm, dtype.name, float(eps), vmem_limit)(
            xm, w2d, b2d)
    return out.reshape(orig_shape)


# -----------------------------------------------------------------------------
# channels_first: NCHW normalized over the channel (sublane) axis; spatial dims
# flattened onto the lane axis, multiple batch elements folded per tile.
# -----------------------------------------------------------------------------
def _ln_first_kernel(x_ref, w_ref, b_ref, o_ref, *, eps):
    x = x_ref[...].astype(jnp.float32)                   # (tb, C, tl)
    mean = jnp.mean(x, axis=1, keepdims=True)
    xc = x - mean
    var = jnp.mean(xc * xc, axis=1, keepdims=True)       # biased variance
    inv = jax.lax.rsqrt(var + eps)                       # EUP
    w = w_ref[...][None, :, :]                           # (1, C, 1)
    b = b_ref[...][None, :, :]
    o_ref[...] = (xc * inv * w + b).astype(o_ref.dtype)


@functools.lru_cache(maxsize=None)
def _ln_first_call(B, C, L, tb, tl, dtype_name, eps, vmem_limit):
    dtype = jnp.dtype(dtype_name)
    kernel = functools.partial(_ln_first_kernel, eps=eps)
    return pl.pallas_call(
        kernel,
        out_shape=jax.ShapeDtypeStruct((B, C, L), dtype),
        grid=(pl.cdiv(B, tb), pl.cdiv(L, tl)),
        in_specs=[
            pl.BlockSpec((tb, C, tl), lambda b, j: (b, 0, j)),
            pl.BlockSpec((C, 1), lambda b, j: (0, 0)),
            pl.BlockSpec((C, 1), lambda b, j: (0, 0)),
        ],
        out_specs=pl.BlockSpec((tb, C, tl), lambda b, j: (b, 0, j)),
        compiler_params=pltpu.CompilerParams(
            dimension_semantics=("parallel", "parallel"),
            vmem_limit_bytes=vmem_limit),
    )


def layer_norm_channels_first(x, weight, bias, eps=_EPS, *, packed=None):
    B, C = int(x.shape[0]), int(x.shape[1])
    L = _prod(x.shape[2:])
    dtype = jnp.dtype(x.dtype)
    xm = x.reshape(B, C, L)
    budget_elems = _activation_tile_budget_elems()

    # lane tiling: lane-dense, as large as the budget allows
    if L <= 128 or C * L <= budget_elems:
        tl = L
    else:
        tl = max(128, _round_down(budget_elems // max(C, 1), 128))
    # fold batch elements into the same tile while the budget allows
    tb = max(1, min(B, budget_elems // max(C * tl, 1)))

    # keep >=2 grid steps on mid/large shapes so both v7x TCs get work
    if (tb >= B and tl >= L
            and B * C * L * dtype.itemsize >= _SPLIT_MIN_BYTES):
        if B >= 2:
            tb = (B + 1) // 2
        elif L >= 256:
            tl = max(128, _round_up((L + 1) // 2, 128))

    vmem_limit = _vmem_limit_bytes(tb * C * tl * dtype.itemsize, tb * C * tl)

    if packed is None:
        packed = (weight.astype(jnp.float32).reshape(C, 1),
                  bias.astype(jnp.float32).reshape(C, 1))
    w2d, b2d = packed

    out = _ln_first_call(B, C, L, tb, tl, dtype.name, float(eps), vmem_limit)(
        xm, w2d, b2d)
    return out.reshape(x.shape)


# -----------------------------------------------------------------------------
# module-like wrapper mirroring the PyTorch LayerNorm
# -----------------------------------------------------------------------------
class LayerNorm:
    def __init__(self, normalized_shape, eps=1e-6, data_format='channels_last'):
        if data_format not in ('channels_last', 'channels_first'):
            raise NotImplementedError
        if isinstance(normalized_shape, (tuple, list)):
            normalized_shape = int(normalized_shape[0])
        self.weight = jnp.ones((normalized_shape,), jnp.float32)
        self.bias = jnp.zeros((normalized_shape,), jnp.float32)
        self.eps = eps
        self.data_format = data_format
        self.normalized_shape = (normalized_shape,)
        self._param_key = None
        self._packed = None

    def _packed_params(self, fold_k):
        # format weight/bias (f32, reshaped/tiled) once per parameter set
        key = (id(self.weight), id(self.bias), self.data_format, fold_k)
        if key != self._param_key:
            C = self.normalized_shape[0]
            w = self.weight.astype(jnp.float32).reshape(-1)
            b = self.bias.astype(jnp.float32).reshape(-1)
            if self.data_format == 'channels_last':
                if fold_k > 1:
                    packed = (jnp.tile(w, fold_k).reshape(1, 128),
                              jnp.tile(b, fold_k).reshape(1, 128))
                else:
                    packed = (w.reshape(1, C), b.reshape(1, C))
            else:
                packed = (w.reshape(C, 1), b.reshape(C, 1))
            self._packed = packed
            self._param_key = key
        return self._packed

    def __call__(self, x):
        if self.data_format == 'channels_last':
            C = self.normalized_shape[0]
            fold_k = _fold_factor(C, _prod(x.shape[:-1]))
            return layer_norm_channels_last(
                x, self.weight, self.bias, self.eps,
                packed=self._packed_params(fold_k))
        return layer_norm_channels_first(
            x, self.weight, self.bias, self.eps,
            packed=self._packed_params(0))


# -----------------------------------------------------------------------------
# pure-JAX reference (matches the PyTorch forward exactly)
# -----------------------------------------------------------------------------
def _ref_layer_norm(x, weight, bias, eps, data_format):
    x = x.astype(jnp.float32)
    if data_format == 'channels_last':
        u = jnp.mean(x, axis=-1, keepdims=True)
        s = jnp.mean(jnp.square(x - u), axis=-1, keepdims=True)
        y = (x - u) / jnp.sqrt(s + eps)
        return y * weight + bias
    u = jnp.mean(x, axis=1, keepdims=True)
    s = jnp.mean(jnp.square(x - u), axis=1, keepdims=True)
    y = (x - u) / jnp.sqrt(s + eps)
    return y * weight[None, :, None, None] + bias[None, :, None, None]


# -----------------------------------------------------------------------------
if __name__ == "__main__":
    key = jax.random.PRNGKey(0)
    k1, k2, k3, k4, k5 = jax.random.split(key, 5)

    B, C, H, W = 2, 32, 16, 16

    # non-trivial affine params so weight/bias application is actually tested
    weight = jnp.float32(1.0) + 0.1 * jax.random.normal(k3, (C,), jnp.float32)
    bias = 0.1 * jax.random.normal(k4, (C,), jnp.float32)

    # --- channels_last, C=32 (lane-folded path): (B, H, W, C) --------------
    x_last = jax.random.normal(k1, (B, H, W, C), jnp.float32)
    ln_last = LayerNorm(C, eps=1e-6, data_format='channels_last')
    ln_last.weight, ln_last.bias = weight, bias
    y_last = ln_last(x_last)
    jax.block_until_ready(y_last)
    ref_last = _ref_layer_norm(x_last, weight, bias, 1e-6, 'channels_last')
    assert y_last.shape == x_last.shape
    assert float(jnp.max(jnp.abs(y_last - ref_last))) < 1e-4

    # --- channels_first: (B, C, H, W), normalize over axis 1 ----------------
    x_first = jax.random.normal(k2, (B, C, H, W), jnp.float32)
    ln_first = LayerNorm(C, eps=1e-6, data_format='channels_first')
    ln_first.weight, ln_first.bias = weight, bias
    y_first = ln_first(x_first)
    jax.block_until_ready(y_first)
    ref_first = _ref_layer_norm(x_first, weight, bias, 1e-6, 'channels_first')
    assert y_first.shape == x_first.shape
    assert float(jnp.max(jnp.abs(y_first - ref_first))) < 1e-4

    # --- channels_last, C=100 (non-foldable, plain path) ---------------------
    C2 = 100
    x3 = jax.random.normal(k5, (4, 10, C2), jnp.float32)
    ln3 = LayerNorm(C2, eps=1e-6, data_format='channels_last')
    y3 = ln3(x3)
    jax.block_until_ready(y3)
    ref3 = _ref_layer_norm(x3, ln3.weight, ln3.bias, 1e-6, 'channels_last')
    assert y3.shape == x3.shape
    assert float(jnp.max(jnp.abs(y3 - ref3))) < 1e-4

    print("KERNEL_OK")
</pallas_src>

<mosaic_0001>
module attributes {stable_mosaic.version = 11 : i64} {
  func.func @_ln_last_fold_kernel(%arg0: i32, %arg1: memref<128x128xf32, #tpu.memory_space<vmem>>, %arg2: memref<1x128xf32, #tpu.memory_space<vmem>>, %arg3: memref<1x128xf32, #tpu.memory_space<vmem>>, %arg4: memref<128x4xf32, #tpu.memory_space<vmem>>, %arg5: memref<4x128xf32, #tpu.memory_space<vmem>>, %arg6: memref<128x128xf32, #tpu.memory_space<vmem>>) attributes {dimension_semantics = [#tpu.dimension_semantics<parallel>], iteration_bounds = array<i64: 1>, scalar_prefetch = 0 : i64, scratch_operands = 0 : i64, tpu.core_type = #tpu.core_type<tc>, window_params = [{transform_indices = @transform_0, window_bounds = array<i64: 128, 128>}, {pipeline_mode = #tpu.pipeline_mode<synchronous>, transform_indices = @transform_1, window_bounds = array<i64: 1, 128>}, {pipeline_mode = #tpu.pipeline_mode<synchronous>, transform_indices = @transform_2, window_bounds = array<i64: 1, 128>}, {pipeline_mode = #tpu.pipeline_mode<synchronous>, transform_indices = @transform_3, window_bounds = array<i64: 128, 4>}, {pipeline_mode = #tpu.pipeline_mode<synchronous>, transform_indices = @transform_4, window_bounds = array<i64: 4, 128>}, {transform_indices = @transform_5, window_bounds = array<i64: 128, 128>}]} {
    %c0 = arith.constant 0 : index
    %c0_0 = arith.constant 0 : index
    %0 = vector.load %arg1[%c0, %c0_0] : memref<128x128xf32, #tpu.memory_space<vmem>>, vector<128x128xf32>
    %c0_1 = arith.constant 0 : index
    %c0_2 = arith.constant 0 : index
    %1 = vector.load %arg4[%c0_1, %c0_2] : memref<128x4xf32, #tpu.memory_space<vmem>>, vector<128x4xf32>
    %c0_3 = arith.constant 0 : index
    %c0_4 = arith.constant 0 : index
    %2 = vector.load %arg5[%c0_3, %c0_4] : memref<4x128xf32, #tpu.memory_space<vmem>>, vector<4x128xf32>
    %cst = arith.constant dense<0.000000e+00> : vector<128x4xf32>
    %3 = tpu.matmul %0, %1, %cst {dimension_numbers = #tpu.dot_dimension_numbers<[1], [0], [0], [1], [0, 0, 1, 1], [], []>, precision = #tpu.contract_precision<fp32>} : vector<128x128xf32>, vector<128x4xf32>, vector<128x4xf32> -> vector<128x4xf32>
    %cst_5 = arith.constant 3.125000e-02 : f32
    %4 = vector.broadcast %cst_5 : f32 to vector<128x4xf32>
    %5 = arith.mulf %3, %4 : vector<128x4xf32>
    %cst_6 = arith.constant dense<0.000000e+00> : vector<128x128xf32>
    %6 = tpu.matmul %5, %2, %cst_6 {dimension_numbers = #tpu.dot_dimension_numbers<[1], [0], [0], [1], [0, 0, 1, 1], [], []>, precision = #tpu.contract_precision<fp32>} : vector<128x4xf32>, vector<4x128xf32>, vector<128x128xf32> -> vector<128x128xf32>
    %7 = arith.subf %0, %6 : vector<128x128xf32>
    %8 = arith.mulf %7, %7 : vector<128x128xf32>
    %cst_7 = arith.constant dense<0.000000e+00> : vector<128x4xf32>
    %9 = tpu.matmul %8, %1, %cst_7 {dimension_numbers = #tpu.dot_dimension_numbers<[1], [0], [0], [1], [0, 0, 1, 1], [], []>, precision = #tpu.contract_precision<fp32>} : vector<128x128xf32>, vector<128x4xf32>, vector<128x4xf32> -> vector<128x4xf32>
    %cst_8 = arith.constant 3.125000e-02 : f32
    %10 = vector.broadcast %cst_8 : f32 to vector<128x4xf32>
    %11 = arith.mulf %9, %10 : vector<128x4xf32>
    %cst_9 = arith.constant dense<0.000000e+00> : vector<128x128xf32>
    %12 = tpu.matmul %11, %2, %cst_9 {dimension_numbers = #tpu.dot_dimension_numbers<[1], [0], [0], [1], [0, 0, 1, 1], [], []>, precision = #tpu.contract_precision<fp32>} : vector<128x4xf32>, vector<4x128xf32>, vector<128x128xf32> -> vector<128x128xf32>
    %cst_10 = arith.constant 9.99999997E-7 : f32
    %13 = vector.broadcast %cst_10 : f32 to vector<128x128xf32>
    %14 = arith.addf %12, %13 : vector<128x128xf32>
    %15 = math.rsqrt %14 : vector<128x128xf32>
    %16 = arith.mulf %7, %15 : vector<128x128xf32>
    %c0_11 = arith.constant 0 : index
    %c0_12 = arith.constant 0 : index
    %17 = vector.load %arg2[%c0_11, %c0_12] : memref<1x128xf32, #tpu.memory_space<vmem>>, vector<1x128xf32>
    %18 = vector.broadcast %17 : vector<1x128xf32> to vector<128x128xf32>
    %19 = arith.mulf %16, %18 : vector<128x128xf32>
    %c0_13 = arith.constant 0 : index
    %c0_14 = arith.constant 0 : index
    %20 = vector.load %arg3[%c0_13, %c0_14] : memref<1x128xf32, #tpu.memory_space<vmem>>, vector<1x128xf32>
    %21 = vector.broadcast %20 : vector<1x128xf32> to vector<128x128xf32>
    %22 = arith.addf %19, %21 : vector<128x128xf32>
    %c0_15 = arith.constant 0 : index
    %c0_16 = arith.constant 0 : index
    %23 = vector.load %arg6[%c0_15, %c0_16] : memref<128x128xf32, #tpu.memory_space<vmem>>, vector<128x128xf32>
    tpu.vector_store %arg6[%c0_15, %c0_16], %22 {strides = array<i32>} : memref<128x128xf32, #tpu.memory_space<vmem>>, vector<128x128xf32>,
    return
  }
  func.func @transform_0(%arg0: i32) -> (i32, i32) {
    %c0_i32 = arith.constant 0 : i32
    %c0_i32_0 = arith.constant 0 : i32
    return %arg0, %c0_i32 : i32, i32
  }
  func.func @transform_1(%arg0: i32) -> (i32, i32) {
    %c0_i32 = arith.constant 0 : i32
    %c0_i32_0 = arith.constant 0 : i32
    %c0_i32_1 = arith.constant 0 : i32
    return %c0_i32, %c0_i32_0 : i32, i32
  }
  func.func @transform_2(%arg0: i32) -> (i32, i32) {
    %c0_i32 = arith.constant 0 : i32
    %c0_i32_0 = arith.constant 0 : i32
    %c0_i32_1 = arith.constant 0 : i32
    return %c0_i32, %c0_i32_0 : i32, i32
  }
  func.func @transform_3(%arg0: i32) -> (i32, i32) {
    %c0_i32 = arith.constant 0 : i32
    %c0_i32_0 = arith.constant 0 : i32
    %c0_i32_1 = arith.constant 0 : i32
    return %c0_i32, %c0_i32_0 : i32, i32
  }
  func.func @transform_4(%arg0: i32) -> (i32, i32) {
    %c0_i32 = arith.constant 0 : i32
    %c0_i32_0 = arith.constant 0 : i32
    %c0_i32_1 = arith.constant 0 : i32
    return %c0_i32, %c0_i32_0 : i32, i32
  }
  func.func @transform_5(%arg0: i32) -> (i32, i32) {
    %c0_i32 = arith.constant 0 : i32
    %c0_i32_0 = arith.constant 0 : i32
    return %arg0, %c0_i32 : i32, i32
  }
}

</mosaic_0001>

<llo_original>
// kernel: tpu_custom_call.1
$region0: #{tpu_custom_call.1}
  #allocation0 [shape = 'u32[]', space=smem, size = 0x4, offset = 0x4, fixed_abs, tag = 'smem constant byte address 0x4 - core index']
  #allocation1 [shape = 'u32[144,128]{1,0:T(1,128)}', space=vmem, size = 0x12000, scoped, tag = 'internal scratch']
  %s0 = inlined_call_operand.vmem [shape: f32[128,128], index: 0, kind: input, shape index: {}]
  %s1 = inlined_call_operand.vmem [shape: f32[1,128], index: 1, kind: input, shape index: {}]
  %s2 = inlined_call_operand.hbm [shape: f32[1,128], index: 2, kind: input, shape index: {}]
  %s3 = inlined_call_operand.vmem [shape: f32[128,4], index: 3, kind: input, shape index: {}]
  %s4 = inlined_call_operand.vmem [shape: f32[4,128], index: 4, kind: input, shape index: {}]
  %s5 = inlined_call_operand.hbm [shape: f32[128,128], index: 5, kind: output, shape index: {}]
  %s6 = sld [smem:[#allocation0]]
  $region34: #{tpu_custom_call.1} parent=0
    _
  %s8 = ssub.s32 1, %s6
  %s9 = scalar_select 0, %s8, %s6
  $region1: #{tpu_custom_call.1} parent=0
    #allocation2 [shape = 'u8[512]{0}', space=vmem, size = 0x400, scoped, tag = 'input window, operand 2, single buffered']
    #allocation3 [shape = 's32[1]{0}', space=sflag, size = 0x4, scoped, tag = 'scoped memory for tpu_custom_call.1']
    #allocation4 [shape = 's32[1]{0}', space=sflag, size = 0x4, scoped, tag = 'scoped memory for tpu_custom_call.1']
    #allocation5 [shape = 'u8[65536]{0}', space=vmem, size = 0x10000, scoped, tag = 'output window, operand 0, single buffered']
    %10 = vsyncpa [#allocation3], 0
    %11 = vsyncpa [#allocation4], 0
    // Predicated region
    $region2: #{tpu_custom_call.1} parent=1 // pred_check
      _
    $region3: #{tpu_custom_call.1} parent=1 // pred_check_branch
      %13 = sbr.rel (0) target = $region5
    $region4: #{tpu_custom_call.1} parent=1 // pred_region
      _
    $region5: #{tpu_custom_call.1} parent=1 // pred_fallthru
      _
    // Predicated region
    $region6: #{tpu_custom_call.1} parent=1 // pred_check
      _
    $region7: #{tpu_custom_call.1} parent=1 // pred_check_branch
      %15 = sbr.rel (0) target = $region9
    $region8: #{tpu_custom_call.1} parent=1 // pred_region
      _
    $region9: #{tpu_custom_call.1} parent=1 // pred_fallthru
      _
    // Predicated region
    $region10: #{tpu_custom_call.1} parent=1 // pred_check
      _
    $region11: #{tpu_custom_call.1} parent=1 // pred_check_branch
      %17 = sbr.rel (0) target = $region13
    $region12: #{tpu_custom_call.1} parent=1 // pred_region
      %s19 = ssub.s32 16, 16
      %20 = vsyncadd [#allocation3], %s19
      %s22 = sshll.u32 [#allocation2], 4
      %s23 = int_to_ptr.vmem [resolvable:$true] %s22
      %25 = dma.hbm_to_vmem [thread:$0]  %s2, 16, %s23, [#allocation3]
    $region13: #{tpu_custom_call.1} parent=1 // pred_fallthru
      _
    // Predicated region
    $region14: #{tpu_custom_call.1} parent=1 // pred_check
      _
    $region15: #{tpu_custom_call.1} parent=1 // pred_check_branch
      %27 = sbr.rel (0) target = $region17
    $region16: #{tpu_custom_call.1} parent=1 // pred_region
      _
    $region17: #{tpu_custom_call.1} parent=1 // pred_fallthru
      _
    // Predicated region
    $region18: #{tpu_custom_call.1} parent=1 // pred_check
      _
    $region19: #{tpu_custom_call.1} parent=1 // pred_check_branch
      %29 = sbr.rel (0) target = $region21
    $region20: #{tpu_custom_call.1} parent=1 // pred_region
      _
    $region21: #{tpu_custom_call.1} parent=1 // pred_fallthru
      _
    // Predicated region
    $region22: #{tpu_custom_call.1} parent=1 // pred_check
      _
    $region23: #{tpu_custom_call.1} parent=1 // pred_check_branch
      %31 = sbr.rel (0) target = $region25
    $region24: #{tpu_custom_call.1} parent=1 // pred_region
      %32 = dma.done [#allocation3], 16
    $region25: #{tpu_custom_call.1} parent=1 // pred_fallthru
      _
    %v33 = vld [vmem:[%s0] sm:$0xff]
    %v34 = vld [vmem:[%s0 + $0x8] sm:$0xff]
    %v35 = vld [vmem:[%s0 + $0x10] sm:$0xff]
    %v36 = vld [vmem:[%s0 + $0x18] sm:$0xff]
    %v37 = vld [vmem:[%s0 + $0x20] sm:$0xff]
    %v38 = vld [vmem:[%s0 + $0x28] sm:$0xff]
    %v39 = vld [vmem:[%s0 + $0x30] sm:$0xff]
    %v40 = vld [vmem:[%s0 + $0x38] sm:$0xff]
    %v41 = vld [vmem:[%s0 + $0x40] sm:$0xff]
    %v42 = vld [vmem:[%s0 + $0x48] sm:$0xff]
    %v43 = vld [vmem:[%s0 + $0x50] sm:$0xff]
    %v44 = vld [vmem:[%s0 + $0x58] sm:$0xff]
    %v45 = vld [vmem:[%s0 + $0x60] sm:$0xff]
    %v46 = vld [vmem:[%s0 + $0x68] sm:$0xff]
    %v47 = vld [vmem:[%s0 + $0x70] sm:$0xff]
    %v48 = vld [vmem:[%s0 + $0x78] sm:$0xff]
    %v49 = vld [vmem:[%s3] sm:$0xff]
    %v50 = vld [vmem:[%s3 + $0x8] sm:$0xff]
    %v51 = vld [vmem:[%s3 + $0x10] sm:$0xff]
    %v52 = vld [vmem:[%s3 + $0x18] sm:$0xff]
    %v53 = vld [vmem:[%s3 + $0x20] sm:$0xff]
    %v54 = vld [vmem:[%s3 + $0x28] sm:$0xff]
    %v55 = vld [vmem:[%s3 + $0x30] sm:$0xff]
    %v56 = vld [vmem:[%s3 + $0x38] sm:$0xff]
    %v57 = vld [vmem:[%s3 + $0x40] sm:$0xff]
    %v58 = vld [vmem:[%s3 + $0x48] sm:$0xff]
    %v59 = vld [vmem:[%s3 + $0x50] sm:$0xff]
    %v60 = vld [vmem:[%s3 + $0x58] sm:$0xff]
    %v61 = vld [vmem:[%s3 + $0x60] sm:$0xff]
    %v62 = vld [vmem:[%s3 + $0x68] sm:$0xff]
    %v63 = vld [vmem:[%s3 + $0x70] sm:$0xff]
    %v64 = vld [vmem:[%s3 + $0x78] sm:$0xff]
    %v65 = vld [vmem:[%s4] sm:$0xf]
    %66 = vmatprep.subr.mxu0 0.0
    %v67 = vand.u32 %v64, 4294901760
    %68 = vmatpush1.msra.mxu0 %v67
    %69 = vmatprep.subr.mxu0 0.0
    %v70 = vand.u32 %v63, 4294901760
    %71 = vmatpush1.msra.mxu0 %v70
    %72 = vmatprep.subr.mxu0 0.0
    %v73 = vand.u32 %v62, 4294901760
    %74 = vmatpush1.msra.mxu0 %v73
    %75 = vmatprep.subr.mxu0 0.0
    %v76 = vand.u32 %v61, 4294901760
    %77 = vmatpush1.msra.mxu0 %v76
    %78 = vmatprep.subr.mxu0 0.0
    %v79 = vand.u32 %v60, 4294901760
    %80 = vmatpush1.msra.mxu0 %v79
    %81 = vmatprep.subr.mxu0 0.0
    %v82 = vand.u32 %v59, 4294901760
    %83 = vmatpush1.msra.mxu0 %v82
    %84 = vmatprep.subr.mxu0 0.0
    %v85 = vand.u32 %v58, 4294901760
    %86 = vmatpush1.msra.mxu0 %v85
    %87 = vmatprep.subr.mxu0 0.0
    %v88 = vand.u32 %v57, 4294901760
    %89 = vmatpush1.msra.mxu0 %v88
    %90 = vmatprep.subr.mxu0 0.0
    %v91 = vand.u32 %v56, 4294901760
    %92 = vmatpush1.msra.mxu0 %v91
    %93 = vmatprep.subr.mxu0 0.0
    %v94 = vand.u32 %v55, 4294901760
    %95 = vmatpush1.msra.mxu0 %v94
    %96 = vmatprep.subr.mxu0 0.0
    %v97 = vand.u32 %v54, 4294901760
    %98 = vmatpush1.msra.mxu0 %v97
    %99 = vmatprep.subr.mxu0 0.0
    %v100 = vand.u32 %v53, 4294901760
    %101 = vmatpush1.msra.mxu0 %v100
    %102 = vmatprep.subr.mxu0 0.0
    %v103 = vand.u32 %v52, 4294901760
    %104 = vmatpush1.msra.mxu0 %v103
    %105 = vmatprep.subr.mxu0 0.0
    %v106 = vand.u32 %v51, 4294901760
    %107 = vmatpush1.msra.mxu0 %v106
    %108 = vmatprep.subr.mxu0 0.0
    %v109 = vand.u32 %v50, 4294901760
    %110 = vmatpush1.msra.mxu0 %v109
    %111 = vmatprep.subr.mxu0 0.0
    %v112 = vand.u32 %v49, 4294901760
    %113 = vmatpush1.msra.mxu0 %v112
    %114 = vmatprep.subr.mxu0 0.0
    %115 = vmatpush2.msra.mxu0 0.0
    %116 = vmatprep.subr.mxu0 0.0
    %117 = vmatpush2.msra.mxu0 0.0
    %118 = vmatprep.subr.mxu0 0.0
    %119 = vmatpush2.msra.mxu0 0.0
    %120 = vmatprep.subr.mxu0 0.0
    %121 = vmatpush2.msra.mxu0 0.0
    %122 = vmatprep.subr.mxu0 0.0
    %123 = vmatpush2.msra.mxu0 0.0
    %124 = vmatprep.subr.mxu0 0.0
    %125 = vmatpush2.msra.mxu0 0.0
    %126 = vmatprep.subr.mxu0 0.0
    %127 = vmatpush2.msra.mxu0 0.0
    %128 = vmatprep.subr.mxu0 0.0
    %129 = vmatpush2.msra.mxu0 0.0
    %130 = vmatprep.subr.mxu0 0.0
    %131 = vmatpush2.msra.mxu0 0.0
    %132 = vmatprep.subr.mxu0 0.0
    %133 = vmatpush2.msra.mxu0 0.0
    %134 = vmatprep.subr.mxu0 0.0
    %135 = vmatpush2.msra.mxu0 0.0
    %136 = vmatprep.subr.mxu0 0.0
    %137 = vmatpush2.msra.mxu0 0.0
    %138 = vmatprep.subr.mxu0 0.0
    %139 = vmatpush2.msra.mxu0 0.0
    %140 = vmatprep.subr.mxu0 0.0
    %141 = vmatpush2.msra.mxu0 0.0
    %142 = vmatprep.subr.mxu0 0.0
    %143 = vmatpush2.msra.mxu0 0.0
    %144 = vmatprep.subr.mxu0 0.0
    %145 = vmatpush2.msra.mxu0 0.0
    %146 = vmatprep.mubr.f32.mxu0 0.0
    %v147 = vand.u32 %v33, 4294901760
    %v148 = vsub.f32 %v33, %v147
    %v149 = vand.u32 %v148, 4294901760
    %v150 = vsub.f32 %v148, %v149
    %v151 = vand.u32 %v150, 4294901760
    %152 = vmatmul.mubr.f32.gmra.mxu0 %v151
    %v153 = vpop.f32.mrf.mxu0
    %v154 = vadd.f32 0.0, %v153
    %v155 = vpop.f32.mrf.mxu0
    %156 = vmatprep.mubr.f32.mxu0 0.0
    %v157 = vand.u32 %v34, 4294901760
    %v158 = vsub.f32 %v34, %v157
    %v159 = vand.u32 %v158, 4294901760
    %v160 = vsub.f32 %v158, %v159
    %v161 = vand.u32 %v160, 4294901760
    %162 = vmatmul.mubr.f32.gmra.mxu0 %v161
    %v163 = vpop.f32.mrf.mxu0
    %v164 = vadd.f32 0.0, %v163
    %v165 = vpop.f32.mrf.mxu0
    %166 = vmatprep.mubr.f32.mxu0 0.0
    %v167 = vand.u32 %v35, 4294901760
    %v168 = vsub.f32 %v35, %v167
    %v169 = vand.u32 %v168, 4294901760
    %v170 = vsub.f32 %v168, %v169
    %v171 = vand.u32 %v170, 4294901760
    %172 = vmatmul.mubr.f32.gmra.mxu0 %v171
    %v173 = vpop.f32.mrf.mxu0
    %v174 = vadd.f32 0.0, %v173
    %v175 = vpop.f32.mrf.mxu0
    %176 = vmatprep.mubr.f32.mxu0 0.0
    %v177 = vand.u32 %v36, 4294901760
    %v178 = vsub.f32 %v36, %v177
    %v179 = vand.u32 %v178, 4294901760
    %v180 = vsub.f32 %v178, %v179
    %v181 = vand.u32 %v180, 4294901760
    %182 = vmatmul.mubr.f32.gmra.mxu0 %v181
    %v183 = vpop.f32.mrf.mxu0
    %v184 = vadd.f32 0.0, %v183
    %v185 = vpop.f32.mrf.mxu0
    %186 = vmatprep.mubr.f32.mxu0 0.0
    %v187 = vand.u32 %v37, 4294901760
    %v188 = vsub.f32 %v37, %v187
    %v189 = vand.u32 %v188, 4294901760
    %v190 = vsub.f32 %v188, %v189
    %v191 = vand.u32 %v190, 4294901760
    %192 = vmatmul.mubr.f32.gmra.mxu0 %v191
    %v193 = vpop.f32.mrf.mxu0
    %v194 = vadd.f32 0.0, %v193
    %v195 = vpop.f32.mrf.mxu0
    %196 = vmatprep.mubr.f32.mxu0 0.0
    %v197 = vand.u32 %v38, 4294901760
    %v198 = vsub.f32 %v38, %v197
    %v199 = vand.u32 %v198, 4294901760
    %v200 = vsub.f32 %v198, %v199
    %v201 = vand.u32 %v200, 4294901760
    %202 = vmatmul.mubr.f32.gmra.mxu0 %v201
    %v203 = vpop.f32.mrf.mxu0
    %v204 = vadd.f32 0.0, %v203
    %v205 = vpop.f32.mrf.mxu0
    %206 = vmatprep.mubr.f32.mxu0 0.0
    %v207 = vand.u32 %v39, 4294901760
    %v208 = vsub.f32 %v39, %v207
    %v209 = vand.u32 %v208, 4294901760
    %v210 = vsub.f32 %v208, %v209
    %v211 = vand.u32 %v210, 4294901760
    %212 = vmatmul.mubr.f32.gmra.mxu0 %v211
    %v213 = vpop.f32.mrf.mxu0
    %v214 = vadd.f32 0.0, %v213
    %v215 = vpop.f32.mrf.mxu0
    %216 = vmatprep.mubr.f32.mxu0 0.0
    %v217 = vand.u32 %v40, 4294901760
    %v218 = vsub.f32 %v40, %v217
    %v219 = vand.u32 %v218, 4294901760
    %v220 = vsub.f32 %v218, %v219
    %v221 = vand.u32 %v220, 4294901760
    %222 = vmatmul.mubr.f32.gmra.mxu0 %v221
    %v223 = vpop.f32.mrf.mxu0
    %v224 = vadd.f32 0.0, %v223
    %v225 = vpop.f32.mrf.mxu0
    %226 = vmatprep.mubr.f32.mxu0 0.0
    %v227 = vand.u32 %v41, 4294901760
    %v228 = vsub.f32 %v41, %v227
    %v229 = vand.u32 %v228, 4294901760
    %v230 = vsub.f32 %v228, %v229
    %v231 = vand.u32 %v230, 4294901760
    %232 = vmatmul.mubr.f32.gmra.mxu0 %v231
    %v233 = vpop.f32.mrf.mxu0
    %v234 = vadd.f32 0.0, %v233
    %v235 = vpop.f32.mrf.mxu0
    %236 = vmatprep.mubr.f32.mxu0 0.0
    %v237 = vand.u32 %v42, 4294901760
    %v238 = vsub.f32 %v42, %v237
    %v239 = vand.u32 %v238, 4294901760
    %v240 = vsub.f32 %v238, %v239
    %v241 = vand.u32 %v240, 4294901760
    %242 = vmatmul.mubr.f32.gmra.mxu0 %v241
    %v243 = vpop.f32.mrf.mxu0
    %v244 = vadd.f32 0.0, %v243
    %v245 = vpop.f32.mrf.mxu0
    %246 = vmatprep.mubr.f32.mxu0 0.0
    %v247 = vand.u32 %v43, 4294901760
    %v248 = vsub.f32 %v43, %v247
    %v249 = vand.u32 %v248, 4294901760
    %v250 = vsub.f32 %v248, %v249
    %v251 = vand.u32 %v250, 4294901760
    %252 = vmatmul.mubr.f32.gmra.mxu0 %v251
    %v253 = vpop.f32.mrf.mxu0
    %v254 = vadd.f32 0.0, %v253
    %v255 = vpop.f32.mrf.mxu0
    %256 = vmatprep.mubr.f32.mxu0 0.0
    %v257 = vand.u32 %v44, 4294901760
    %v258 = vsub.f32 %v44, %v257
    %v259 = vand.u32 %v258, 4294901760
    %v260 = vsub.f32 %v258, %v259
    %v261 = vand.u32 %v260, 4294901760
    %262 = vmatmul.mubr.f32.gmra.mxu0 %v261
    %v263 = vpop.f32.mrf.mxu0
    %v264 = vadd.f32 0.0, %v263
    %v265 = vpop.f32.mrf.mxu0
    %266 = vmatprep.mubr.f32.mxu0 0.0
    %v267 = vand.u32 %v45, 4294901760
    %v268 = vsub.f32 %v45, %v267
    %v269 = vand.u32 %v268, 4294901760
    %v270 = vsub.f32 %v268, %v269
    %v271 = vand.u32 %v270, 4294901760
    %272 = vmatmul.mubr.f32.gmra.mxu0 %v271
    %v273 = vpop.f32.mrf.mxu0
    %v274 = vadd.f32 0.0, %v273
    %v275 = vpop.f32.mrf.mxu0
    %276 = vmatprep.mubr.f32.mxu0 0.0
    %v277 = vand.u32 %v46, 4294901760
    %v278 = vsub.f32 %v46, %v277
    %v279 = vand.u32 %v278, 4294901760
    %v280 = vsub.f32 %v278, %v279
    %v281 = vand.u32 %v280, 4294901760
    %282 = vmatmul.mubr.f32.gmra.mxu0 %v281
    %v283 = vpop.f32.mrf.mxu0
    %v284 = vadd.f32 0.0, %v283
    %v285 = vpop.f32.mrf.mxu0
    %286 = vmatprep.mubr.f32.mxu0 0.0
    %v287 = vand.u32 %v47, 4294901760
    %v288 = vsub.f32 %v47, %v287
    %v289 = vand.u32 %v288, 4294901760
    %v290 = vsub.f32 %v288, %v289
    %v291 = vand.u32 %v290, 4294901760
    %292 = vmatmul.mubr.f32.gmra.mxu0 %v291
    %v293 = vpop.f32.mrf.mxu0
    %v294 = vadd.f32 0.0, %v293
    %v295 = vpop.f32.mrf.mxu0
    %296 = vmatprep.mubr.f32.mxu0 0.0
    %v297 = vand.u32 %v48, 4294901760
    %v298 = vsub.f32 %v48, %v297
    %v299 = vand.u32 %v298, 4294901760
    %v300 = vsub.f32 %v298, %v299
    %v301 = vand.u32 %v300, 4294901760
    %302 = vmatmul.mubr.f32.gmra.mxu0 %v301
    %v303 = vpop.f32.mrf.mxu0
    %v304 = vadd.f32 0.0, %v303
    %v305 = vpop.f32.mrf.mxu0
    %306 = vdwg.mxu0
    %307 = vmatprep.subr.mxu0 0.0
    %v308 = vand.u32 %v64, 4294901760
    %v309 = vsub.f32 %v64, %v308
    %v310 = vand.u32 %v309, 4294901760
    %v311 = vsub.f32 %v309, %v310
    %v312 = vand.u32 %v311, 4294901760
    %313 = vmatpush1.msra.mxu0 %v312
    %314 = vmatprep.subr.mxu0 0.0
    %v315 = vand.u32 %v63, 4294901760
    %v316 = vsub.f32 %v63, %v315
    %v317 = vand.u32 %v316, 4294901760
    %v318 = vsub.f32 %v316, %v317
    %v319 = vand.u32 %v318, 4294901760
    %320 = vmatpush1.msra.mxu0 %v319
    %321 = vmatprep.subr.mxu0 0.0
    %v322 = vand.u32 %v62, 4294901760
    %v323 = vsub.f32 %v62, %v322
    %v324 = vand.u32 %v323, 4294901760
    %v325 = vsub.f32 %v323, %v324
    %v326 = vand.u32 %v325, 4294901760
    %327 = vmatpush1.msra.mxu0 %v326
    %328 = vmatprep.subr.mxu0 0.0
    %v329 = vand.u32 %v61, 4294901760
    %v330 = vsub.f32 %v61, %v329
    %v331 = vand.u32 %v330, 4294901760
    %v332 = vsub.f32 %v330, %v331
    %v333 = vand.u32 %v332, 4294901760
    %334 = vmatpush1.msra.mxu0 %v333
    %335 = vmatprep.subr.mxu0 0.0
    %v336 = vand.u32 %v60, 4294901760
    %v337 = vsub.f32 %v60, %v336
    %v338 = vand.u32 %v337, 4294901760
    %v339 = vsub.f32 %v337, %v338
    %v340 = vand.u32 %v339, 4294901760
    %341 = vmatpush1.msra.mxu0 %v340
    %342 = vmatprep.subr.mxu0 0.0
    %v343 = vand.u32 %v59, 4294901760
    %v344 = vsub.f32 %v59, %v343
    %v345 = vand.u32 %v344, 4294901760
    %v346 = vsub.f32 %v344, %v345
    %v347 = vand.u32 %v346, 4294901760
    %348 = vmatpush1.msra.mxu0 %v347
    %349 = vmatprep.subr.mxu0 0.0
    %v350 = vand.u32 %v58, 4294901760
    %v351 = vsub.f32 %v58, %v350
    %v352 = vand.u32 %v351, 4294901760
    %v353 = vsub.f32 %v351, %v352
    %v354 = vand.u32 %v353, 4294901760
    %355 = vmatpush1.msra.mxu0 %v354
    %356 = vmatprep.subr.mxu0 0.0
    %v357 = vand.u32 %v57, 4294901760
    %v358 = vsub.f32 %v57, %v357
    %v359 = vand.u32 %v358, 4294901760
    %v360 = vsub.f32 %v358, %v359
    %v361 = vand.u32 %v360, 4294901760
    %362 = vmatpush1.msra.mxu0 %v361
    %363 = vmatprep.subr.mxu0 0.0
    %v364 = vand.u32 %v56, 4294901760
    %v365 = vsub.f32 %v56, %v364
    %v366 = vand.u32 %v365, 4294901760
    %v367 = vsub.f32 %v365, %v366
    %v368 = vand.u32 %v367, 4294901760
    %369 = vmatpush1.msra.mxu0 %v368
    %370 = vmatprep.subr.mxu0 0.0
    %v371 = vand.u32 %v55, 4294901760
    %v372 = vsub.f32 %v55, %v371
    %v373 = vand.u32 %v372, 4294901760
    %v374 = vsub.f32 %v372, %v373
    %v375 = vand.u32 %v374, 4294901760
    %376 = vmatpush1.msra.mxu0 %v375
    %377 = vmatprep.subr.mxu0 0.0
    %v378 = vand.u32 %v54, 4294901760
    %v379 = vsub.f32 %v54, %v378
    %v380 = vand.u32 %v379, 4294901760
    %v381 = vsub.f32 %v379, %v380
    %v382 = vand.u32 %v381, 4294901760
    %383 = vmatpush1.msra.mxu0 %v382
    %384 = vmatprep.subr.mxu0 0.0
    %v385 = vand.u32 %v53, 4294901760
    %v386 = vsub.f32 %v53, %v385
    %v387 = vand.u32 %v386, 4294901760
    %v388 = vsub.f32 %v386, %v387
    %v389 = vand.u32 %v388, 4294901760
    %390 = vmatpush1.msra.mxu0 %v389
    %391 = vmatprep.subr.mxu0 0.0
    %v392 = vand.u32 %v52, 4294901760
    %v393 = vsub.f32 %v52, %v392
    %v394 = vand.u32 %v393, 4294901760
    %v395 = vsub.f32 %v393, %v394
    %v396 = vand.u32 %v395, 4294901760
    %397 = vmatpush1.msra.mxu0 %v396
    %398 = vmatprep.subr.mxu0 0.0
    %v399 = vand.u32 %v51, 4294901760
    %v400 = vsub.f32 %v51, %v399
    %v401 = vand.u32 %v400, 4294901760
    %v402 = vsub.f32 %v400, %v401
    %v403 = vand.u32 %v402, 4294901760
    %404 = vmatpush1.msra.mxu0 %v403
    %405 = vmatprep.subr.mxu0 0.0
    %v406 = vand.u32 %v50, 4294901760
    %v407 = vsub.f32 %v50, %v406
    %v408 = vand.u32 %v407, 4294901760
    %v409 = vsub.f32 %v407, %v408
    %v410 = vand.u32 %v409, 4294901760
    %411 = vmatpush1.msra.mxu0 %v410
    %412 = vmatprep.subr.mxu0 0.0
    %v413 = vand.u32 %v49, 4294901760
    %v414 = vsub.f32 %v49, %v413
    %v415 = vand.u32 %v414, 4294901760
    %v416 = vsub.f32 %v414, %v415
    %v417 = vand.u32 %v416, 4294901760
    %418 = vmatpush1.msra.mxu0 %v417
    %419 = vmatprep.subr.mxu0 0.0
    %420 = vmatpush2.msra.mxu0 0.0
    %421 = vmatprep.subr.mxu0 0.0
    %422 = vmatpush2.msra.mxu0 0.0
    %423 = vmatprep.subr.mxu0 0.0
    %424 = vmatpush2.msra.mxu0 0.0
    %425 = vmatprep.subr.mxu0 0.0
    %426 = vmatpush2.msra.mxu0 0.0
    %427 = vmatprep.subr.mxu0 0.0
    %428 = vmatpush2.msra.mxu0 0.0
    %429 = vmatprep.subr.mxu0 0.0
    %430 = vmatpush2.msra.mxu0 0.0
    %431 = vmatprep.subr.mxu0 0.0
    %432 = vmatpush2.msra.mxu0 0.0
    %433 = vmatprep.subr.mxu0 0.0
    %434 = vmatpush2.msra.mxu0 0.0
    %435 = vmatprep.subr.mxu0 0.0
    %436 = vmatpush2.msra.mxu0 0.0
    %437 = vmatprep.subr.mxu0 0.0
    %438 = vmatpush2.msra.mxu0 0.0
    %439 = vmatprep.subr.mxu0 0.0
    %440 = vmatpush2.msra.mxu0 0.0
    %441 = vmatprep.subr.mxu0 0.0
    %442 = vmatpush2.msra.mxu0 0.0
    %443 = vmatprep.subr.mxu0 0.0
    %444 = vmatpush2.msra.mxu0 0.0
    %445 = vmatprep.subr.mxu0 0.0
    %446 = vmatpush2.msra.mxu0 0.0
    %447 = vmatprep.subr.mxu0 0.0
    %448 = vmatpush2.msra.mxu0 0.0
    %449 = vmatprep.subr.mxu0 0.0
    %450 = vmatpush2.msra.mxu0 0.0
    %451 = vmatprep.mubr.f32.mxu0 0.0
    %v452 = vand.u32 %v33, 4294901760
    %453 = vmatmul.mubr.f32.gmra.mxu0 %v452
    %v454 = vpop.f32.mrf.mxu0
    %v455 = vadd.f32 %v154, %v454
    %v456 = vpop.f32.mrf.mxu0
    %457 = vmatprep.mubr.f32.mxu0 0.0
    %v458 = vand.u32 %v34, 4294901760
    %459 = vmatmul.mubr.f32.gmra.mxu0 %v458
    %v460 = vpop.f32.mrf.mxu0
    %v461 = vadd.f32 %v164, %v460
    %v462 = vpop.f32.mrf.mxu0
    %463 = vmatprep.mubr.f32.mxu0 0.0
    %v464 = vand.u32 %v35, 4294901760
    %465 = vmatmul.mubr.f32.gmra.mxu0 %v464
    %v466 = vpop.f32.mrf.mxu0
    %v467 = vadd.f32 %v174, %v466
    %v468 = vpop.f32.mrf.mxu0
    %469 = vmatprep.mubr.f32.mxu0 0.0
    %v470 = vand.u32 %v36, 4294901760
    %471 = vmatmul.mubr.f32.gmra.mxu0 %v470
    %v472 = vpop.f32.mrf.mxu0
    %v473 = vadd.f32 %v184, %v472
    %v474 = vpop.f32.mrf.mxu0
    %475 = vmatprep.mubr.f32.mxu0 0.0
    %v476 = vand.u32 %v37, 4294901760
    %477 = vmatmul.mubr.f32.gmra.mxu0 %v476
    %v478 = vpop.f32.mrf.mxu0
    %v479 = vadd.f32 %v194, %v478
    %v480 = vpop.f32.mrf.mxu0
    %481 = vmatprep.mubr.f32.mxu0 0.0
    %v482 = vand.u32 %v38, 4294901760
    %483 = vmatmul.mubr.f32.gmra.mxu0 %v482
    %v484 = vpop.f32.mrf.mxu0
    %v485 = vadd.f32 %v204, %v484
    %v486 = vpop.f32.mrf.mxu0
    %487 = vmatprep.mubr.f32.mxu0 0.0
    %v488 = vand.u32 %v39, 4294901760
    %489 = vmatmul.mubr.f32.gmra.mxu0 %v488
    %v490 = vpop.f32.mrf.mxu0
    %v491 = vadd.f32 %v214, %v490
    %v492 = vpop.f32.mrf.mxu0
    %493 = vmatprep.mubr.f32.mxu0 0.0
    %v494 = vand.u32 %v40, 4294901760
    %495 = vmatmul.mubr.f32.gmra.mxu0 %v494
    %v496 = vpop.f32.mrf.mxu0
    %v497 = vadd.f32 %v224, %v496
    %v498 = vpop.f32.mrf.mxu0
    %499 = vmatprep.mubr.f32.mxu0 0.0
    %v500 = vand.u32 %v41, 4294901760
    %501 = vmatmul.mubr.f32.gmra.mxu0 %v500
    %v502 = vpop.f32.mrf.mxu0
    %v503 = vadd.f32 %v234, %v502
    %v504 = vpop.f32.mrf.mxu0
    %505 = vmatprep.mubr.f32.mxu0 0.0
    %v506 = vand.u32 %v42, 4294901760
    %507 = vmatmul.mubr.f32.gmra.mxu0 %v506
    %v508 = vpop.f32.mrf.mxu0
    %v509 = vadd.f32 %v244, %v508
    %v510 = vpop.f32.mrf.mxu0
    %511 = vmatprep.mubr.f32.mxu0 0.0
    %v512 = vand.u32 %v43, 4294901760
    %513 = vmatmul.mubr.f32.gmra.mxu0 %v512
    %v514 = vpop.f32.mrf.mxu0
    %v515 = vadd.f32 %v254, %v514
    %v516 = vpop.f32.mrf.mxu0
    %517 = vmatprep.mubr.f32.mxu0 0.0
    %v518 = vand.u32 %v44, 4294901760
    %519 = vmatmul.mubr.f32.gmra.mxu0 %v518
    %v520 = vpop.f32.mrf.mxu0
    %v521 = vadd.f32 %v264, %v520
    %v522 = vpop.f32.mrf.mxu0
    %523 = vmatprep.mubr.f32.mxu0 0.0
    %v524 = vand.u32 %v45, 4294901760
    %525 = vmatmul.mubr.f32.gmra.mxu0 %v524
    %v526 = vpop.f32.mrf.mxu0
    %v527 = vadd.f32 %v274, %v526
    %v528 = vpop.f32.mrf.mxu0
    %529 = vmatprep.mubr.f32.mxu0 0.0
    %v530 = vand.u32 %v46, 4294901760
    %531 = vmatmul.mubr.f32.gmra.mxu0 %v530
    %v532 = vpop.f32.mrf.mxu0
    %v533 = vadd.f32 %v284, %v532
    %v534 = vpop.f32.mrf.mxu0
    %535 = vmatprep.mubr.f32.mxu0 0.0
    %v536 = vand.u32 %v47, 4294901760
    %537 = vmatmul.mubr.f32.gmra.mxu0 %v536
    %v538 = vpop.f32.mrf.mxu0
    %v539 = vadd.f32 %v294, %v538
    %v540 = vpop.f32.mrf.mxu0
    %541 = vmatprep.mubr.f32.mxu0 0.0
    %v542 = vand.u32 %v48, 4294901760
    %543 = vmatmul.mubr.f32.gmra.mxu0 %v542
    %v544 = vpop.f32.mrf.mxu0
    %v545 = vadd.f32 %v304, %v544
    %v546 = vpop.f32.mrf.mxu0
    %547 = vdwg.mxu0
    %548 = vmatprep.subr.mxu0 0.0
    %v549 = vand.u32 %v64, 4294901760
    %v550 = vsub.f32 %v64, %v549
    %551 = vmatpush1.msra.mxu0 %v550
    %552 = vmatprep.subr.mxu0 0.0
    %v553 = vand.u32 %v63, 4294901760
    %v554 = vsub.f32 %v63, %v553
    %555 = vmatpush1.msra.mxu0 %v554
    %556 = vmatprep.subr.mxu0 0.0
    %v557 = vand.u32 %v62, 4294901760
    %v558 = vsub.f32 %v62, %v557
    %559 = vmatpush1.msra.mxu0 %v558
    %560 = vmatprep.subr.mxu0 0.0
    %v561 = vand.u32 %v61, 4294901760
    %v562 = vsub.f32 %v61, %v561
    %563 = vmatpush1.msra.mxu0 %v562
    %564 = vmatprep.subr.mxu0 0.0
    %v565 = vand.u32 %v60, 4294901760
    %v566 = vsub.f32 %v60, %v565
    %567 = vmatpush1.msra.mxu0 %v566
    %568 = vmatprep.subr.mxu0 0.0
    %v569 = vand.u32 %v59, 4294901760
    %v570 = vsub.f32 %v59, %v569
    %571 = vmatpush1.msra.mxu0 %v570
    %572 = vmatprep.subr.mxu0 0.0
    %v573 = vand.u32 %v58, 4294901760
    %v574 = vsub.f32 %v58, %v573
    %575 = vmatpush1.msra.mxu0 %v574
    %576 = vmatprep.subr.mxu0 0.0
    %v577 = vand.u32 %v57, 4294901760
    %v578 = vsub.f32 %v57, %v577
    %579 = vmatpush1.msra.mxu0 %v578
    %580 = vmatprep.subr.mxu0 0.0
    %v581 = vand.u32 %v56, 4294901760
    %v582 = vsub.f32 %v56, %v581
    %583 = vmatpush1.msra.mxu0 %v582
    %584 = vmatprep.subr.mxu0 0.0
    %v585 = vand.u32 %v55, 4294901760
    %v586 = vsub.f32 %v55, %v585
    %587 = vmatpush1.msra.mxu0 %v586
    %588 = vmatprep.subr.mxu0 0.0
    %v589 = vand.u32 %v54, 4294901760
    %v590 = vsub.f32 %v54, %v589
    %591 = vmatpush1.msra.mxu0 %v590
    %592 = vmatprep.subr.mxu0 0.0
    %v593 = vand.u32 %v53, 4294901760
    %v594 = vsub.f32 %v53, %v593
    %595 = vmatpush1.msra.mxu0 %v594
    %596 = vmatprep.subr.mxu0 0.0
    %v597 = vand.u32 %v52, 4294901760
    %v598 = vsub.f32 %v52, %v597
    %599 = vmatpush1.msra.mxu0 %v598
    %600 = vmatprep.subr.mxu0 0.0
    %v601 = vand.u32 %v51, 4294901760
    %v602 = vsub.f32 %v51, %v601
    %603 = vmatpush1.msra.mxu0 %v602
    %604 = vmatprep.subr.mxu0 0.0
    %v605 = vand.u32 %v50, 4294901760
    %v606 = vsub.f32 %v50, %v605
    %607 = vmatpush1.msra.mxu0 %v606
    %608 = vmatprep.subr.mxu0 0.0
    %v609 = vand.u32 %v49, 4294901760
    %v610 = vsub.f32 %v49, %v609
    %611 = vmatpush1.msra.mxu0 %v610
    %612 = vmatprep.subr.mxu0 0.0
    %613 = vmatpush2.msra.mxu0 0.0
    %614 = vmatprep.subr.mxu0 0.0
    %615 = vmatpush2.msra.mxu0 0.0
    %616 = vmatprep.subr.mxu0 0.0
    %617 = vmatpush2.msra.mxu0 0.0
    %618 = vmatprep.subr.mxu0 0.0
    %619 = vmatpush2.msra.mxu0 0.0
    %620 = vmatprep.subr.mxu0 0.0
    %621 = vmatpush2.msra.mxu0 0.0
    %622 = vmatprep.subr.mxu0 0.0
    %623 = vmatpush2.msra.mxu0 0.0
    %624 = vmatprep.subr.mxu0 0.0
    %625 = vmatpush2.msra.mxu0 0.0
    %626 = vmatprep.subr.mxu0 0.0
    %627 = vmatpush2.msra.mxu0 0.0
    %628 = vmatprep.subr.mxu0 0.0
    %629 = vmatpush2.msra.mxu0 0.0
    %630 = vmatprep.subr.mxu0 0.0
    %631 = vmatpush2.msra.mxu0 0.0
    %632 = vmatprep.subr.mxu0 0.0
    %633 = vmatpush2.msra.mxu0 0.0
    %634 = vmatprep.subr.mxu0 0.0
    %635 = vmatpush2.msra.mxu0 0.0
    %636 = vmatprep.subr.mxu0 0.0
    %637 = vmatpush2.msra.mxu0 0.0
    %638 = vmatprep.subr.mxu0 0.0
    %639 = vmatpush2.msra.mxu0 0.0
    %640 = vmatprep.subr.mxu0 0.0
    %641 = vmatpush2.msra.mxu0 0.0
    %642 = vmatprep.subr.mxu0 0.0
    %643 = vmatpush2.msra.mxu0 0.0
    %644 = vmatprep.mubr.f32.mxu0 0.0
    %v645 = vand.u32 %v33, 4294901760
    %v646 = vsub.f32 %v33, %v645
    %647 = vmatmul.mubr.f32.gmra.mxu0 %v646
    %v648 = vpop.f32.mrf.mxu0
    %v649 = vadd.f32 %v455, %v648
    %v650 = vpop.f32.mrf.mxu0
    %651 = vmatprep.mubr.f32.mxu0 0.0
    %v652 = vand.u32 %v34, 4294901760
    %v653 = vsub.f32 %v34, %v652
    %654 = vmatmul.mubr.f32.gmra.mxu0 %v653
    %v655 = vpop.f32.mrf.mxu0
    %v656 = vadd.f32 %v461, %v655
    %v657 = vpop.f32.mrf.mxu0
    %658 = vmatprep.mubr.f32.mxu0 0.0
    %v659 = vand.u32 %v35, 4294901760
    %v660 = vsub.f32 %v35, %v659
    %661 = vmatmul.mubr.f32.gmra.mxu0 %v660
    %v662 = vpop.f32.mrf.mxu0
    %v663 = vadd.f32 %v467, %v662
    %v664 = vpop.f32.mrf.mxu0
    %665 = vmatprep.mubr.f32.mxu0 0.0
    %v666 = vand.u32 %v36, 4294901760
    %v667 = vsub.f32 %v36, %v666
    %668 = vmatmul.mubr.f32.gmra.mxu0 %v667
    %v669 = vpop.f32.mrf.mxu0
    %v670 = vadd.f32 %v473, %v669
    %v671 = vpop.f32.mrf.mxu0
    %672 = vmatprep.mubr.f32.mxu0 0.0
    %v673 = vand.u32 %v37, 4294901760
    %v674 = vsub.f32 %v37, %v673
    %675 = vmatmul.mubr.f32.gmra.mxu0 %v674
    %v676 = vpop.f32.mrf.mxu0
    %v677 = vadd.f32 %v479, %v676
    %v678 = vpop.f32.mrf.mxu0
    %679 = vmatprep.mubr.f32.mxu0 0.0
    %v680 = vand.u32 %v38, 4294901760
    %v681 = vsub.f32 %v38, %v680
    %682 = vmatmul.mubr.f32.gmra.mxu0 %v681
    %v683 = vpop.f32.mrf.mxu0
    %v684 = vadd.f32 %v485, %v683
    %v685 = vpop.f32.mrf.mxu0
    %686 = vmatprep.mubr.f32.mxu0 0.0
    %v687 = vand.u32 %v39, 4294901760
    %v688 = vsub.f32 %v39, %v687
    %689 = vmatmul.mubr.f32.gmra.mxu0 %v688
    %v690 = vpop.f32.mrf.mxu0
    %v691 = vadd.f32 %v491, %v690
    %v692 = vpop.f32.mrf.mxu0
    %693 = vmatprep.mubr.f32.mxu0 0.0
    %v694 = vand.u32 %v40, 4294901760
    %v695 = vsub.f32 %v40, %v694
    %696 = vmatmul.mubr.f32.gmra.mxu0 %v695
    %v697 = vpop.f32.mrf.mxu0
    %v698 = vadd.f32 %v497, %v697
    %v699 = vpop.f32.mrf.mxu0
    %700 = vmatprep.mubr.f32.mxu0 0.0
    %v701 = vand.u32 %v41, 4294901760
    %v702 = vsub.f32 %v41, %v701
    %703 = vmatmul.mubr.f32.gmra.mxu0 %v702
    %v704 = vpop.f32.mrf.mxu0
    %v705 = vadd.f32 %v503, %v704
    %v706 = vpop.f32.mrf.mxu0
    %707 = vmatprep.mubr.f32.mxu0 0.0
    %v708 = vand.u32 %v42, 4294901760
    %v709 = vsub.f32 %v42, %v708
    %710 = vmatmul.mubr.f32.gmra.mxu0 %v709
    %v711 = vpop.f32.mrf.mxu0
    %v712 = vadd.f32 %v509, %v711
    %v713 = vpop.f32.mrf.mxu0
    %714 = vmatprep.mubr.f32.mxu0 0.0
    %v715 = vand.u32 %v43, 4294901760
    %v716 = vsub.f32 %v43, %v715
    %717 = vmatmul.mubr.f32.gmra.mxu0 %v716
    %v718 = vpop.f32.mrf.mxu0
    %v719 = vadd.f32 %v515, %v718
    %v720 = vpop.f32.mrf.mxu0
    %721 = vmatprep.mubr.f32.mxu0 0.0
    %v722 = vand.u32 %v44, 4294901760
    %v723 = vsub.f32 %v44, %v722
    %724 = vmatmul.mubr.f32.gmra.mxu0 %v723
    %v725 = vpop.f32.mrf.mxu0
    %v726 = vadd.f32 %v521, %v725
    %v727 = vpop.f32.mrf.mxu0
    %728 = vmatprep.mubr.f32.mxu0 0.0
    %v729 = vand.u32 %v45, 4294901760
    %v730 = vsub.f32 %v45, %v729
    %731 = vmatmul.mubr.f32.gmra.mxu0 %v730
    %v732 = vpop.f32.mrf.mxu0
    %v733 = vadd.f32 %v527, %v732
    %v734 = vpop.f32.mrf.mxu0
    %735 = vmatprep.mubr.f32.mxu0 0.0
    %v736 = vand.u32 %v46, 4294901760
    %v737 = vsub.f32 %v46, %v736
    %738 = vmatmul.mubr.f32.gmra.mxu0 %v737
    %v739 = vpop.f32.mrf.mxu0
    %v740 = vadd.f32 %v533, %v739
    %v741 = vpop.f32.mrf.mxu0
    %742 = vmatprep.mubr.f32.mxu0 0.0
    %v743 = vand.u32 %v47, 4294901760
    %v744 = vsub.f32 %v47, %v743
    %745 = vmatmul.mubr.f32.gmra.mxu0 %v744
    %v746 = vpop.f32.mrf.mxu0
    %v747 = vadd.f32 %v539, %v746
    %v748 = vpop.f32.mrf.mxu0
    %749 = vmatprep.mubr.f32.mxu0 0.0
    %v750 = vand.u32 %v48, 4294901760
    %v751 = vsub.f32 %v48, %v750
    %752 = vmatmul.mubr.f32.gmra.mxu0 %v751
    %v753 = vpop.f32.mrf.mxu0
    %v754 = vadd.f32 %v545, %v753
    %v755 = vpop.f32.mrf.mxu0
    %756 = vdwg.mxu0
    %757 = vmatprep.subr.mxu0 0.0
    %v758 = vand.u32 %v64, 4294901760
    %759 = vmatpush1.msra.mxu0 %v758
    %760 = vmatprep.subr.mxu0 0.0
    %v761 = vand.u32 %v63, 4294901760
    %762 = vmatpush1.msra.mxu0 %v761
    %763 = vmatprep.subr.mxu0 0.0
    %v764 = vand.u32 %v62, 4294901760
    %765 = vmatpush1.msra.mxu0 %v764
    %766 = vmatprep.subr.mxu0 0.0
    %v767 = vand.u32 %v61, 4294901760
    %768 = vmatpush1.msra.mxu0 %v767
    %769 = vmatprep.subr.mxu0 0.0
    %v770 = vand.u32 %v60, 4294901760
    %771 = vmatpush1.msra.mxu0 %v770
    %772 = vmatprep.subr.mxu0 0.0
    %v773 = vand.u32 %v59, 4294901760
    %774 = vmatpush1.msra.mxu0 %v773
    %775 = vmatprep.subr.mxu0 0.0
    %v776 = vand.u32 %v58, 4294901760
    %777 = vmatpush1.msra.mxu0 %v776
    %778 = vmatprep.subr.mxu0 0.0
    %v779 = vand.u32 %v57, 4294901760
    %780 = vmatpush1.msra.mxu0 %v779
    %781 = vmatprep.subr.mxu0 0.0
    %v782 = vand.u32 %v56, 4294901760
    %783 = vmatpush1.msra.mxu0 %v782
    %784 = vmatprep.subr.mxu0 0.0
    %v785 = vand.u32 %v55, 4294901760
    %786 = vmatpush1.msra.mxu0 %v785
    %787 = vmatprep.subr.mxu0 0.0
    %v788 = vand.u32 %v54, 4294901760
    %789 = vmatpush1.msra.mxu0 %v788
    %790 = vmatprep.subr.mxu0 0.0
    %v791 = vand.u32 %v53, 4294901760
    %792 = vmatpush1.msra.mxu0 %v791
    %793 = vmatprep.subr.mxu0 0.0
    %v794 = vand.u32 %v52, 4294901760
    %795 = vmatpush1.msra.mxu0 %v794
    %796 = vmatprep.subr.mxu0 0.0
    %v797 = vand.u32 %v51, 4294901760
    %798 = vmatpush1.msra.mxu0 %v797
    %799 = vmatprep.subr.mxu0 0.0
    %v800 = vand.u32 %v50, 4294901760
    %801 = vmatpush1.msra.mxu0 %v800
    %802 = vmatprep.subr.mxu0 0.0
    %v803 = vand.u32 %v49, 4294901760
    %804 = vmatpush1.msra.mxu0 %v803
    %805 = vmatprep.subr.mxu0 0.0
    %806 = vmatpush2.msra.mxu0 0.0
    %807 = vmatprep.subr.mxu0 0.0
    %808 = vmatpush2.msra.mxu0 0.0
    %809 = vmatprep.subr.mxu0 0.0
    %810 = vmatpush2.msra.mxu0 0.0
    %811 = vmatprep.subr.mxu0 0.0
    %812 = vmatpush2.msra.mxu0 0.0
    %813 = vmatprep.subr.mxu0 0.0
    %814 = vmatpush2.msra.mxu0 0.0
    %815 = vmatprep.subr.mxu0 0.0
    %816 = vmatpush2.msra.mxu0 0.0
    %817 = vmatprep.subr.mxu0 0.0
    %818 = vmatpush2.msra.mxu0 0.0
    %819 = vmatprep.subr.mxu0 0.0
    %820 = vmatpush2.msra.mxu0 0.0
    %821 = vmatprep.subr.mxu0 0.0
    %822 = vmatpush2.msra.mxu0 0.0
    %823 = vmatprep.subr.mxu0 0.0
    %824 = vmatpush2.msra.mxu0 0.0
    %825 = vmatprep.subr.mxu0 0.0
    %826 = vmatpush2.msra.mxu0 0.0
    %827 = vmatprep.subr.mxu0 0.0
    %828 = vmatpush2.msra.mxu0 0.0
    %829 = vmatprep.subr.mxu0 0.0
    %830 = vmatpush2.msra.mxu0 0.0
    %831 = vmatprep.subr.mxu0 0.0
    %832 = vmatpush2.msra.mxu0 0.0
    %833 = vmatprep.subr.mxu0 0.0
    %834 = vmatpush2.msra.mxu0 0.0
    %835 = vmatprep.subr.mxu0 0.0
    %836 = vmatpush2.msra.mxu0 0.0
    %837 = vmatprep.mubr.f32.mxu0 0.0
    %v838 = vand.u32 %v33, 4294901760
    %v839 = vsub.f32 %v33, %v838
    %v840 = vand.u32 %v839, 4294901760
    %841 = vmatmul.mubr.f32.gmra.mxu0 %v840
    %v842 = vpop.f32.mrf.mxu0
    %v843 = vadd.f32 %v649, %v842
    %v844 = vpop.f32.mrf.mxu0
    %845 = vmatprep.mubr.f32.mxu0 0.0
    %v846 = vand.u32 %v34, 4294901760
    %v847 = vsub.f32 %v34, %v846
    %v848 = vand.u32 %v847, 4294901760
    %849 = vmatmul.mubr.f32.gmra.mxu0 %v848
    %v850 = vpop.f32.mrf.mxu0
    %v851 = vadd.f32 %v656, %v850
    %v852 = vpop.f32.mrf.mxu0
    %853 = vmatprep.mubr.f32.mxu0 0.0
    %v854 = vand.u32 %v35, 4294901760
    %v855 = vsub.f32 %v35, %v854
    %v856 = vand.u32 %v855, 4294901760
    %857 = vmatmul.mubr.f32.gmra.mxu0 %v856
    %v858 = vpop.f32.mrf.mxu0
    %v859 = vadd.f32 %v663, %v858
    %v860 = vpop.f32.mrf.mxu0
    %861 = vmatprep.mubr.f32.mxu0 0.0
    %v862 = vand.u32 %v36, 4294901760
    %v863 = vsub.f32 %v36, %v862
    %v864 = vand.u32 %v863, 4294901760
    %865 = vmatmul.mubr.f32.gmra.mxu0 %v864
    %v866 = vpop.f32.mrf.mxu0
    %v867 = vadd.f32 %v670, %v866
    %v868 = vpop.f32.mrf.mxu0
    %869 = vmatprep.mubr.f32.mxu0 0.0
    %v870 = vand.u32 %v37, 4294901760
    %v871 = vsub.f32 %v37, %v870
    %v872 = vand.u32 %v871, 4294901760
    %873 = vmatmul.mubr.f32.gmra.mxu0 %v872
    %v874 = vpop.f32.mrf.mxu0
    %v875 = vadd.f32 %v677, %v874
    %v876 = vpop.f32.mrf.mxu0
    %877 = vmatprep.mubr.f32.mxu0 0.0
    %v878 = vand.u32 %v38, 4294901760
    %v879 = vsub.f32 %v38, %v878
    %v880 = vand.u32 %v879, 4294901760
    %881 = vmatmul.mubr.f32.gmra.mxu0 %v880
    %v882 = vpop.f32.mrf.mxu0
    %v883 = vadd.f32 %v684, %v882
    %v884 = vpop.f32.mrf.mxu0
    %885 = vmatprep.mubr.f32.mxu0 0.0
    %v886 = vand.u32 %v39, 4294901760
    %v887 = vsub.f32 %v39, %v886
    %v888 = vand.u32 %v887, 4294901760
    %889 = vmatmul.mubr.f32.gmra.mxu0 %v888
    %v890 = vpop.f32.mrf.mxu0
    %v891 = vadd.f32 %v691, %v890
    %v892 = vpop.f32.mrf.mxu0
    %893 = vmatprep.mubr.f32.mxu0 0.0
    %v894 = vand.u32 %v40, 4294901760
    %v895 = vsub.f32 %v40, %v894
    %v896 = vand.u32 %v895, 4294901760
    %897 = vmatmul.mubr.f32.gmra.mxu0 %v896
    %v898 = vpop.f32.mrf.mxu0
    %v899 = vadd.f32 %v698, %v898
    %v900 = vpop.f32.mrf.mxu0
    %901 = vmatprep.mubr.f32.mxu0 0.0
    %v902 = vand.u32 %v41, 4294901760
    %v903 = vsub.f32 %v41, %v902
    %v904 = vand.u32 %v903, 4294901760
    %905 = vmatmul.mubr.f32.gmra.mxu0 %v904
    %v906 = vpop.f32.mrf.mxu0
    %v907 = vadd.f32 %v705, %v906
    %v908 = vpop.f32.mrf.mxu0
    %909 = vmatprep.mubr.f32.mxu0 0.0
    %v910 = vand.u32 %v42, 4294901760
    %v911 = vsub.f32 %v42, %v910
    %v912 = vand.u32 %v911, 4294901760
    %913 = vmatmul.mubr.f32.gmra.mxu0 %v912
    %v914 = vpop.f32.mrf.mxu0
    %v915 = vadd.f32 %v712, %v914
    %v916 = vpop.f32.mrf.mxu0
    %917 = vmatprep.mubr.f32.mxu0 0.0
    %v918 = vand.u32 %v43, 4294901760
    %v919 = vsub.f32 %v43, %v918
    %v920 = vand.u32 %v919, 4294901760
    %921 = vmatmul.mubr.f32.gmra.mxu0 %v920
    %v922 = vpop.f32.mrf.mxu0
    %v923 = vadd.f32 %v719, %v922
    %v924 = vpop.f32.mrf.mxu0
    %925 = vmatprep.mubr.f32.mxu0 0.0
    %v926 = vand.u32 %v44, 4294901760
    %v927 = vsub.f32 %v44, %v926
    %v928 = vand.u32 %v927, 4294901760
    %929 = vmatmul.mubr.f32.gmra.mxu0 %v928
    %v930 = vpop.f32.mrf.mxu0
    %v931 = vadd.f32 %v726, %v930
    %v932 = vpop.f32.mrf.mxu0
    %933 = vmatprep.mubr.f32.mxu0 0.0
    %v934 = vand.u32 %v45, 4294901760
    %v935 = vsub.f32 %v45, %v934
    %v936 = vand.u32 %v935, 4294901760
    %937 = vmatmul.mubr.f32.gmra.mxu0 %v936
    %v938 = vpop.f32.mrf.mxu0
    %v939 = vadd.f32 %v733, %v938
    %v940 = vpop.f32.mrf.mxu0
    %941 = vmatprep.mubr.f32.mxu0 0.0
    %v942 = vand.u32 %v46, 4294901760
    %v943 = vsub.f32 %v46, %v942
    %v944 = vand.u32 %v943, 4294901760
    %945 = vmatmul.mubr.f32.gmra.mxu0 %v944
    %v946 = vpop.f32.mrf.mxu0
    %v947 = vadd.f32 %v740, %v946
    %v948 = vpop.f32.mrf.mxu0
    %949 = vmatprep.mubr.f32.mxu0 0.0
    %v950 = vand.u32 %v47, 4294901760
    %v951 = vsub.f32 %v47, %v950
    %v952 = vand.u32 %v951, 4294901760
    %953 = vmatmul.mubr.f32.gmra.mxu0 %v952
    %v954 = vpop.f32.mrf.mxu0
    %v955 = vadd.f32 %v747, %v954
    %v956 = vpop.f32.mrf.mxu0
    %957 = vmatprep.mubr.f32.mxu0 0.0
    %v958 = vand.u32 %v48, 4294901760
    %v959 = vsub.f32 %v48, %v958
    %v960 = vand.u32 %v959, 4294901760
    %961 = vmatmul.mubr.f32.gmra.mxu0 %v960
    %v962 = vpop.f32.mrf.mxu0
    %v963 = vadd.f32 %v754, %v962
    %v964 = vpop.f32.mrf.mxu0
    %965 = vdwg.mxu0
    %966 = vmatprep.subr.mxu0 0.0
    %v967 = vand.u32 %v64, 4294901760
    %v968 = vsub.f32 %v64, %v967
    %v969 = vand.u32 %v968, 4294901760
    %970 = vmatpush1.msra.mxu0 %v969
    %971 = vmatprep.subr.mxu0 0.0
    %v972 = vand.u32 %v63, 4294901760
    %v973 = vsub.f32 %v63, %v972
    %v974 = vand.u32 %v973, 4294901760
    %975 = vmatpush1.msra.mxu0 %v974
    %976 = vmatprep.subr.mxu0 0.0
    %v977 = vand.u32 %v62, 4294901760
    %v978 = vsub.f32 %v62, %v977
    %v979 = vand.u32 %v978, 4294901760
    %980 = vmatpush1.msra.mxu0 %v979
    %981 = vmatprep.subr.mxu0 0.0
    %v982 = vand.u32 %v61, 4294901760
    %v983 = vsub.f32 %v61, %v982
    %v984 = vand.u32 %v983, 4294901760
    %985 = vmatpush1.msra.mxu0 %v984
    %986 = vmatprep.subr.mxu0 0.0
    %v987 = vand.u32 %v60, 4294901760
    %v988 = vsub.f32 %v60, %v987
    %v989 = vand.u32 %v988, 4294901760
    %990 = vmatpush1.msra.mxu0 %v989
    %991 = vmatprep.subr.mxu0 0.0
    %v992 = vand.u32 %v59, 4294901760
    %v993 = vsub.f32 %v59, %v992
    %v994 = vand.u32 %v993, 4294901760
    %995 = vmatpush1.msra.mxu0 %v994
    %996 = vmatprep.subr.mxu0 0.0
    %v997 = vand.u32 %v58, 4294901760
    %v998 = vsub.f32 %v58, %v997
    %v999 = vand.u32 %v998, 4294901760
    %1000 = vmatpush1.msra.mxu0 %v999
    %1001 = vmatprep.subr.mxu0 0.0
    %v1002 = vand.u32 %v57, 4294901760
    %v1003 = vsub.f32 %v57, %v1002
    %v1004 = vand.u32 %v1003, 4294901760
    %1005 = vmatpush1.msra.mxu0 %v1004
    %1006 = vmatprep.subr.mxu0 0.0
    %v1007 = vand.u32 %v56, 4294901760
    %v1008 = vsub.f32 %v56, %v1007
    %v1009 = vand.u32 %v1008, 4294901760
    %1010 = vmatpush1.msra.mxu0 %v1009
    %1011 = vmatprep.subr.mxu0 0.0
    %v1012 = vand.u32 %v55, 4294901760
    %v1013 = vsub.f32 %v55, %v1012
    %v1014 = vand.u32 %v1013, 4294901760
    %1015 = vmatpush1.msra.mxu0 %v1014
    %1016 = vmatprep.subr.mxu0 0.0
    %v1017 = vand.u32 %v54, 4294901760
    %v1018 = vsub.f32 %v54, %v1017
    %v1019 = vand.u32 %v1018, 4294901760
    %1020 = vmatpush1.msra.mxu0 %v1019
    %1021 = vmatprep.subr.mxu0 0.0
    %v1022 = vand.u32 %v53, 4294901760
    %v1023 = vsub.f32 %v53, %v1022
    %v1024 = vand.u32 %v1023, 4294901760
    %1025 = vmatpush1.msra.mxu0 %v1024
    %1026 = vmatprep.subr.mxu0 0.0
    %v1027 = vand.u32 %v52, 4294901760
    %v1028 = vsub.f32 %v52, %v1027
    %v1029 = vand.u32 %v1028, 4294901760
    %1030 = vmatpush1.msra.mxu0 %v1029
    %1031 = vmatprep.subr.mxu0 0.0
    %v1032 = vand.u32 %v51, 4294901760
    %v1033 = vsub.f32 %v51, %v1032
    %v1034 = vand.u32 %v1033, 4294901760
    %1035 = vmatpush1.msra.mxu0 %v1034
    %1036 = vmatprep.subr.mxu0 0.0
    %v1037 = vand.u32 %v50, 4294901760
    %v1038 = vsub.f32 %v50, %v1037
    %v1039 = vand.u32 %v1038, 4294901760
    %1040 = vmatpush1.msra.mxu0 %v1039
    %1041 = vmatprep.subr.mxu0 0.0
    %v1042 = vand.u32 %v49, 4294901760
    %v1043 = vsub.f32 %v49, %v1042
    %v1044 = vand.u32 %v1043, 4294901760
    %1045 = vmatpush1.msra.mxu0 %v1044
    %1046 = vmatprep.subr.mxu0 0.0
    %1047 = vmatpush2.msra.mxu0 0.0
    %1048 = vmatprep.subr.mxu0 0.0
    %1049 = vmatpush2.msra.mxu0 0.0
    %1050 = vmatprep.subr.mxu0 0.0
    %1051 = vmatpush2.msra.mxu0 0.0
    %1052 = vmatprep.subr.mxu0 0.0
    %1053 = vmatpush2.msra.mxu0 0.0
    %1054 = vmatprep.subr.mxu0 0.0
    %1055 = vmatpush2.msra.mxu0 0.0
    %1056 = vmatprep.subr.mxu0 0.0
    %1057 = vmatpush2.msra.mxu0 0.0
    %1058 = vmatprep.subr.mxu0 0.0
    %1059 = vmatpush2.msra.mxu0 0.0
    %1060 = vmatprep.subr.mxu0 0.0
    %1061 = vmatpush2.msra.mxu0 0.0
    %1062 = vmatprep.subr.mxu0 0.0
    %1063 = vmatpush2.msra.mxu0 0.0
    %1064 = vmatprep.subr.mxu0 0.0
    %1065 = vmatpush2.msra.mxu0 0.0
    %1066 = vmatprep.subr.mxu0 0.0
    %1067 = vmatpush2.msra.mxu0 0.0
    %1068 = vmatprep.subr.mxu0 0.0
    %1069 = vmatpush2.msra.mxu0 0.0
    %1070 = vmatprep.subr.mxu0 0.0
    %1071 = vmatpush2.msra.mxu0 0.0
    %1072 = vmatprep.subr.mxu0 0.0
    %1073 = vmatpush2.msra.mxu0 0.0
    %1074 = vmatprep.subr.mxu0 0.0
    %1075 = vmatpush2.msra.mxu0 0.0
    %1076 = vmatprep.subr.mxu0 0.0
    %1077 = vmatpush2.msra.mxu0 0.0
    %1078 = vmatprep.mubr.f32.mxu0 0.0
    %v1079 = vand.u32 %v33, 4294901760
    %1080 = vmatmul.mubr.f32.gmra.mxu0 %v1079
    %v1081 = vpop.f32.mrf.mxu0
    %v1082 = vadd.f32 %v843, %v1081
    %v1083 = vpop.f32.mrf.mxu0
    %1084 = vmatprep.mubr.f32.mxu0 0.0
    %v1085 = vand.u32 %v34, 4294901760
    %1086 = vmatmul.mubr.f32.gmra.mxu0 %v1085
    %v1087 = vpop.f32.mrf.mxu0
    %v1088 = vadd.f32 %v851, %v1087
    %v1089 = vpop.f32.mrf.mxu0
    %1090 = vmatprep.mubr.f32.mxu0 0.0
    %v1091 = vand.u32 %v35, 4294901760
    %1092 = vmatmul.mubr.f32.gmra.mxu0 %v1091
    %v1093 = vpop.f32.mrf.mxu0
    %v1094 = vadd.f32 %v859, %v1093
    %v1095 = vpop.f32.mrf.mxu0
    %1096 = vmatprep.mubr.f32.mxu0 0.0
    %v1097 = vand.u32 %v36, 4294901760
    %1098 = vmatmul.mubr.f32.gmra.mxu0 %v1097
    %v1099 = vpop.f32.mrf.mxu0
    %v1100 = vadd.f32 %v867, %v1099
    %v1101 = vpop.f32.mrf.mxu0
    %1102 = vmatprep.mubr.f32.mxu0 0.0
    %v1103 = vand.u32 %v37, 4294901760
    %1104 = vmatmul.mubr.f32.gmra.mxu0 %v1103
    %v1105 = vpop.f32.mrf.mxu0
    %v1106 = vadd.f32 %v875, %v1105
    %v1107 = vpop.f32.mrf.mxu0
    %1108 = vmatprep.mubr.f32.mxu0 0.0
    %v1109 = vand.u32 %v38, 4294901760
    %1110 = vmatmul.mubr.f32.gmra.mxu0 %v1109
    %v1111 = vpop.f32.mrf.mxu0
    %v1112 = vadd.f32 %v883, %v1111
    %v1113 = vpop.f32.mrf.mxu0
    %1114 = vmatprep.mubr.f32.mxu0 0.0
    %v1115 = vand.u32 %v39, 4294901760
    %1116 = vmatmul.mubr.f32.gmra.mxu0 %v1115
    %v1117 = vpop.f32.mrf.mxu0
    %v1118 = vadd.f32 %v891, %v1117
    %v1119 = vpop.f32.mrf.mxu0
    %1120 = vmatprep.mubr.f32.mxu0 0.0
    %v1121 = vand.u32 %v40, 4294901760
    %1122 = vmatmul.mubr.f32.gmra.mxu0 %v1121
    %v1123 = vpop.f32.mrf.mxu0
    %v1124 = vadd.f32 %v899, %v1123
    %v1125 = vpop.f32.mrf.mxu0
    %1126 = vmatprep.mubr.f32.mxu0 0.0
    %v1127 = vand.u32 %v41, 4294901760
    %1128 = vmatmul.mubr.f32.gmra.mxu0 %v1127
    %v1129 = vpop.f32.mrf.mxu0
    %v1130 = vadd.f32 %v907, %v1129
    %v1131 = vpop.f32.mrf.mxu0
    %1132 = vmatprep.mubr.f32.mxu0 0.0
    %v1133 = vand.u32 %v42, 4294901760
    %1134 = vmatmul.mubr.f32.gmra.mxu0 %v1133
    %v1135 = vpop.f32.mrf.mxu0
    %v1136 = vadd.f32 %v915, %v1135
    %v1137 = vpop.f32.mrf.mxu0
    %1138 = vmatprep.mubr.f32.mxu0 0.0
    %v1139 = vand.u32 %v43, 4294901760
    %1140 = vmatmul.mubr.f32.gmra.mxu0 %v1139
    %v1141 = vpop.f32.mrf.mxu0
    %v1142 = vadd.f32 %v923, %v1141
    %v1143 = vpop.f32.mrf.mxu0
    %1144 = vmatprep.mubr.f32.mxu0 0.0
    %v1145 = vand.u32 %v44, 4294901760
    %1146 = vmatmul.mubr.f32.gmra.mxu0 %v1145
    %v1147 = vpop.f32.mrf.mxu0
    %v1148 = vadd.f32 %v931, %v1147
    %v1149 = vpop.f32.mrf.mxu0
    %1150 = vmatprep.mubr.f32.mxu0 0.0
    %v1151 = vand.u32 %v45, 4294901760
    %1152 = vmatmul.mubr.f32.gmra.mxu0 %v1151
    %v1153 = vpop.f32.mrf.mxu0
    %v1154 = vadd.f32 %v939, %v1153
    %v1155 = vpop.f32.mrf.mxu0
    %1156 = vmatprep.mubr.f32.mxu0 0.0
    %v1157 = vand.u32 %v46, 4294901760
    %1158 = vmatmul.mubr.f32.gmra.mxu0 %v1157
    %v1159 = vpop.f32.mrf.mxu0
    %v1160 = vadd.f32 %v947, %v1159
    %v1161 = vpop.f32.mrf.mxu0
    %1162 = vmatprep.mubr.f32.mxu0 0.0
    %v1163 = vand.u32 %v47, 4294901760
    %1164 = vmatmul.mubr.f32.gmra.mxu0 %v1163
    %v1165 = vpop.f32.mrf.mxu0
    %v1166 = vadd.f32 %v955, %v1165
    %v1167 = vpop.f32.mrf.mxu0
    %1168 = vmatprep.mubr.f32.mxu0 0.0
    %v1169 = vand.u32 %v48, 4294901760
    %1170 = vmatmul.mubr.f32.gmra.mxu0 %v1169
    %v1171 = vpop.f32.mrf.mxu0
    %v1172 = vadd.f32 %v963, %v1171
    %v1173 = vpop.f32.mrf.mxu0
    %1174 = vdwg.mxu0
    %1175 = vmatprep.subr.mxu0 0.0
    %v1176 = vand.u32 %v64, 4294901760
    %1177 = vmatpush1.msra.mxu0 %v1176
    %1178 = vmatprep.subr.mxu0 0.0
    %v1179 = vand.u32 %v63, 4294901760
    %1180 = vmatpush1.msra.mxu0 %v1179
    %1181 = vmatprep.subr.mxu0 0.0
    %v1182 = vand.u32 %v62, 4294901760
    %1183 = vmatpush1.msra.mxu0 %v1182
    %1184 = vmatprep.subr.mxu0 0.0
    %v1185 = vand.u32 %v61, 4294901760
    %1186 = vmatpush1.msra.mxu0 %v1185
    %1187 = vmatprep.subr.mxu0 0.0
    %v1188 = vand.u32 %v60, 4294901760
    %1189 = vmatpush1.msra.mxu0 %v1188
    %1190 = vmatprep.subr.mxu0 0.0
    %v1191 = vand.u32 %v59, 4294901760
    %1192 = vmatpush1.msra.mxu0 %v1191
    %1193 = vmatprep.subr.mxu0 0.0
    %v1194 = vand.u32 %v58, 4294901760
    %1195 = vmatpush1.msra.mxu0 %v1194
    %1196 = vmatprep.subr.mxu0 0.0
    %v1197 = vand.u32 %v57, 4294901760
    %1198 = vmatpush1.msra.mxu0 %v1197
    %1199 = vmatprep.subr.mxu0 0.0
    %v1200 = vand.u32 %v56, 4294901760
    %1201 = vmatpush1.msra.mxu0 %v1200
    %1202 = vmatprep.subr.mxu0 0.0
    %v1203 = vand.u32 %v55, 4294901760
    %1204 = vmatpush1.msra.mxu0 %v1203
    %1205 = vmatprep.subr.mxu0 0.0
    %v1206 = vand.u32 %v54, 4294901760
    %1207 = vmatpush1.msra.mxu0 %v1206
    %1208 = vmatprep.subr.mxu0 0.0
    %v1209 = vand.u32 %v53, 4294901760
    %1210 = vmatpush1.msra.mxu0 %v1209
    %1211 = vmatprep.subr.mxu0 0.0
    %v1212 = vand.u32 %v52, 4294901760
    %1213 = vmatpush1.msra.mxu0 %v1212
    %1214 = vmatprep.subr.mxu0 0.0
    %v1215 = vand.u32 %v51, 4294901760
    %1216 = vmatpush1.msra.mxu0 %v1215
    %1217 = vmatprep.subr.mxu0 0.0
    %v1218 = vand.u32 %v50, 4294901760
    %1219 = vmatpush1.msra.mxu0 %v1218
    %1220 = vmatprep.subr.mxu0 0.0
    %v1221 = vand.u32 %v49, 4294901760
    %1222 = vmatpush1.msra.mxu0 %v1221
    %1223 = vmatprep.subr.mxu0 0.0
    %1224 = vmatpush2.msra.mxu0 0.0
    %1225 = vmatprep.subr.mxu0 0.0
    %1226 = vmatpush2.msra.mxu0 0.0
    %1227 = vmatprep.subr.mxu0 0.0
    %1228 = vmatpush2.msra.mxu0 0.0
    %1229 = vmatprep.subr.mxu0 0.0
    %1230 = vmatpush2.msra.mxu0 0.0
    %1231 = vmatprep.subr.mxu0 0.0
    %1232 = vmatpush2.msra.mxu0 0.0
    %1233 = vmatprep.subr.mxu0 0.0
    %1234 = vmatpush2.msra.mxu0 0.0
    %1235 = vmatprep.subr.mxu0 0.0
    %1236 = vmatpush2.msra.mxu0 0.0
    %1237 = vmatprep.subr.mxu0 0.0
    %1238 = vmatpush2.msra.mxu0 0.0
    %1239 = vmatprep.subr.mxu0 0.0
    %1240 = vmatpush2.msra.mxu0 0.0
    %1241 = vmatprep.subr.mxu0 0.0
    %1242 = vmatpush2.msra.mxu0 0.0
    %1243 = vmatprep.subr.mxu0 0.0
    %1244 = vmatpush2.msra.mxu0 0.0
    %1245 = vmatprep.subr.mxu0 0.0
    %1246 = vmatpush2.msra.mxu0 0.0
    %1247 = vmatprep.subr.mxu0 0.0
    %1248 = vmatpush2.msra.mxu0 0.0
    %1249 = vmatprep.subr.mxu0 0.0
    %1250 = vmatpush2.msra.mxu0 0.0
    %1251 = vmatprep.subr.mxu0 0.0
    %1252 = vmatpush2.msra.mxu0 0.0
    %1253 = vmatprep.subr.mxu0 0.0
    %1254 = vmatpush2.msra.mxu0 0.0
    %1255 = vmatprep.mubr.f32.mxu0 0.0
    %v1256 = vand.u32 %v33, 4294901760
    %1257 = vmatmul.mubr.f32.gmra.mxu0 %v1256
    %v1258 = vpop.f32.mrf.mxu0
    %v1259 = vadd.f32 %v1082, %v1258
    %v1260 = vpop.f32.mrf.mxu0
    %1261 = vmatprep.mubr.f32.mxu0 0.0
    %v1262 = vand.u32 %v34, 4294901760
    %1263 = vmatmul.mubr.f32.gmra.mxu0 %v1262
    %v1264 = vpop.f32.mrf.mxu0
    %v1265 = vadd.f32 %v1088, %v1264
    %v1266 = vpop.f32.mrf.mxu0
    %1267 = vmatprep.mubr.f32.mxu0 0.0
    %v1268 = vand.u32 %v35, 4294901760
    %1269 = vmatmul.mubr.f32.gmra.mxu0 %v1268
    %v1270 = vpop.f32.mrf.mxu0
    %v1271 = vadd.f32 %v1094, %v1270
    %v1272 = vpop.f32.mrf.mxu0
    %1273 = vmatprep.mubr.f32.mxu0 0.0
    %v1274 = vand.u32 %v36, 4294901760
    %1275 = vmatmul.mubr.f32.gmra.mxu0 %v1274
    %v1276 = vpop.f32.mrf.mxu0
    %v1277 = vadd.f32 %v1100, %v1276
    %v1278 = vpop.f32.mrf.mxu0
    %1279 = vmatprep.mubr.f32.mxu0 0.0
    %v1280 = vand.u32 %v37, 4294901760
    %1281 = vmatmul.mubr.f32.gmra.mxu0 %v1280
    %v1282 = vpop.f32.mrf.mxu0
    %v1283 = vadd.f32 %v1106, %v1282
    %v1284 = vpop.f32.mrf.mxu0
    %1285 = vmatprep.mubr.f32.mxu0 0.0
    %v1286 = vand.u32 %v38, 4294901760
    %1287 = vmatmul.mubr.f32.gmra.mxu0 %v1286
    %v1288 = vpop.f32.mrf.mxu0
    %v1289 = vadd.f32 %v1112, %v1288
    %v1290 = vpop.f32.mrf.mxu0
    %1291 = vmatprep.mubr.f32.mxu0 0.0
    %v1292 = vand.u32 %v39, 4294901760
    %1293 = vmatmul.mubr.f32.gmra.mxu0 %v1292
    %v1294 = vpop.f32.mrf.mxu0
    %v1295 = vadd.f32 %v1118, %v1294
    %v1296 = vpop.f32.mrf.mxu0
    %1297 = vmatprep.mubr.f32.mxu0 0.0
    %v1298 = vand.u32 %v40, 4294901760
    %1299 = vmatmul.mubr.f32.gmra.mxu0 %v1298
    %v1300 = vpop.f32.mrf.mxu0
    %v1301 = vadd.f32 %v1124, %v1300
    %v1302 = vpop.f32.mrf.mxu0
    %1303 = vmatprep.mubr.f32.mxu0 0.0
    %v1304 = vand.u32 %v41, 4294901760
    %1305 = vmatmul.mubr.f32.gmra.mxu0 %v1304
    %v1306 = vpop.f32.mrf.mxu0
    %v1307 = vadd.f32 %v1130, %v1306
    %v1308 = vpop.f32.mrf.mxu0
    %1309 = vmatprep.mubr.f32.mxu0 0.0
    %v1310 = vand.u32 %v42, 4294901760
    %1311 = vmatmul.mubr.f32.gmra.mxu0 %v1310
    %v1312 = vpop.f32.mrf.mxu0
    %v1313 = vadd.f32 %v1136, %v1312
    %v1314 = vpop.f32.mrf.mxu0
    %1315 = vmatprep.mubr.f32.mxu0 0.0
    %v1316 = vand.u32 %v43, 4294901760
    %1317 = vmatmul.mubr.f32.gmra.mxu0 %v1316
    %v1318 = vpop.f32.mrf.mxu0
    %v1319 = vadd.f32 %v1142, %v1318
    %v1320 = vpop.f32.mrf.mxu0
    %1321 = vmatprep.mubr.f32.mxu0 0.0
    %v1322 = vand.u32 %v44, 4294901760
    %1323 = vmatmul.mubr.f32.gmra.mxu0 %v1322
    %v1324 = vpop.f32.mrf.mxu0
    %v1325 = vadd.f32 %v1148, %v1324
    %v1326 = vpop.f32.mrf.mxu0
    %1327 = vmatprep.mubr.f32.mxu0 0.0
    %v1328 = vand.u32 %v45, 4294901760
    %1329 = vmatmul.mubr.f32.gmra.mxu0 %v1328
    %v1330 = vpop.f32.mrf.mxu0
    %v1331 = vadd.f32 %v1154, %v1330
    %v1332 = vpop.f32.mrf.mxu0
    %1333 = vmatprep.mubr.f32.mxu0 0.0
    %v1334 = vand.u32 %v46, 4294901760
    %1335 = vmatmul.mubr.f32.gmra.mxu0 %v1334
    %v1336 = vpop.f32.mrf.mxu0
    %v1337 = vadd.f32 %v1160, %v1336
    %v1338 = vpop.f32.mrf.mxu0
    %1339 = vmatprep.mubr.f32.mxu0 0.0
    %v1340 = vand.u32 %v47, 4294901760
    %1341 = vmatmul.mubr.f32.gmra.mxu0 %v1340
    %v1342 = vpop.f32.mrf.mxu0
    %v1343 = vadd.f32 %v1166, %v1342
    %v1344 = vpop.f32.mrf.mxu0
    %1345 = vmatprep.mubr.f32.mxu0 0.0
    %v1346 = vand.u32 %v48, 4294901760
    %1347 = vmatmul.mubr.f32.gmra.mxu0 %v1346
    %v1348 = vpop.f32.mrf.mxu0
    %v1349 = vadd.f32 %v1172, %v1348
    %v1350 = vpop.f32.mrf.mxu0
    %1351 = vdwg.mxu0
    %v1352 = vmul.f32 %v1259, 0.03125
    %v1353 = vmul.f32 %v1265, 0.03125
    %v1354 = vmul.f32 %v1271, 0.03125
    %v1355 = vmul.f32 %v1277, 0.03125
    %v1356 = vmul.f32 %v1283, 0.03125
    %v1357 = vmul.f32 %v1289, 0.03125
    %v1358 = vmul.f32 %v1295, 0.03125
    %v1359 = vmul.f32 %v1301, 0.03125
    %v1360 = vmul.f32 %v1307, 0.03125
    %v1361 = vmul.f32 %v1313, 0.03125
    %v1362 = vmul.f32 %v1319, 0.03125
    %v1363 = vmul.f32 %v1325, 0.03125
    %v1364 = vmul.f32 %v1331, 0.03125
    %v1365 = vmul.f32 %v1337, 0.03125
    %v1366 = vmul.f32 %v1343, 0.03125
    %v1367 = vmul.f32 %v1349, 0.03125
    %vm1368 = vcmask 31744
    %v1370 = vsel %vm1368, %v1352, 0
    %v1373 = vsel %vm1368, %v1353, 0
    %v1376 = vsel %vm1368, %v1354, 0
    %v1379 = vsel %vm1368, %v1355, 0
    %v1382 = vsel %vm1368, %v1356, 0
    %v1385 = vsel %vm1368, %v1357, 0
    %v1388 = vsel %vm1368, %v1358, 0
    %v1391 = vsel %vm1368, %v1359, 0
    %v1394 = vsel %vm1368, %v1360, 0
    %v1397 = vsel %vm1368, %v1361, 0
    %v1400 = vsel %vm1368, %v1362, 0
    %v1403 = vsel %vm1368, %v1363, 0
    %v1406 = vsel %vm1368, %v1364, 0
    %v1409 = vsel %vm1368, %v1365, 0
    %v1412 = vsel %vm1368, %v1366, 0
    %v1415 = vsel %vm1368, %v1367, 0
    %vm1417 = vcmask 1043456
    %v1419 = vsel %vm1417, %v65, 0
    %1421 = vmatprep.subr.mxu0 0.0
    %1422 = vmatpush1.msra.mxu0 0.0
    %1423 = vmatprep.subr.mxu0 0.0
    %1424 = vmatpush1.msra.mxu0 0.0
    %1425 = vmatprep.subr.mxu0 0.0
    %1426 = vmatpush1.msra.mxu0 0.0
    %1427 = vmatprep.subr.mxu0 0.0
    %1428 = vmatpush1.msra.mxu0 0.0
    %1429 = vmatprep.subr.mxu0 0.0
    %1430 = vmatpush1.msra.mxu0 0.0
    %1431 = vmatprep.subr.mxu0 0.0
    %1432 = vmatpush1.msra.mxu0 0.0
    %1433 = vmatprep.subr.mxu0 0.0
    %1434 = vmatpush1.msra.mxu0 0.0
    %1435 = vmatprep.subr.mxu0 0.0
    %1436 = vmatpush1.msra.mxu0 0.0
    %1437 = vmatprep.subr.mxu0 0.0
    %1438 = vmatpush1.msra.mxu0 0.0
    %1439 = vmatprep.subr.mxu0 0.0
    %1440 = vmatpush1.msra.mxu0 0.0
    %1441 = vmatprep.subr.mxu0 0.0
    %1442 = vmatpush1.msra.mxu0 0.0
    %1443 = vmatprep.subr.mxu0 0.0
    %1444 = vmatpush1.msra.mxu0 0.0
    %1445 = vmatprep.subr.mxu0 0.0
    %1446 = vmatpush1.msra.mxu0 0.0
    %1447 = vmatprep.subr.mxu0 0.0
    %1448 = vmatpush1.msra.mxu0 0.0
    %1449 = vmatprep.subr.mxu0 0.0
    %1450 = vmatpush1.msra.mxu0 0.0
    %1451 = vmatprep.subr.mxu0 0.0
    %v1452 = vand.u32 %v1419, 4294901760
    %1453 = vmatpush1.msra.mxu0 %v1452
    %1454 = vmatprep.subr.mxu0 0.0
    %1455 = vmatpush2.msra.mxu0 0.0
    %1456 = vmatprep.subr.mxu0 0.0
    %1457 = vmatpush2.msra.mxu0 0.0
    %1458 = vmatprep.subr.mxu0 0.0
    %1459 = vmatpush2.msra.mxu0 0.0
    %1460 = vmatprep.subr.mxu0 0.0
    %1461 = vmatpush2.msra.mxu0 0.0
    %1462 = vmatprep.subr.mxu0 0.0
    %1463 = vmatpush2.msra.mxu0 0.0
    %1464 = vmatprep.subr.mxu0 0.0
    %1465 = vmatpush2.msra.mxu0 0.0
    %1466 = vmatprep.subr.mxu0 0.0
    %1467 = vmatpush2.msra.mxu0 0.0
    %1468 = vmatprep.subr.mxu0 0.0
    %1469 = vmatpush2.msra.mxu0 0.0
    %1470 = vmatprep.subr.mxu0 0.0
    %1471 = vmatpush2.msra.mxu0 0.0
    %1472 = vmatprep.subr.mxu0 0.0
    %1473 = vmatpush2.msra.mxu0 0.0
    %1474 = vmatprep.subr.mxu0 0.0
    %1475 = vmatpush2.msra.mxu0 0.0
    %1476 = vmatprep.subr.mxu0 0.0
    %1477 = vmatpush2.msra.mxu0 0.0
    %1478 = vmatprep.subr.mxu0 0.0
    %1479 = vmatpush2.msra.mxu0 0.0
    %1480 = vmatprep.subr.mxu0 0.0
    %1481 = vmatpush2.msra.mxu0 0.0
    %1482 = vmatprep.subr.mxu0 0.0
    %1483 = vmatpush2.msra.mxu0 0.0
    %1484 = vmatprep.subr.mxu0 0.0
    %1485 = vmatpush2.msra.mxu0 0.0
    %1486 = vmatprep.mubr.f32.mxu0 0.0
    %v1487 = vand.u32 %v1370, 4294901760
    %v1488 = vsub.f32 %v1370, %v1487
    %v1489 = vand.u32 %v1488, 4294901760
    %v1490 = vsub.f32 %v1488, %v1489
    %v1491 = vand.u32 %v1490, 4294901760
    %1492 = vmatmul.mubr.f32.gmra.mxu0 %v1491
    %v1493 = vpop.f32.mrf.mxu0
    %v1494 = vadd.f32 0.0, %v1493
    %v1495 = vpop.f32.mrf.mxu0
    %1496 = vmatprep.mubr.f32.mxu0 0.0
    %v1497 = vand.u32 %v1373, 4294901760
    %v1498 = vsub.f32 %v1373, %v1497
    %v1499 = vand.u32 %v1498, 4294901760
    %v1500 = vsub.f32 %v1498, %v1499
    %v1501 = vand.u32 %v1500, 4294901760
    %1502 = vmatmul.mubr.f32.gmra.mxu0 %v1501
    %v1503 = vpop.f32.mrf.mxu0
    %v1504 = vadd.f32 0.0, %v1503
    %v1505 = vpop.f32.mrf.mxu0
    %1506 = vmatprep.mubr.f32.mxu0 0.0
    %v1507 = vand.u32 %v1376, 4294901760
    %v1508 = vsub.f32 %v1376, %v1507
    %v1509 = vand.u32 %v1508, 4294901760
    %v1510 = vsub.f32 %v1508, %v1509
    %v1511 = vand.u32 %v1510, 4294901760
    %1512 = vmatmul.mubr.f32.gmra.mxu0 %v1511
    %v1513 = vpop.f32.mrf.mxu0
    %v1514 = vadd.f32 0.0, %v1513
    %v1515 = vpop.f32.mrf.mxu0
    %1516 = vmatprep.mubr.f32.mxu0 0.0
    %v1517 = vand.u32 %v1379, 4294901760
    %v1518 = vsub.f32 %v1379, %v1517
    %v1519 = vand.u32 %v1518, 4294901760
    %v1520 = vsub.f32 %v1518, %v1519
    %v1521 = vand.u32 %v1520, 4294901760
    %1522 = vmatmul.mubr.f32.gmra.mxu0 %v1521
    %v1523 = vpop.f32.mrf.mxu0
    %v1524 = vadd.f32 0.0, %v1523
    %v1525 = vpop.f32.mrf.mxu0
    %1526 = vmatprep.mubr.f32.mxu0 0.0
    %v1527 = vand.u32 %v1382, 4294901760
    %v1528 = vsub.f32 %v1382, %v1527
    %v1529 = vand.u32 %v1528, 4294901760
    %v1530 = vsub.f32 %v1528, %v1529
    %v1531 = vand.u32 %v1530, 4294901760
    %1532 = vmatmul.mubr.f32.gmra.mxu0 %v1531
    %v1533 = vpop.f32.mrf.mxu0
    %v1534 = vadd.f32 0.0, %v1533
    %v1535 = vpop.f32.mrf.mxu0
    %1536 = vmatprep.mubr.f32.mxu0 0.0
    %v1537 = vand.u32 %v1385, 4294901760
    %v1538 = vsub.f32 %v1385, %v1537
    %v1539 = vand.u32 %v1538, 4294901760
    %v1540 = vsub.f32 %v1538, %v1539
    %v1541 = vand.u32 %v1540, 4294901760
    %1542 = vmatmul.mubr.f32.gmra.mxu0 %v1541
    %v1543 = vpop.f32.mrf.mxu0
    %v1544 = vadd.f32 0.0, %v1543
    %v1545 = vpop.f32.mrf.mxu0
    %1546 = vmatprep.mubr.f32.mxu0 0.0
    %v1547 = vand.u32 %v1388, 4294901760
    %v1548 = vsub.f32 %v1388, %v1547
    %v1549 = vand.u32 %v1548, 4294901760
    %v1550 = vsub.f32 %v1548, %v1549
    %v1551 = vand.u32 %v1550, 4294901760
    %1552 = vmatmul.mubr.f32.gmra.mxu0 %v1551
    %v1553 = vpop.f32.mrf.mxu0
    %v1554 = vadd.f32 0.0, %v1553
    %v1555 = vpop.f32.mrf.mxu0
    %1556 = vmatprep.mubr.f32.mxu0 0.0
    %v1557 = vand.u32 %v1391, 4294901760
    %v1558 = vsub.f32 %v1391, %v1557
    %v1559 = vand.u32 %v1558, 4294901760
    %v1560 = vsub.f32 %v1558, %v1559
    %v1561 = vand.u32 %v1560, 4294901760
    %1562 = vmatmul.mubr.f32.gmra.mxu0 %v1561
    %v1563 = vpop.f32.mrf.mxu0
    %v1564 = vadd.f32 0.0, %v1563
    %v1565 = vpop.f32.mrf.mxu0
    %1566 = vmatprep.mubr.f32.mxu0 0.0
    %v1567 = vand.u32 %v1394, 4294901760
    %v1568 = vsub.f32 %v1394, %v1567
    %v1569 = vand.u32 %v1568, 4294901760
    %v1570 = vsub.f32 %v1568, %v1569
    %v1571 = vand.u32 %v1570, 4294901760
    %1572 = vmatmul.mubr.f32.gmra.mxu0 %v1571
    %v1573 = vpop.f32.mrf.mxu0
    %v1574 = vadd.f32 0.0, %v1573
    %v1575 = vpop.f32.mrf.mxu0
    %1576 = vmatprep.mubr.f32.mxu0 0.0
    %v1577 = vand.u32 %v1397, 4294901760
    %v1578 = vsub.f32 %v1397, %v1577
    %v1579 = vand.u32 %v1578, 4294901760
    %v1580 = vsub.f32 %v1578, %v1579
    %v1581 = vand.u32 %v1580, 4294901760
    %1582 = vmatmul.mubr.f32.gmra.mxu0 %v1581
    %v1583 = vpop.f32.mrf.mxu0
    %v1584 = vadd.f32 0.0, %v1583
    %v1585 = vpop.f32.mrf.mxu0
    %1586 = vmatprep.mubr.f32.mxu0 0.0
    %v1587 = vand.u32 %v1400, 4294901760
    %v1588 = vsub.f32 %v1400, %v1587
    %v1589 = vand.u32 %v1588, 4294901760
    %v1590 = vsub.f32 %v1588, %v1589
    %v1591 = vand.u32 %v1590, 4294901760
    %1592 = vmatmul.mubr.f32.gmra.mxu0 %v1591
    %v1593 = vpop.f32.mrf.mxu0
    %v1594 = vadd.f32 0.0, %v1593
    %v1595 = vpop.f32.mrf.mxu0
    %1596 = vmatprep.mubr.f32.mxu0 0.0
    %v1597 = vand.u32 %v1403, 4294901760
    %v1598 = vsub.f32 %v1403, %v1597
    %v1599 = vand.u32 %v1598, 4294901760
    %v1600 = vsub.f32 %v1598, %v1599
    %v1601 = vand.u32 %v1600, 4294901760
    %1602 = vmatmul.mubr.f32.gmra.mxu0 %v1601
    %v1603 = vpop.f32.mrf.mxu0
    %v1604 = vadd.f32 0.0, %v1603
    %v1605 = vpop.f32.mrf.mxu0
    %1606 = vmatprep.mubr.f32.mxu0 0.0
    %v1607 = vand.u32 %v1406, 4294901760
    %v1608 = vsub.f32 %v1406, %v1607
    %v1609 = vand.u32 %v1608, 4294901760
    %v1610 = vsub.f32 %v1608, %v1609
    %v1611 = vand.u32 %v1610, 4294901760
    %1612 = vmatmul.mubr.f32.gmra.mxu0 %v1611
    %v1613 = vpop.f32.mrf.mxu0
    %v1614 = vadd.f32 0.0, %v1613
    %v1615 = vpop.f32.mrf.mxu0
    %1616 = vmatprep.mubr.f32.mxu0 0.0
    %v1617 = vand.u32 %v1409, 4294901760
    %v1618 = vsub.f32 %v1409, %v1617
    %v1619 = vand.u32 %v1618, 4294901760
    %v1620 = vsub.f32 %v1618, %v1619
    %v1621 = vand.u32 %v1620, 4294901760
    %1622 = vmatmul.mubr.f32.gmra.mxu0 %v1621
    %v1623 = vpop.f32.mrf.mxu0
    %v1624 = vadd.f32 0.0, %v1623
    %v1625 = vpop.f32.mrf.mxu0
    %1626 = vmatprep.mubr.f32.mxu0 0.0
    %v1627 = vand.u32 %v1412, 4294901760
    %v1628 = vsub.f32 %v1412, %v1627
    %v1629 = vand.u32 %v1628, 4294901760
    %v1630 = vsub.f32 %v1628, %v1629
    %v1631 = vand.u32 %v1630, 4294901760
    %1632 = vmatmul.mubr.f32.gmra.mxu0 %v1631
    %v1633 = vpop.f32.mrf.mxu0
    %v1634 = vadd.f32 0.0, %v1633
    %v1635 = vpop.f32.mrf.mxu0
    %1636 = vmatprep.mubr.f32.mxu0 0.0
    %v1637 = vand.u32 %v1415, 4294901760
    %v1638 = vsub.f32 %v1415, %v1637
    %v1639 = vand.u32 %v1638, 4294901760
    %v1640 = vsub.f32 %v1638, %v1639
    %v1641 = vand.u32 %v1640, 4294901760
    %1642 = vmatmul.mubr.f32.gmra.mxu0 %v1641
    %v1643 = vpop.f32.mrf.mxu0
    %v1644 = vadd.f32 0.0, %v1643
    %v1645 = vpop.f32.mrf.mxu0
    %1646 = vdwg.mxu0
    %1647 = vmatprep.subr.mxu0 0.0
    %1648 = vmatpush1.msra.mxu0 0.0
    %1649 = vmatprep.subr.mxu0 0.0
    %1650 = vmatpush1.msra.mxu0 0.0
    %1651 = vmatprep.subr.mxu0 0.0
    %1652 = vmatpush1.msra.mxu0 0.0
    %1653 = vmatprep.subr.mxu0 0.0
    %1654 = vmatpush1.msra.mxu0 0.0
    %1655 = vmatprep.subr.mxu0 0.0
    %1656 = vmatpush1.msra.mxu0 0.0
    %1657 = vmatprep.subr.mxu0 0.0
    %1658 = vmatpush1.msra.mxu0 0.0
    %1659 = vmatprep.subr.mxu0 0.0
    %1660 = vmatpush1.msra.mxu0 0.0
    %1661 = vmatprep.subr.mxu0 0.0
    %1662 = vmatpush1.msra.mxu0 0.0
    %1663 = vmatprep.subr.mxu0 0.0
    %1664 = vmatpush1.msra.mxu0 0.0
    %1665 = vmatprep.subr.mxu0 0.0
    %1666 = vmatpush1.msra.mxu0 0.0
    %1667 = vmatprep.subr.mxu0 0.0
    %1668 = vmatpush1.msra.mxu0 0.0
    %1669 = vmatprep.subr.mxu0 0.0
    %1670 = vmatpush1.msra.mxu0 0.0
    %1671 = vmatprep.subr.mxu0 0.0
    %1672 = vmatpush1.msra.mxu0 0.0
    %1673 = vmatprep.subr.mxu0 0.0
    %1674 = vmatpush1.msra.mxu0 0.0
    %1675 = vmatprep.subr.mxu0 0.0
    %1676 = vmatpush1.msra.mxu0 0.0
    %1677 = vmatprep.subr.mxu0 0.0
    %v1678 = vand.u32 %v1419, 4294901760
    %v1679 = vsub.f32 %v1419, %v1678
    %v1680 = vand.u32 %v1679, 4294901760
    %v1681 = vsub.f32 %v1679, %v1680
    %v1682 = vand.u32 %v1681, 4294901760
    %1683 = vmatpush1.msra.mxu0 %v1682
    %1684 = vmatprep.subr.mxu0 0.0
    %1685 = vmatpush2.msra.mxu0 0.0
    %1686 = vmatprep.subr.mxu0 0.0
    %1687 = vmatpush2.msra.mxu0 0.0
    %1688 = vmatprep.subr.mxu0 0.0
    %1689 = vmatpush2.msra.mxu0 0.0
    %1690 = vmatprep.subr.mxu0 0.0
    %1691 = vmatpush2.msra.mxu0 0.0
    %1692 = vmatprep.subr.mxu0 0.0
    %1693 = vmatpush2.msra.mxu0 0.0
    %1694 = vmatprep.subr.mxu0 0.0
    %1695 = vmatpush2.msra.mxu0 0.0
    %1696 = vmatprep.subr.mxu0 0.0
    %1697 = vmatpush2.msra.mxu0 0.0
    %1698 = vmatprep.subr.mxu0 0.0
    %1699 = vmatpush2.msra.mxu0 0.0
    %1700 = vmatprep.subr.mxu0 0.0
    %1701 = vmatpush2.msra.mxu0 0.0
    %1702 = vmatprep.subr.mxu0 0.0
    %1703 = vmatpush2.msra.mxu0 0.0
    %1704 = vmatprep.subr.mxu0 0.0
    %1705 = vmatpush2.msra.mxu0 0.0
    %1706 = vmatprep.subr.mxu0 0.0
    %1707 = vmatpush2.msra.mxu0 0.0
    %1708 = vmatprep.subr.mxu0 0.0
    %1709 = vmatpush2.msra.mxu0 0.0
    %1710 = vmatprep.subr.mxu0 0.0
    %1711 = vmatpush2.msra.mxu0 0.0
    %1712 = vmatprep.subr.mxu0 0.0
    %1713 = vmatpush2.msra.mxu0 0.0
    %1714 = vmatprep.subr.mxu0 0.0
    %1715 = vmatpush2.msra.mxu0 0.0
    %1716 = vmatprep.mubr.f32.mxu0 0.0
    %v1717 = vand.u32 %v1370, 4294901760
    %1718 = vmatmul.mubr.f32.gmra.mxu0 %v1717
    %v1719 = vpop.f32.mrf.mxu0
    %v1720 = vadd.f32 %v1494, %v1719
    %v1721 = vpop.f32.mrf.mxu0
    %1722 = vmatprep.mubr.f32.mxu0 0.0
    %v1723 = vand.u32 %v1373, 4294901760
    %1724 = vmatmul.mubr.f32.gmra.mxu0 %v1723
    %v1725 = vpop.f32.mrf.mxu0
    %v1726 = vadd.f32 %v1504, %v1725
    %v1727 = vpop.f32.mrf.mxu0
    %1728 = vmatprep.mubr.f32.mxu0 0.0
    %v1729 = vand.u32 %v1376, 4294901760
    %1730 = vmatmul.mubr.f32.gmra.mxu0 %v1729
    %v1731 = vpop.f32.mrf.mxu0
    %v1732 = vadd.f32 %v1514, %v1731
    %v1733 = vpop.f32.mrf.mxu0
    %1734 = vmatprep.mubr.f32.mxu0 0.0
    %v1735 = vand.u32 %v1379, 4294901760
    %1736 = vmatmul.mubr.f32.gmra.mxu0 %v1735
    %v1737 = vpop.f32.mrf.mxu0
    %v1738 = vadd.f32 %v1524, %v1737
    %v1739 = vpop.f32.mrf.mxu0
    %1740 = vmatprep.mubr.f32.mxu0 0.0
    %v1741 = vand.u32 %v1382, 4294901760
    %1742 = vmatmul.mubr.f32.gmra.mxu0 %v1741
    %v1743 = vpop.f32.mrf.mxu0
    %v1744 = vadd.f32 %v1534, %v1743
    %v1745 = vpop.f32.mrf.mxu0
    %1746 = vmatprep.mubr.f32.mxu0 0.0
    %v1747 = vand.u32 %v1385, 4294901760
    %1748 = vmatmul.mubr.f32.gmra.mxu0 %v1747
    %v1749 = vpop.f32.mrf.mxu0
    %v1750 = vadd.f32 %v1544, %v1749
    %v1751 = vpop.f32.mrf.mxu0
    %1752 = vmatprep.mubr.f32.mxu0 0.0
    %v1753 = vand.u32 %v1388, 4294901760
    %1754 = vmatmul.mubr.f32.gmra.mxu0 %v1753
    %v1755 = vpop.f32.mrf.mxu0
    %v1756 = vadd.f32 %v1554, %v1755
    %v1757 = vpop.f32.mrf.mxu0
    %1758 = vmatprep.mubr.f32.mxu0 0.0
    %v1759 = vand.u32 %v1391, 4294901760
    %1760 = vmatmul.mubr.f32.gmra.mxu0 %v1759
    %v1761 = vpop.f32.mrf.mxu0
    %v1762 = vadd.f32 %v1564, %v1761
    %v1763 = vpop.f32.mrf.mxu0
    %1764 = vmatprep.mubr.f32.mxu0 0.0
    %v1765 = vand.u32 %v1394, 4294901760
    %1766 = vmatmul.mubr.f32.gmra.mxu0 %v1765
    %v1767 = vpop.f32.mrf.mxu0
    %v1768 = vadd.f32 %v1574, %v1767
    %v1769 = vpop.f32.mrf.mxu0
    %1770 = vmatprep.mubr.f32.mxu0 0.0
    %v1771 = vand.u32 %v1397, 4294901760
    %1772 = vmatmul.mubr.f32.gmra.mxu0 %v1771
    %v1773 = vpop.f32.mrf.mxu0
    %v1774 = vadd.f32 %v1584, %v1773
    %v1775 = vpop.f32.mrf.mxu0
    %1776 = vmatprep.mubr.f32.mxu0 0.0
    %v1777 = vand.u32 %v1400, 4294901760
    %1778 = vmatmul.mubr.f32.gmra.mxu0 %v1777
    %v1779 = vpop.f32.mrf.mxu0
    %v1780 = vadd.f32 %v1594, %v1779
    %v1781 = vpop.f32.mrf.mxu0
    %1782 = vmatprep.mubr.f32.mxu0 0.0
    %v1783 = vand.u32 %v1403, 4294901760
    %1784 = vmatmul.mubr.f32.gmra.mxu0 %v1783
    %v1785 = vpop.f32.mrf.mxu0
    %v1786 = vadd.f32 %v1604, %v1785
    %v1787 = vpop.f32.mrf.mxu0
    %1788 = vmatprep.mubr.f32.mxu0 0.0
    %v1789 = vand.u32 %v1406, 4294901760
    %1790 = vmatmul.mubr.f32.gmra.mxu0 %v1789
    %v1791 = vpop.f32.mrf.mxu0
    %v1792 = vadd.f32 %v1614, %v1791
    %v1793 = vpop.f32.mrf.mxu0
    %1794 = vmatprep.mubr.f32.mxu0 0.0
    %v1795 = vand.u32 %v1409, 4294901760
    %1796 = vmatmul.mubr.f32.gmra.mxu0 %v1795
    %v1797 = vpop.f32.mrf.mxu0
    %v1798 = vadd.f32 %v1624, %v1797
    %v1799 = vpop.f32.mrf.mxu0
    %1800 = vmatprep.mubr.f32.mxu0 0.0
    %v1801 = vand.u32 %v1412, 4294901760
    %1802 = vmatmul.mubr.f32.gmra.mxu0 %v1801
    %v1803 = vpop.f32.mrf.mxu0
    %v1804 = vadd.f32 %v1634, %v1803
    %v1805 = vpop.f32.mrf.mxu0
    %1806 = vmatprep.mubr.f32.mxu0 0.0
    %v1807 = vand.u32 %v1415, 4294901760
    %1808 = vmatmul.mubr.f32.gmra.mxu0 %v1807
    %v1809 = vpop.f32.mrf.mxu0
    %v1810 = vadd.f32 %v1644, %v1809
    %v1811 = vpop.f32.mrf.mxu0
    %1812 = vdwg.mxu0
    %1813 = vmatprep.subr.mxu0 0.0
    %1814 = vmatpush1.msra.mxu0 0.0
    %1815 = vmatprep.subr.mxu0 0.0
    %1816 = vmatpush1.msra.mxu0 0.0
    %1817 = vmatprep.subr.mxu0 0.0
    %1818 = vmatpush1.msra.mxu0 0.0
    %1819 = vmatprep.subr.mxu0 0.0
    %1820 = vmatpush1.msra.mxu0 0.0
    %1821 = vmatprep.subr.mxu0 0.0
    %1822 = vmatpush1.msra.mxu0 0.0
    %1823 = vmatprep.subr.mxu0 0.0
    %1824 = vmatpush1.msra.mxu0 0.0
    %1825 = vmatprep.subr.mxu0 0.0
    %1826 = vmatpush1.msra.mxu0 0.0
    %1827 = vmatprep.subr.mxu0 0.0
    %1828 = vmatpush1.msra.mxu0 0.0
    %1829 = vmatprep.subr.mxu0 0.0
    %1830 = vmatpush1.msra.mxu0 0.0
    %1831 = vmatprep.subr.mxu0 0.0
    %1832 = vmatpush1.msra.mxu0 0.0
    %1833 = vmatprep.subr.mxu0 0.0
    %1834 = vmatpush1.msra.mxu0 0.0
    %1835 = vmatprep.subr.mxu0 0.0
    %1836 = vmatpush1.msra.mxu0 0.0
    %1837 = vmatprep.subr.mxu0 0.0
    %1838 = vmatpush1.msra.mxu0 0.0
    %1839 = vmatprep.subr.mxu0 0.0
    %1840 = vmatpush1.msra.mxu0 0.0
    %1841 = vmatprep.subr.mxu0 0.0
    %1842 = vmatpush1.msra.mxu0 0.0
    %1843 = vmatprep.subr.mxu0 0.0
    %v1844 = vand.u32 %v1419, 4294901760
    %v1845 = vsub.f32 %v1419, %v1844
    %1846 = vmatpush1.msra.mxu0 %v1845
    %1847 = vmatprep.subr.mxu0 0.0
    %1848 = vmatpush2.msra.mxu0 0.0
    %1849 = vmatprep.subr.mxu0 0.0
    %1850 = vmatpush2.msra.mxu0 0.0
    %1851 = vmatprep.subr.mxu0 0.0
    %1852 = vmatpush2.msra.mxu0 0.0
    %1853 = vmatprep.subr.mxu0 0.0
    %1854 = vmatpush2.msra.mxu0 0.0
    %1855 = vmatprep.subr.mxu0 0.0
    %1856 = vmatpush2.msra.mxu0 0.0
    %1857 = vmatprep.subr.mxu0 0.0
    %1858 = vmatpush2.msra.mxu0 0.0
    %1859 = vmatprep.subr.mxu0 0.0
    %1860 = vmatpush2.msra.mxu0 0.0
    %1861 = vmatprep.subr.mxu0 0.0
    %1862 = vmatpush2.msra.mxu0 0.0
    %1863 = vmatprep.subr.mxu0 0.0
    %1864 = vmatpush2.msra.mxu0 0.0
    %1865 = vmatprep.subr.mxu0 0.0
    %1866 = vmatpush2.msra.mxu0 0.0
    %1867 = vmatprep.subr.mxu0 0.0
    %1868 = vmatpush2.msra.mxu0 0.0
    %1869 = vmatprep.subr.mxu0 0.0
    %1870 = vmatpush2.msra.mxu0 0.0
    %1871 = vmatprep.subr.mxu0 0.0
    %1872 = vmatpush2.msra.mxu0 0.0
    %1873 = vmatprep.subr.mxu0 0.0
    %1874 = vmatpush2.msra.mxu0 0.0
    %1875 = vmatprep.subr.mxu0 0.0
    %1876 = vmatpush2.msra.mxu0 0.0
    %1877 = vmatprep.subr.mxu0 0.0
    %1878 = vmatpush2.msra.mxu0 0.0
    %1879 = vmatprep.mubr.f32.mxu0 0.0
    %v1880 = vand.u32 %v1370, 4294901760
    %v1881 = vsub.f32 %v1370, %v1880
    %1882 = vmatmul.mubr.f32.gmra.mxu0 %v1881
    %v1883 = vpop.f32.mrf.mxu0
    %v1884 = vadd.f32 %v1720, %v1883
    %v1885 = vpop.f32.mrf.mxu0
    %1886 = vmatprep.mubr.f32.mxu0 0.0
    %v1887 = vand.u32 %v1373, 4294901760
    %v1888 = vsub.f32 %v1373, %v1887
    %1889 = vmatmul.mubr.f32.gmra.mxu0 %v1888
    %v1890 = vpop.f32.mrf.mxu0
    %v1891 = vadd.f32 %v1726, %v1890
    %v1892 = vpop.f32.mrf.mxu0
    %1893 = vmatprep.mubr.f32.mxu0 0.0
    %v1894 = vand.u32 %v1376, 4294901760
    %v1895 = vsub.f32 %v1376, %v1894
    %1896 = vmatmul.mubr.f32.gmra.mxu0 %v1895
    %v1897 = vpop.f32.mrf.mxu0
    %v1898 = vadd.f32 %v1732, %v1897
    %v1899 = vpop.f32.mrf.mxu0
    %1900 = vmatprep.mubr.f32.mxu0 0.0
    %v1901 = vand.u32 %v1379, 4294901760
    %v1902 = vsub.f32 %v1379, %v1901
    %1903 = vmatmul.mubr.f32.gmra.mxu0 %v1902
    %v1904 = vpop.f32.mrf.mxu0
    %v1905 = vadd.f32 %v1738, %v1904
    %v1906 = vpop.f32.mrf.mxu0
    %1907 = vmatprep.mubr.f32.mxu0 0.0
    %v1908 = vand.u32 %v1382, 4294901760
    %v1909 = vsub.f32 %v1382, %v1908
    %1910 = vmatmul.mubr.f32.gmra.mxu0 %v1909
    %v1911 = vpop.f32.mrf.mxu0
    %v1912 = vadd.f32 %v1744, %v1911
    %v1913 = vpop.f32.mrf.mxu0
    %1914 = vmatprep.mubr.f32.mxu0 0.0
    %v1915 = vand.u32 %v1385, 4294901760
    %v1916 = vsub.f32 %v1385, %v1915
    %1917 = vmatmul.mubr.f32.gmra.mxu0 %v1916
    %v1918 = vpop.f32.mrf.mxu0
    %v1919 = vadd.f32 %v1750, %v1918
    %v1920 = vpop.f32.mrf.mxu0
    %1921 = vmatprep.mubr.f32.mxu0 0.0
    %v1922 = vand.u32 %v1388, 4294901760
    %v1923 = vsub.f32 %v1388, %v1922
    %1924 = vmatmul.mubr.f32.gmra.mxu0 %v1923
    %v1925 = vpop.f32.mrf.mxu0
    %v1926 = vadd.f32 %v1756, %v1925
    %v1927 = vpop.f32.mrf.mxu0
    %1928 = vmatprep.mubr.f32.mxu0 0.0
    %v1929 = vand.u32 %v1391, 4294901760
    %v1930 = vsub.f32 %v1391, %v1929
    %1931 = vmatmul.mubr.f32.gmra.mxu0 %v1930
    %v1932 = vpop.f32.mrf.mxu0
    %v1933 = vadd.f32 %v1762, %v1932
    %v1934 = vpop.f32.mrf.mxu0
    %1935 = vmatprep.mubr.f32.mxu0 0.0
    %v1936 = vand.u32 %v1394, 4294901760
    %v1937 = vsub.f32 %v1394, %v1936
    %1938 = vmatmul.mubr.f32.gmra.mxu0 %v1937
    %v1939 = vpop.f32.mrf.mxu0
    %v1940 = vadd.f32 %v1768, %v1939
    %v1941 = vpop.f32.mrf.mxu0
    %1942 = vmatprep.mubr.f32.mxu0 0.0
    %v1943 = vand.u32 %v1397, 4294901760
    %v1944 = vsub.f32 %v1397, %v1943
    %1945 = vmatmul.mubr.f32.gmra.mxu0 %v1944
    %v1946 = vpop.f32.mrf.mxu0
    %v1947 = vadd.f32 %v1774, %v1946
    %v1948 = vpop.f32.mrf.mxu0
    %1949 = vmatprep.mubr.f32.mxu0 0.0
    %v1950 = vand.u32 %v1400, 4294901760
    %v1951 = vsub.f32 %v1400, %v1950
    %1952 = vmatmul.mubr.f32.gmra.mxu0 %v1951
    %v1953 = vpop.f32.mrf.mxu0
    %v1954 = vadd.f32 %v1780, %v1953
    %v1955 = vpop.f32.mrf.mxu0
    %1956 = vmatprep.mubr.f32.mxu0 0.0
    %v1957 = vand.u32 %v1403, 4294901760
    %v1958 = vsub.f32 %v1403, %v1957
    %1959 = vmatmul.mubr.f32.gmra.mxu0 %v1958
    %v1960 = vpop.f32.mrf.mxu0
    %v1961 = vadd.f32 %v1786, %v1960
    %v1962 = vpop.f32.mrf.mxu0
    %1963 = vmatprep.mubr.f32.mxu0 0.0
    %v1964 = vand.u32 %v1406, 4294901760
    %v1965 = vsub.f32 %v1406, %v1964
    %1966 = vmatmul.mubr.f32.gmra.mxu0 %v1965
    %v1967 = vpop.f32.mrf.mxu0
    %v1968 = vadd.f32 %v1792, %v1967
    %v1969 = vpop.f32.mrf.mxu0
    %1970 = vmatprep.mubr.f32.mxu0 0.0
    %v1971 = vand.u32 %v1409, 4294901760
    %v1972 = vsub.f32 %v1409, %v1971
    %1973 = vmatmul.mubr.f32.gmra.mxu0 %v1972
    %v1974 = vpop.f32.mrf.mxu0
    %v1975 = vadd.f32 %v1798, %v1974
    %v1976 = vpop.f32.mrf.mxu0
    %1977 = vmatprep.mubr.f32.mxu0 0.0
    %v1978 = vand.u32 %v1412, 4294901760
    %v1979 = vsub.f32 %v1412, %v1978
    %1980 = vmatmul.mubr.f32.gmra.mxu0 %v1979
    %v1981 = vpop.f32.mrf.mxu0
    %v1982 = vadd.f32 %v1804, %v1981
    %v1983 = vpop.f32.mrf.mxu0
    %1984 = vmatprep.mubr.f32.mxu0 0.0
    %v1985 = vand.u32 %v1415, 4294901760
    %v1986 = vsub.f32 %v1415, %v1985
    %1987 = vmatmul.mubr.f32.gmra.mxu0 %v1986
    %v1988 = vpop.f32.mrf.mxu0
    %v1989 = vadd.f32 %v1810, %v1988
    %v1990 = vpop.f32.mrf.mxu0
    %1991 = vdwg.mxu0
    %1992 = vmatprep.subr.mxu0 0.0
    %1993 = vmatpush1.msra.mxu0 0.0
    %1994 = vmatprep.subr.mxu0 0.0
    %1995 = vmatpush1.msra.mxu0 0.0
    %1996 = vmatprep.subr.mxu0 0.0
    %1997 = vmatpush1.msra.mxu0 0.0
    %1998 = vmatprep.subr.mxu0 0.0
    %1999 = vmatpush1.msra.mxu0 0.0
    %2000 = vmatprep.subr.mxu0 0.0
    %2001 = vmatpush1.msra.mxu0 0.0
    %2002 = vmatprep.subr.mxu0 0.0
    %2003 = vmatpush1.msra.mxu0 0.0
    %2004 = vmatprep.subr.mxu0 0.0
    %2005 = vmatpush1.msra.mxu0 0.0
    %2006 = vmatprep.subr.mxu0 0.0
    %2007 = vmatpush1.msra.mxu0 0.0
    %2008 = vmatprep.subr.mxu0 0.0
    %2009 = vmatpush1.msra.mxu0 0.0
    %2010 = vmatprep.subr.mxu0 0.0
    %2011 = vmatpush1.msra.mxu0 0.0
    %2012 = vmatprep.subr.mxu0 0.0
    %2013 = vmatpush1.msra.mxu0 0.0
    %2014 = vmatprep.subr.mxu0 0.0
    %2015 = vmatpush1.msra.mxu0 0.0
    %2016 = vmatprep.subr.mxu0 0.0
    %2017 = vmatpush1.msra.mxu0 0.0
    %2018 = vmatprep.subr.mxu0 0.0
    %2019 = vmatpush1.msra.mxu0 0.0
    %2020 = vmatprep.subr.mxu0 0.0
    %2021 = vmatpush1.msra.mxu0 0.0
    %2022 = vmatprep.subr.mxu0 0.0
    %v2023 = vand.u32 %v1419, 4294901760
    %2024 = vmatpush1.msra.mxu0 %v2023
    %2025 = vmatprep.subr.mxu0 0.0
    %2026 = vmatpush2.msra.mxu0 0.0
    %2027 = vmatprep.subr.mxu0 0.0
    %2028 = vmatpush2.msra.mxu0 0.0
    %2029 = vmatprep.subr.mxu0 0.0
    %2030 = vmatpush2.msra.mxu0 0.0
    %2031 = vmatprep.subr.mxu0 0.0
    %2032 = vmatpush2.msra.mxu0 0.0
    %2033 = vmatprep.subr.mxu0 0.0
    %2034 = vmatpush2.msra.mxu0 0.0
    %2035 = vmatprep.subr.mxu0 0.0
    %2036 = vmatpush2.msra.mxu0 0.0
    %2037 = vmatprep.subr.mxu0 0.0
    %2038 = vmatpush2.msra.mxu0 0.0
    %2039 = vmatprep.subr.mxu0 0.0
    %2040 = vmatpush2.msra.mxu0 0.0
    %2041 = vmatprep.subr.mxu0 0.0
    %2042 = vmatpush2.msra.mxu0 0.0
    %2043 = vmatprep.subr.mxu0 0.0
    %2044 = vmatpush2.msra.mxu0 0.0
    %2045 = vmatprep.subr.mxu0 0.0
    %2046 = vmatpush2.msra.mxu0 0.0
    %2047 = vmatprep.subr.mxu0 0.0
    %2048 = vmatpush2.msra.mxu0 0.0
    %2049 = vmatprep.subr.mxu0 0.0
    %2050 = vmatpush2.msra.mxu0 0.0
    %2051 = vmatprep.subr.mxu0 0.0
    %2052 = vmatpush2.msra.mxu0 0.0
    %2053 = vmatprep.subr.mxu0 0.0
    %2054 = vmatpush2.msra.mxu0 0.0
    %2055 = vmatprep.subr.mxu0 0.0
    %2056 = vmatpush2.msra.mxu0 0.0
    %2057 = vmatprep.mubr.f32.mxu0 0.0
    %v2058 = vand.u32 %v1370, 4294901760
    %v2059 = vsub.f32 %v1370, %v2058
    %v2060 = vand.u32 %v2059, 4294901760
    %2061 = vmatmul.mubr.f32.gmra.mxu0 %v2060
    %v2062 = vpop.f32.mrf.mxu0
    %v2063 = vadd.f32 %v1884, %v2062
    %v2064 = vpop.f32.mrf.mxu0
    %2065 = vmatprep.mubr.f32.mxu0 0.0
    %v2066 = vand.u32 %v1373, 4294901760
    %v2067 = vsub.f32 %v1373, %v2066
    %v2068 = vand.u32 %v2067, 4294901760
    %2069 = vmatmul.mubr.f32.gmra.mxu0 %v2068
    %v2070 = vpop.f32.mrf.mxu0
    %v2071 = vadd.f32 %v1891, %v2070
    %v2072 = vpop.f32.mrf.mxu0
    %2073 = vmatprep.mubr.f32.mxu0 0.0
    %v2074 = vand.u32 %v1376, 4294901760
    %v2075 = vsub.f32 %v1376, %v2074
    %v2076 = vand.u32 %v2075, 4294901760
    %2077 = vmatmul.mubr.f32.gmra.mxu0 %v2076
    %v2078 = vpop.f32.mrf.mxu0
    %v2079 = vadd.f32 %v1898, %v2078
    %v2080 = vpop.f32.mrf.mxu0
    %2081 = vmatprep.mubr.f32.mxu0 0.0
    %v2082 = vand.u32 %v1379, 4294901760
    %v2083 = vsub.f32 %v1379, %v2082
    %v2084 = vand.u32 %v2083, 4294901760
    %2085 = vmatmul.mubr.f32.gmra.mxu0 %v2084
    %v2086 = vpop.f32.mrf.mxu0
    %v2087 = vadd.f32 %v1905, %v2086
    %v2088 = vpop.f32.mrf.mxu0
    %2089 = vmatprep.mubr.f32.mxu0 0.0
    %v2090 = vand.u32 %v1382, 4294901760
    %v2091 = vsub.f32 %v1382, %v2090
    %v2092 = vand.u32 %v2091, 4294901760
    %2093 = vmatmul.mubr.f32.gmra.mxu0 %v2092
    %v2094 = vpop.f32.mrf.mxu0
    %v2095 = vadd.f32 %v1912, %v2094
    %v2096 = vpop.f32.mrf.mxu0
    %2097 = vmatprep.mubr.f32.mxu0 0.0
    %v2098 = vand.u32 %v1385, 4294901760
    %v2099 = vsub.f32 %v1385, %v2098
    %v2100 = vand.u32 %v2099, 4294901760
    %2101 = vmatmul.mubr.f32.gmra.mxu0 %v2100
    %v2102 = vpop.f32.mrf.mxu0
    %v2103 = vadd.f32 %v1919, %v2102
    %v2104 = vpop.f32.mrf.mxu0
    %2105 = vmatprep.mubr.f32.mxu0 0.0
    %v2106 = vand.u32 %v1388, 4294901760
    %v2107 = vsub.f32 %v1388, %v2106
    %v2108 = vand.u32 %v2107, 4294901760
    %2109 = vmatmul.mubr.f32.gmra.mxu0 %v2108
    %v2110 = vpop.f32.mrf.mxu0
    %v2111 = vadd.f32 %v1926, %v2110
    %v2112 = vpop.f32.mrf.mxu0
    %2113 = vmatprep.mubr.f32.mxu0 0.0
    %v2114 = vand.u32 %v1391, 4294901760
    %v2115 = vsub.f32 %v1391, %v2114
    %v2116 = vand.u32 %v2115, 4294901760
    %2117 = vmatmul.mubr.f32.gmra.mxu0 %v2116
    %v2118 = vpop.f32.mrf.mxu0
    %v2119 = vadd.f32 %v1933, %v2118
    %v2120 = vpop.f32.mrf.mxu0
    %2121 = vmatprep.mubr.f32.mxu0 0.0
    %v2122 = vand.u32 %v1394, 4294901760
    %v2123 = vsub.f32 %v1394, %v2122
    %v2124 = vand.u32 %v2123, 4294901760
    %2125 = vmatmul.mubr.f32.gmra.mxu0 %v2124
    %v2126 = vpop.f32.mrf.mxu0
    %v2127 = vadd.f32 %v1940, %v2126
    %v2128 = vpop.f32.mrf.mxu0
    %2129 = vmatprep.mubr.f32.mxu0 0.0
    %v2130 = vand.u32 %v1397, 4294901760
    %v2131 = vsub.f32 %v1397, %v2130
    %v2132 = vand.u32 %v2131, 4294901760
    %2133 = vmatmul.mubr.f32.gmra.mxu0 %v2132
    %v2134 = vpop.f32.mrf.mxu0
    %v2135 = vadd.f32 %v1947, %v2134
    %v2136 = vpop.f32.mrf.mxu0
    %2137 = vmatprep.mubr.f32.mxu0 0.0
    %v2138 = vand.u32 %v1400, 4294901760
    %v2139 = vsub.f32 %v1400, %v2138
    %v2140 = vand.u32 %v2139, 4294901760
    %2141 = vmatmul.mubr.f32.gmra.mxu0 %v2140
    %v2142 = vpop.f32.mrf.mxu0
    %v2143 = vadd.f32 %v1954, %v2142
    %v2144 = vpop.f32.mrf.mxu0
    %2145 = vmatprep.mubr.f32.mxu0 0.0
    %v2146 = vand.u32 %v1403, 4294901760
    %v2147 = vsub.f32 %v1403, %v2146
    %v2148 = vand.u32 %v2147, 4294901760
    %2149 = vmatmul.mubr.f32.gmra.mxu0 %v2148
    %v2150 = vpop.f32.mrf.mxu0
    %v2151 = vadd.f32 %v1961, %v2150
    %v2152 = vpop.f32.mrf.mxu0
    %2153 = vmatprep.mubr.f32.mxu0 0.0
    %v2154 = vand.u32 %v1406, 4294901760
    %v2155 = vsub.f32 %v1406, %v2154
    %v2156 = vand.u32 %v2155, 4294901760
    %2157 = vmatmul.mubr.f32.gmra.mxu0 %v2156
    %v2158 = vpop.f32.mrf.mxu0
    %v2159 = vadd.f32 %v1968, %v2158
    %v2160 = vpop.f32.mrf.mxu0
    %2161 = vmatprep.mubr.f32.mxu0 0.0
    %v2162 = vand.u32 %v1409, 4294901760
    %v2163 = vsub.f32 %v1409, %v2162
    %v2164 = vand.u32 %v2163, 4294901760
    %2165 = vmatmul.mubr.f32.gmra.mxu0 %v2164
    %v2166 = vpop.f32.mrf.mxu0
    %v2167 = vadd.f32 %v1975, %v2166
    %v2168 = vpop.f32.mrf.mxu0
    %2169 = vmatprep.mubr.f32.mxu0 0.0
    %v2170 = vand.u32 %v1412, 4294901760
    %v2171 = vsub.f32 %v1412, %v2170
    %v2172 = vand.u32 %v2171, 4294901760
    %2173 = vmatmul.mubr.f32.gmra.mxu0 %v2172
    %v2174 = vpop.f32.mrf.mxu0
    %v2175 = vadd.f32 %v1982, %v2174
    %v2176 = vpop.f32.mrf.mxu0
    %2177 = vmatprep.mubr.f32.mxu0 0.0
    %v2178 = vand.u32 %v1415, 4294901760
    %v2179 = vsub.f32 %v1415, %v2178
    %v2180 = vand.u32 %v2179, 4294901760
    %2181 = vmatmul.mubr.f32.gmra.mxu0 %v2180
    %v2182 = vpop.f32.mrf.mxu0
    %v2183 = vadd.f32 %v1989, %v2182
    %v2184 = vpop.f32.mrf.mxu0
    %2185 = vdwg.mxu0
    %2186 = vmatprep.subr.mxu0 0.0
    %2187 = vmatpush1.msra.mxu0 0.0
    %2188 = vmatprep.subr.mxu0 0.0
    %2189 = vmatpush1.msra.mxu0 0.0
    %2190 = vmatprep.subr.mxu0 0.0
    %2191 = vmatpush1.msra.mxu0 0.0
    %2192 = vmatprep.subr.mxu0 0.0
    %2193 = vmatpush1.msra.mxu0 0.0
    %2194 = vmatprep.subr.mxu0 0.0
    %2195 = vmatpush1.msra.mxu0 0.0
    %2196 = vmatprep.subr.mxu0 0.0
    %2197 = vmatpush1.msra.mxu0 0.0
    %2198 = vmatprep.subr.mxu0 0.0
    %2199 = vmatpush1.msra.mxu0 0.0
    %2200 = vmatprep.subr.mxu0 0.0
    %2201 = vmatpush1.msra.mxu0 0.0
    %2202 = vmatprep.subr.mxu0 0.0
    %2203 = vmatpush1.msra.mxu0 0.0
    %2204 = vmatprep.subr.mxu0 0.0
    %2205 = vmatpush1.msra.mxu0 0.0
    %2206 = vmatprep.subr.mxu0 0.0
    %2207 = vmatpush1.msra.mxu0 0.0
    %2208 = vmatprep.subr.mxu0 0.0
    %2209 = vmatpush1.msra.mxu0 0.0
    %2210 = vmatprep.subr.mxu0 0.0
    %2211 = vmatpush1.msra.mxu0 0.0
    %2212 = vmatprep.subr.mxu0 0.0
    %2213 = vmatpush1.msra.mxu0 0.0
    %2214 = vmatprep.subr.mxu0 0.0
    %2215 = vmatpush1.msra.mxu0 0.0
    %2216 = vmatprep.subr.mxu0 0.0
    %v2217 = vand.u32 %v1419, 4294901760
    %v2218 = vsub.f32 %v1419, %v2217
    %v2219 = vand.u32 %v2218, 4294901760
    %2220 = vmatpush1.msra.mxu0 %v2219
    %2221 = vmatprep.subr.mxu0 0.0
    %2222 = vmatpush2.msra.mxu0 0.0
    %2223 = vmatprep.subr.mxu0 0.0
    %2224 = vmatpush2.msra.mxu0 0.0
    %2225 = vmatprep.subr.mxu0 0.0
    %2226 = vmatpush2.msra.mxu0 0.0
    %2227 = vmatprep.subr.mxu0 0.0
    %2228 = vmatpush2.msra.mxu0 0.0
    %2229 = vmatprep.subr.mxu0 0.0
    %2230 = vmatpush2.msra.mxu0 0.0
    %2231 = vmatprep.subr.mxu0 0.0
    %2232 = vmatpush2.msra.mxu0 0.0
    %2233 = vmatprep.subr.mxu0 0.0
    %2234 = vmatpush2.msra.mxu0 0.0
    %2235 = vmatprep.subr.mxu0 0.0
    %2236 = vmatpush2.msra.mxu0 0.0
    %2237 = vmatprep.subr.mxu0 0.0
    %2238 = vmatpush2.msra.mxu0 0.0
    %2239 = vmatprep.subr.mxu0 0.0
    %2240 = vmatpush2.msra.mxu0 0.0
    %2241 = vmatprep.subr.mxu0 0.0
    %2242 = vmatpush2.msra.mxu0 0.0
    %2243 = vmatprep.subr.mxu0 0.0
    %2244 = vmatpush2.msra.mxu0 0.0
    %2245 = vmatprep.subr.mxu0 0.0
    %2246 = vmatpush2.msra.mxu0 0.0
    %2247 = vmatprep.subr.mxu0 0.0
    %2248 = vmatpush2.msra.mxu0 0.0
    %2249 = vmatprep.subr.mxu0 0.0
    %2250 = vmatpush2.msra.mxu0 0.0
    %2251 = vmatprep.subr.mxu0 0.0
    %2252 = vmatpush2.msra.mxu0 0.0
    %2253 = vmatprep.mubr.f32.mxu0 0.0
    %v2254 = vand.u32 %v1370, 4294901760
    %2255 = vmatmul.mubr.f32.gmra.mxu0 %v2254
    %v2256 = vpop.f32.mrf.mxu0
    %v2257 = vadd.f32 %v2063, %v2256
    %v2258 = vpop.f32.mrf.mxu0
    %2259 = vmatprep.mubr.f32.mxu0 0.0
    %v2260 = vand.u32 %v1373, 4294901760
    %2261 = vmatmul.mubr.f32.gmra.mxu0 %v2260
    %v2262 = vpop.f32.mrf.mxu0
    %v2263 = vadd.f32 %v2071, %v2262
    %v2264 = vpop.f32.mrf.mxu0
    %2265 = vmatprep.mubr.f32.mxu0 0.0
    %v2266 = vand.u32 %v1376, 4294901760
    %2267 = vmatmul.mubr.f32.gmra.mxu0 %v2266
    %v2268 = vpop.f32.mrf.mxu0
    %v2269 = vadd.f32 %v2079, %v2268
    %v2270 = vpop.f32.mrf.mxu0
    %2271 = vmatprep.mubr.f32.mxu0 0.0
    %v2272 = vand.u32 %v1379, 4294901760
    %2273 = vmatmul.mubr.f32.gmra.mxu0 %v2272
    %v2274 = vpop.f32.mrf.mxu0
    %v2275 = vadd.f32 %v2087, %v2274
    %v2276 = vpop.f32.mrf.mxu0
    %2277 = vmatprep.mubr.f32.mxu0 0.0
    %v2278 = vand.u32 %v1382, 4294901760
    %2279 = vmatmul.mubr.f32.gmra.mxu0 %v2278
    %v2280 = vpop.f32.mrf.mxu0
    %v2281 = vadd.f32 %v2095, %v2280
    %v2282 = vpop.f32.mrf.mxu0
    %2283 = vmatprep.mubr.f32.mxu0 0.0
    %v2284 = vand.u32 %v1385, 4294901760
    %2285 = vmatmul.mubr.f32.gmra.mxu0 %v2284
    %v2286 = vpop.f32.mrf.mxu0
    %v2287 = vadd.f32 %v2103, %v2286
    %v2288 = vpop.f32.mrf.mxu0
    %2289 = vmatprep.mubr.f32.mxu0 0.0
    %v2290 = vand.u32 %v1388, 4294901760
    %2291 = vmatmul.mubr.f32.gmra.mxu0 %v2290
    %v2292 = vpop.f32.mrf.mxu0
    %v2293 = vadd.f32 %v2111, %v2292
    %v2294 = vpop.f32.mrf.mxu0
    %2295 = vmatprep.mubr.f32.mxu0 0.0
    %v2296 = vand.u32 %v1391, 4294901760
    %2297 = vmatmul.mubr.f32.gmra.mxu0 %v2296
    %v2298 = vpop.f32.mrf.mxu0
    %v2299 = vadd.f32 %v2119, %v2298
    %v2300 = vpop.f32.mrf.mxu0
    %2301 = vmatprep.mubr.f32.mxu0 0.0
    %v2302 = vand.u32 %v1394, 4294901760
    %2303 = vmatmul.mubr.f32.gmra.mxu0 %v2302
    %v2304 = vpop.f32.mrf.mxu0
    %v2305 = vadd.f32 %v2127, %v2304
    %v2306 = vpop.f32.mrf.mxu0
    %2307 = vmatprep.mubr.f32.mxu0 0.0
    %v2308 = vand.u32 %v1397, 4294901760
    %2309 = vmatmul.mubr.f32.gmra.mxu0 %v2308
    %v2310 = vpop.f32.mrf.mxu0
    %v2311 = vadd.f32 %v2135, %v2310
    %v2312 = vpop.f32.mrf.mxu0
    %2313 = vmatprep.mubr.f32.mxu0 0.0
    %v2314 = vand.u32 %v1400, 4294901760
    %2315 = vmatmul.mubr.f32.gmra.mxu0 %v2314
    %v2316 = vpop.f32.mrf.mxu0
    %v2317 = vadd.f32 %v2143, %v2316
    %v2318 = vpop.f32.mrf.mxu0
    %2319 = vmatprep.mubr.f32.mxu0 0.0
    %v2320 = vand.u32 %v1403, 4294901760
    %2321 = vmatmul.mubr.f32.gmra.mxu0 %v2320
    %v2322 = vpop.f32.mrf.mxu0
    %v2323 = vadd.f32 %v2151, %v2322
    %v2324 = vpop.f32.mrf.mxu0
    %2325 = vmatprep.mubr.f32.mxu0 0.0
    %v2326 = vand.u32 %v1406, 4294901760
    %2327 = vmatmul.mubr.f32.gmra.mxu0 %v2326
    %v2328 = vpop.f32.mrf.mxu0
    %v2329 = vadd.f32 %v2159, %v2328
    %v2330 = vpop.f32.mrf.mxu0
    %2331 = vmatprep.mubr.f32.mxu0 0.0
    %v2332 = vand.u32 %v1409, 4294901760
    %2333 = vmatmul.mubr.f32.gmra.mxu0 %v2332
    %v2334 = vpop.f32.mrf.mxu0
    %v2335 = vadd.f32 %v2167, %v2334
    %v2336 = vpop.f32.mrf.mxu0
    %2337 = vmatprep.mubr.f32.mxu0 0.0
    %v2338 = vand.u32 %v1412, 4294901760
    %2339 = vmatmul.mubr.f32.gmra.mxu0 %v2338
    %v2340 = vpop.f32.mrf.mxu0
    %v2341 = vadd.f32 %v2175, %v2340
    %v2342 = vpop.f32.mrf.mxu0
    %2343 = vmatprep.mubr.f32.mxu0 0.0
    %v2344 = vand.u32 %v1415, 4294901760
    %2345 = vmatmul.mubr.f32.gmra.mxu0 %v2344
    %v2346 = vpop.f32.mrf.mxu0
    %v2347 = vadd.f32 %v2183, %v2346
    %v2348 = vpop.f32.mrf.mxu0
    %2349 = vdwg.mxu0
    %2350 = vmatprep.subr.mxu0 0.0
    %2351 = vmatpush1.msra.mxu0 0.0
    %2352 = vmatprep.subr.mxu0 0.0
    %2353 = vmatpush1.msra.mxu0 0.0
    %2354 = vmatprep.subr.mxu0 0.0
    %2355 = vmatpush1.msra.mxu0 0.0
    %2356 = vmatprep.subr.mxu0 0.0
    %2357 = vmatpush1.msra.mxu0 0.0
    %2358 = vmatprep.subr.mxu0 0.0
    %2359 = vmatpush1.msra.mxu0 0.0
    %2360 = vmatprep.subr.mxu0 0.0
    %2361 = vmatpush1.msra.mxu0 0.0
    %2362 = vmatprep.subr.mxu0 0.0
    %2363 = vmatpush1.msra.mxu0 0.0
    %2364 = vmatprep.subr.mxu0 0.0
    %2365 = vmatpush1.msra.mxu0 0.0
    %2366 = vmatprep.subr.mxu0 0.0
    %2367 = vmatpush1.msra.mxu0 0.0
    %2368 = vmatprep.subr.mxu0 0.0
    %2369 = vmatpush1.msra.mxu0 0.0
    %2370 = vmatprep.subr.mxu0 0.0
    %2371 = vmatpush1.msra.mxu0 0.0
    %2372 = vmatprep.subr.mxu0 0.0
    %2373 = vmatpush1.msra.mxu0 0.0
    %2374 = vmatprep.subr.mxu0 0.0
    %2375 = vmatpush1.msra.mxu0 0.0
    %2376 = vmatprep.subr.mxu0 0.0
    %2377 = vmatpush1.msra.mxu0 0.0
    %2378 = vmatprep.subr.mxu0 0.0
    %2379 = vmatpush1.msra.mxu0 0.0
    %2380 = vmatprep.subr.mxu0 0.0
    %v2381 = vand.u32 %v1419, 4294901760
    %2382 = vmatpush1.msra.mxu0 %v2381
    %2383 = vmatprep.subr.mxu0 0.0
    %2384 = vmatpush2.msra.mxu0 0.0
    %2385 = vmatprep.subr.mxu0 0.0
    %2386 = vmatpush2.msra.mxu0 0.0
    %2387 = vmatprep.subr.mxu0 0.0
    %2388 = vmatpush2.msra.mxu0 0.0
    %2389 = vmatprep.subr.mxu0 0.0
    %2390 = vmatpush2.msra.mxu0 0.0
    %2391 = vmatprep.subr.mxu0 0.0
    %2392 = vmatpush2.msra.mxu0 0.0
    %2393 = vmatprep.subr.mxu0 0.0
    %2394 = vmatpush2.msra.mxu0 0.0
    %2395 = vmatprep.subr.mxu0 0.0
    %2396 = vmatpush2.msra.mxu0 0.0
    %2397 = vmatprep.subr.mxu0 0.0
    %2398 = vmatpush2.msra.mxu0 0.0
    %2399 = vmatprep.subr.mxu0 0.0
    %2400 = vmatpush2.msra.mxu0 0.0
    %2401 = vmatprep.subr.mxu0 0.0
    %2402 = vmatpush2.msra.mxu0 0.0
    %2403 = vmatprep.subr.mxu0 0.0
    %2404 = vmatpush2.msra.mxu0 0.0
    %2405 = vmatprep.subr.mxu0 0.0
    %2406 = vmatpush2.msra.mxu0 0.0
    %2407 = vmatprep.subr.mxu0 0.0
    %2408 = vmatpush2.msra.mxu0 0.0
    %2409 = vmatprep.subr.mxu0 0.0
    %2410 = vmatpush2.msra.mxu0 0.0
    %2411 = vmatprep.subr.mxu0 0.0
    %2412 = vmatpush2.msra.mxu0 0.0
    %2413 = vmatprep.subr.mxu0 0.0
    %2414 = vmatpush2.msra.mxu0 0.0
    %2415 = vmatprep.mubr.f32.mxu0 0.0
    %v2416 = vand.u32 %v1370, 4294901760
    %2417 = vmatmul.mubr.f32.gmra.mxu0 %v2416
    %v2418 = vpop.f32.mrf.mxu0
    %v2419 = vadd.f32 %v2257, %v2418
    %v2420 = vpop.f32.mrf.mxu0
    %2421 = vmatprep.mubr.f32.mxu0 0.0
    %v2422 = vand.u32 %v1373, 4294901760
    %2423 = vmatmul.mubr.f32.gmra.mxu0 %v2422
    %v2424 = vpop.f32.mrf.mxu0
    %v2425 = vadd.f32 %v2263, %v2424
    %v2426 = vpop.f32.mrf.mxu0
    %2427 = vmatprep.mubr.f32.mxu0 0.0
    %v2428 = vand.u32 %v1376, 4294901760
    %2429 = vmatmul.mubr.f32.gmra.mxu0 %v2428
    %v2430 = vpop.f32.mrf.mxu0
    %v2431 = vadd.f32 %v2269, %v2430
    %v2432 = vpop.f32.mrf.mxu0
    %2433 = vmatprep.mubr.f32.mxu0 0.0
    %v2434 = vand.u32 %v1379, 4294901760
    %2435 = vmatmul.mubr.f32.gmra.mxu0 %v2434
    %v2436 = vpop.f32.mrf.mxu0
    %v2437 = vadd.f32 %v2275, %v2436
    %v2438 = vpop.f32.mrf.mxu0
    %2439 = vmatprep.mubr.f32.mxu0 0.0
    %v2440 = vand.u32 %v1382, 4294901760
    %2441 = vmatmul.mubr.f32.gmra.mxu0 %v2440
    %v2442 = vpop.f32.mrf.mxu0
    %v2443 = vadd.f32 %v2281, %v2442
    %v2444 = vpop.f32.mrf.mxu0
    %2445 = vmatprep.mubr.f32.mxu0 0.0
    %v2446 = vand.u32 %v1385, 4294901760
    %2447 = vmatmul.mubr.f32.gmra.mxu0 %v2446
    %v2448 = vpop.f32.mrf.mxu0
    %v2449 = vadd.f32 %v2287, %v2448
    %v2450 = vpop.f32.mrf.mxu0
    %2451 = vmatprep.mubr.f32.mxu0 0.0
    %v2452 = vand.u32 %v1388, 4294901760
    %2453 = vmatmul.mubr.f32.gmra.mxu0 %v2452
    %v2454 = vpop.f32.mrf.mxu0
    %v2455 = vadd.f32 %v2293, %v2454
    %v2456 = vpop.f32.mrf.mxu0
    %2457 = vmatprep.mubr.f32.mxu0 0.0
    %v2458 = vand.u32 %v1391, 4294901760
    %2459 = vmatmul.mubr.f32.gmra.mxu0 %v2458
    %v2460 = vpop.f32.mrf.mxu0
    %v2461 = vadd.f32 %v2299, %v2460
    %v2462 = vpop.f32.mrf.mxu0
    %2463 = vmatprep.mubr.f32.mxu0 0.0
    %v2464 = vand.u32 %v1394, 4294901760
    %2465 = vmatmul.mubr.f32.gmra.mxu0 %v2464
    %v2466 = vpop.f32.mrf.mxu0
    %v2467 = vadd.f32 %v2305, %v2466
    %v2468 = vpop.f32.mrf.mxu0
    %2469 = vmatprep.mubr.f32.mxu0 0.0
    %v2470 = vand.u32 %v1397, 4294901760
    %2471 = vmatmul.mubr.f32.gmra.mxu0 %v2470
    %v2472 = vpop.f32.mrf.mxu0
    %v2473 = vadd.f32 %v2311, %v2472
    %v2474 = vpop.f32.mrf.mxu0
    %2475 = vmatprep.mubr.f32.mxu0 0.0
    %v2476 = vand.u32 %v1400, 4294901760
    %2477 = vmatmul.mubr.f32.gmra.mxu0 %v2476
    %v2478 = vpop.f32.mrf.mxu0
    %v2479 = vadd.f32 %v2317, %v2478
    %v2480 = vpop.f32.mrf.mxu0
    %2481 = vmatprep.mubr.f32.mxu0 0.0
    %v2482 = vand.u32 %v1403, 4294901760
    %2483 = vmatmul.mubr.f32.gmra.mxu0 %v2482
    %v2484 = vpop.f32.mrf.mxu0
    %v2485 = vadd.f32 %v2323, %v2484
    %v2486 = vpop.f32.mrf.mxu0
    %2487 = vmatprep.mubr.f32.mxu0 0.0
    %v2488 = vand.u32 %v1406, 4294901760
    %2489 = vmatmul.mubr.f32.gmra.mxu0 %v2488
    %v2490 = vpop.f32.mrf.mxu0
    %v2491 = vadd.f32 %v2329, %v2490
    %v2492 = vpop.f32.mrf.mxu0
    %2493 = vmatprep.mubr.f32.mxu0 0.0
    %v2494 = vand.u32 %v1409, 4294901760
    %2495 = vmatmul.mubr.f32.gmra.mxu0 %v2494
    %v2496 = vpop.f32.mrf.mxu0
    %v2497 = vadd.f32 %v2335, %v2496
    %v2498 = vpop.f32.mrf.mxu0
    %2499 = vmatprep.mubr.f32.mxu0 0.0
    %v2500 = vand.u32 %v1412, 4294901760
    %2501 = vmatmul.mubr.f32.gmra.mxu0 %v2500
    %v2502 = vpop.f32.mrf.mxu0
    %v2503 = vadd.f32 %v2341, %v2502
    %v2504 = vpop.f32.mrf.mxu0
    %2505 = vmatprep.mubr.f32.mxu0 0.0
    %v2506 = vand.u32 %v1415, 4294901760
    %2507 = vmatmul.mubr.f32.gmra.mxu0 %v2506
    %v2508 = vpop.f32.mrf.mxu0
    %v2509 = vadd.f32 %v2347, %v2508
    %v2510 = vpop.f32.mrf.mxu0
    %2511 = vdwg.mxu0
    %v2512 = vsub.f32 %v33, %v2419
    %v2513 = vsub.f32 %v34, %v2425
    %v2514 = vsub.f32 %v35, %v2431
    %v2515 = vsub.f32 %v36, %v2437
    %v2516 = vsub.f32 %v37, %v2443
    %v2517 = vsub.f32 %v38, %v2449
    %v2518 = vsub.f32 %v39, %v2455
    %v2519 = vsub.f32 %v40, %v2461
    %v2520 = vsub.f32 %v41, %v2467
    %v2521 = vsub.f32 %v42, %v2473
    %v2522 = vsub.f32 %v43, %v2479
    %v2523 = vsub.f32 %v44, %v2485
    %v2524 = vsub.f32 %v45, %v2491
    %v2525 = vsub.f32 %v46, %v2497
    %v2526 = vsub.f32 %v47, %v2503
    %v2527 = vsub.f32 %v48, %v2509
    %v2528 = vmul.f32 %v2512, %v2512
    %v2529 = vmul.f32 %v2513, %v2513
    %v2530 = vmul.f32 %v2514, %v2514
    %v2531 = vmul.f32 %v2515, %v2515
    %v2532 = vmul.f32 %v2516, %v2516
    %v2533 = vmul.f32 %v2517, %v2517
    %v2534 = vmul.f32 %v2518, %v2518
    %v2535 = vmul.f32 %v2519, %v2519
    %v2536 = vmul.f32 %v2520, %v2520
    %v2537 = vmul.f32 %v2521, %v2521
    %v2538 = vmul.f32 %v2522, %v2522
    %v2539 = vmul.f32 %v2523, %v2523
    %v2540 = vmul.f32 %v2524, %v2524
    %v2541 = vmul.f32 %v2525, %v2525
    %v2542 = vmul.f32 %v2526, %v2526
    %v2543 = vmul.f32 %v2527, %v2527
    %2544 = vmatprep.subr.mxu0 0.0
    %v2545 = vand.u32 %v64, 4294901760
    %2546 = vmatpush1.msra.mxu0 %v2545
    %2547 = vmatprep.subr.mxu0 0.0
    %v2548 = vand.u32 %v63, 4294901760
    %2549 = vmatpush1.msra.mxu0 %v2548
    %2550 = vmatprep.subr.mxu0 0.0
    %v2551 = vand.u32 %v62, 4294901760
    %2552 = vmatpush1.msra.mxu0 %v2551
    %2553 = vmatprep.subr.mxu0 0.0
    %v2554 = vand.u32 %v61, 4294901760
    %2555 = vmatpush1.msra.mxu0 %v2554
    %2556 = vmatprep.subr.mxu0 0.0
    %v2557 = vand.u32 %v60, 4294901760
    %2558 = vmatpush1.msra.mxu0 %v2557
    %2559 = vmatprep.subr.mxu0 0.0
    %v2560 = vand.u32 %v59, 4294901760
    %2561 = vmatpush1.msra.mxu0 %v2560
    %2562 = vmatprep.subr.mxu0 0.0
    %v2563 = vand.u32 %v58, 4294901760
    %2564 = vmatpush1.msra.mxu0 %v2563
    %2565 = vmatprep.subr.mxu0 0.0
    %v2566 = vand.u32 %v57, 4294901760
    %2567 = vmatpush1.msra.mxu0 %v2566
    %2568 = vmatprep.subr.mxu0 0.0
    %v2569 = vand.u32 %v56, 4294901760
    %2570 = vmatpush1.msra.mxu0 %v2569
    %2571 = vmatprep.subr.mxu0 0.0
    %v2572 = vand.u32 %v55, 4294901760
    %2573 = vmatpush1.msra.mxu0 %v2572
    %2574 = vmatprep.subr.mxu0 0.0
    %v2575 = vand.u32 %v54, 4294901760
    %2576 = vmatpush1.msra.mxu0 %v2575
    %2577 = vmatprep.subr.mxu0 0.0
    %v2578 = vand.u32 %v53, 4294901760
    %2579 = vmatpush1.msra.mxu0 %v2578
    %2580 = vmatprep.subr.mxu0 0.0
    %v2581 = vand.u32 %v52, 4294901760
    %2582 = vmatpush1.msra.mxu0 %v2581
    %2583 = vmatprep.subr.mxu0 0.0
    %v2584 = vand.u32 %v51, 4294901760
    %2585 = vmatpush1.msra.mxu0 %v2584
    %2586 = vmatprep.subr.mxu0 0.0
    %v2587 = vand.u32 %v50, 4294901760
    %2588 = vmatpush1.msra.mxu0 %v2587
    %2589 = vmatprep.subr.mxu0 0.0
    %v2590 = vand.u32 %v49, 4294901760
    %2591 = vmatpush1.msra.mxu0 %v2590
    %2592 = vmatprep.subr.mxu0 0.0
    %2593 = vmatpush2.msra.mxu0 0.0
    %2594 = vmatprep.subr.mxu0 0.0
    %2595 = vmatpush2.msra.mxu0 0.0
    %2596 = vmatprep.subr.mxu0 0.0
    %2597 = vmatpush2.msra.mxu0 0.0
    %2598 = vmatprep.subr.mxu0 0.0
    %2599 = vmatpush2.msra.mxu0 0.0
    %2600 = vmatprep.subr.mxu0 0.0
    %2601 = vmatpush2.msra.mxu0 0.0
    %2602 = vmatprep.subr.mxu0 0.0
    %2603 = vmatpush2.msra.mxu0 0.0
    %2604 = vmatprep.subr.mxu0 0.0
    %2605 = vmatpush2.msra.mxu0 0.0
    %2606 = vmatprep.subr.mxu0 0.0
    %2607 = vmatpush2.msra.mxu0 0.0
    %2608 = vmatprep.subr.mxu0 0.0
    %2609 = vmatpush2.msra.mxu0 0.0
    %2610 = vmatprep.subr.mxu0 0.0
    %2611 = vmatpush2.msra.mxu0 0.0
    %2612 = vmatprep.subr.mxu0 0.0
    %2613 = vmatpush2.msra.mxu0 0.0
    %2614 = vmatprep.subr.mxu0 0.0
    %2615 = vmatpush2.msra.mxu0 0.0
    %2616 = vmatprep.subr.mxu0 0.0
    %2617 = vmatpush2.msra.mxu0 0.0
    %2618 = vmatprep.subr.mxu0 0.0
    %2619 = vmatpush2.msra.mxu0 0.0
    %2620 = vmatprep.subr.mxu0 0.0
    %2621 = vmatpush2.msra.mxu0 0.0
    %2622 = vmatprep.subr.mxu0 0.0
    %2623 = vmatpush2.msra.mxu0 0.0
    %2624 = vmatprep.mubr.f32.mxu0 0.0
    %v2625 = vand.u32 %v2528, 4294901760
    %v2626 = vsub.f32 %v2528, %v2625
    %v2627 = vand.u32 %v2626, 4294901760
    %v2628 = vsub.f32 %v2626, %v2627
    %v2629 = vand.u32 %v2628, 4294901760
    %2630 = vmatmul.mubr.f32.gmra.mxu0 %v2629
    %v2631 = vpop.f32.mrf.mxu0
    %v2632 = vadd.f32 0.0, %v2631
    %v2633 = vpop.f32.mrf.mxu0
    %2634 = vmatprep.mubr.f32.mxu0 0.0
    %v2635 = vand.u32 %v2529, 4294901760
    %v2636 = vsub.f32 %v2529, %v2635
    %v2637 = vand.u32 %v2636, 4294901760
    %v2638 = vsub.f32 %v2636, %v2637
    %v2639 = vand.u32 %v2638, 4294901760
    %2640 = vmatmul.mubr.f32.gmra.mxu0 %v2639
    %v2641 = vpop.f32.mrf.mxu0
    %v2642 = vadd.f32 0.0, %v2641
    %v2643 = vpop.f32.mrf.mxu0
    %2644 = vmatprep.mubr.f32.mxu0 0.0
    %v2645 = vand.u32 %v2530, 4294901760
    %v2646 = vsub.f32 %v2530, %v2645
    %v2647 = vand.u32 %v2646, 4294901760
    %v2648 = vsub.f32 %v2646, %v2647
    %v2649 = vand.u32 %v2648, 4294901760
    %2650 = vmatmul.mubr.f32.gmra.mxu0 %v2649
    %v2651 = vpop.f32.mrf.mxu0
    %v2652 = vadd.f32 0.0, %v2651
    %v2653 = vpop.f32.mrf.mxu0
    %2654 = vmatprep.mubr.f32.mxu0 0.0
    %v2655 = vand.u32 %v2531, 4294901760
    %v2656 = vsub.f32 %v2531, %v2655
    %v2657 = vand.u32 %v2656, 4294901760
    %v2658 = vsub.f32 %v2656, %v2657
    %v2659 = vand.u32 %v2658, 4294901760
    %2660 = vmatmul.mubr.f32.gmra.mxu0 %v2659
    %v2661 = vpop.f32.mrf.mxu0
    %v2662 = vadd.f32 0.0, %v2661
    %v2663 = vpop.f32.mrf.mxu0
    %2664 = vmatprep.mubr.f32.mxu0 0.0
    %v2665 = vand.u32 %v2532, 4294901760
    %v2666 = vsub.f32 %v2532, %v2665
    %v2667 = vand.u32 %v2666, 4294901760
    %v2668 = vsub.f32 %v2666, %v2667
    %v2669 = vand.u32 %v2668, 4294901760
    %2670 = vmatmul.mubr.f32.gmra.mxu0 %v2669
    %v2671 = vpop.f32.mrf.mxu0
    %v2672 = vadd.f32 0.0, %v2671
    %v2673 = vpop.f32.mrf.mxu0
    %2674 = vmatprep.mubr.f32.mxu0 0.0
    %v2675 = vand.u32 %v2533, 4294901760
    %v2676 = vsub.f32 %v2533, %v2675
    %v2677 = vand.u32 %v2676, 4294901760
    %v2678 = vsub.f32 %v2676, %v2677
    %v2679 = vand.u32 %v2678, 4294901760
    %2680 = vmatmul.mubr.f32.gmra.mxu0 %v2679
    %v2681 = vpop.f32.mrf.mxu0
    %v2682 = vadd.f32 0.0, %v2681
    %v2683 = vpop.f32.mrf.mxu0
    %2684 = vmatprep.mubr.f32.mxu0 0.0
    %v2685 = vand.u32 %v2534, 4294901760
    %v2686 = vsub.f32 %v2534, %v2685
    %v2687 = vand.u32 %v2686, 4294901760
    %v2688 = vsub.f32 %v2686, %v2687
    %v2689 = vand.u32 %v2688, 4294901760
    %2690 = vmatmul.mubr.f32.gmra.mxu0 %v2689
    %v2691 = vpop.f32.mrf.mxu0
    %v2692 = vadd.f32 0.0, %v2691
    %v2693 = vpop.f32.mrf.mxu0
    %2694 = vmatprep.mubr.f32.mxu0 0.0
    %v2695 = vand.u32 %v2535, 4294901760
    %v2696 = vsub.f32 %v2535, %v2695
    %v2697 = vand.u32 %v2696, 4294901760
    %v2698 = vsub.f32 %v2696, %v2697
    %v2699 = vand.u32 %v2698, 4294901760
    %2700 = vmatmul.mubr.f32.gmra.mxu0 %v2699
    %v2701 = vpop.f32.mrf.mxu0
    %v2702 = vadd.f32 0.0, %v2701
    %v2703 = vpop.f32.mrf.mxu0
    %2704 = vmatprep.mubr.f32.mxu0 0.0
    %v2705 = vand.u32 %v2536, 4294901760
    %v2706 = vsub.f32 %v2536, %v2705
    %v2707 = vand.u32 %v2706, 4294901760
    %v2708 = vsub.f32 %v2706, %v2707
    %v2709 = vand.u32 %v2708, 4294901760
    %2710 = vmatmul.mubr.f32.gmra.mxu0 %v2709
    %v2711 = vpop.f32.mrf.mxu0
    %v2712 = vadd.f32 0.0, %v2711
    %v2713 = vpop.f32.mrf.mxu0
    %2714 = vmatprep.mubr.f32.mxu0 0.0
    %v2715 = vand.u32 %v2537, 4294901760
    %v2716 = vsub.f32 %v2537, %v2715
    %v2717 = vand.u32 %v2716, 4294901760
    %v2718 = vsub.f32 %v2716, %v2717
    %v2719 = vand.u32 %v2718, 4294901760
    %2720 = vmatmul.mubr.f32.gmra.mxu0 %v2719
    %v2721 = vpop.f32.mrf.mxu0
    %v2722 = vadd.f32 0.0, %v2721
    %v2723 = vpop.f32.mrf.mxu0
    %2724 = vmatprep.mubr.f32.mxu0 0.0
    %v2725 = vand.u32 %v2538, 4294901760
    %v2726 = vsub.f32 %v2538, %v2725
    %v2727 = vand.u32 %v2726, 4294901760
    %v2728 = vsub.f32 %v2726, %v2727
    %v2729 = vand.u32 %v2728, 4294901760
    %2730 = vmatmul.mubr.f32.gmra.mxu0 %v2729
    %v2731 = vpop.f32.mrf.mxu0
    %v2732 = vadd.f32 0.0, %v2731
    %v2733 = vpop.f32.mrf.mxu0
    %2734 = vmatprep.mubr.f32.mxu0 0.0
    %v2735 = vand.u32 %v2539, 4294901760
    %v2736 = vsub.f32 %v2539, %v2735
    %v2737 = vand.u32 %v2736, 4294901760
    %v2738 = vsub.f32 %v2736, %v2737
    %v2739 = vand.u32 %v2738, 4294901760
    %2740 = vmatmul.mubr.f32.gmra.mxu0 %v2739
    %v2741 = vpop.f32.mrf.mxu0
    %v2742 = vadd.f32 0.0, %v2741
    %v2743 = vpop.f32.mrf.mxu0
    %2744 = vmatprep.mubr.f32.mxu0 0.0
    %v2745 = vand.u32 %v2540, 4294901760
    %v2746 = vsub.f32 %v2540, %v2745
    %v2747 = vand.u32 %v2746, 4294901760
    %v2748 = vsub.f32 %v2746, %v2747
    %v2749 = vand.u32 %v2748, 4294901760
    %2750 = vmatmul.mubr.f32.gmra.mxu0 %v2749
    %v2751 = vpop.f32.mrf.mxu0
    %v2752 = vadd.f32 0.0, %v2751
    %v2753 = vpop.f32.mrf.mxu0
    %2754 = vmatprep.mubr.f32.mxu0 0.0
    %v2755 = vand.u32 %v2541, 4294901760
    %v2756 = vsub.f32 %v2541, %v2755
    %v2757 = vand.u32 %v2756, 4294901760
    %v2758 = vsub.f32 %v2756, %v2757
    %v2759 = vand.u32 %v2758, 4294901760
    %2760 = vmatmul.mubr.f32.gmra.mxu0 %v2759
    %v2761 = vpop.f32.mrf.mxu0
    %v2762 = vadd.f32 0.0, %v2761
    %v2763 = vpop.f32.mrf.mxu0
    %2764 = vmatprep.mubr.f32.mxu0 0.0
    %v2765 = vand.u32 %v2542, 4294901760
    %v2766 = vsub.f32 %v2542, %v2765
    %v2767 = vand.u32 %v2766, 4294901760
    %v2768 = vsub.f32 %v2766, %v2767
    %v2769 = vand.u32 %v2768, 4294901760
    %2770 = vmatmul.mubr.f32.gmra.mxu0 %v2769
    %v2771 = vpop.f32.mrf.mxu0
    %v2772 = vadd.f32 0.0, %v2771
    %v2773 = vpop.f32.mrf.mxu0
    %2774 = vmatprep.mubr.f32.mxu0 0.0
    %v2775 = vand.u32 %v2543, 4294901760
    %v2776 = vsub.f32 %v2543, %v2775
    %v2777 = vand.u32 %v2776, 4294901760
    %v2778 = vsub.f32 %v2776, %v2777
    %v2779 = vand.u32 %v2778, 4294901760
    %2780 = vmatmul.mubr.f32.gmra.mxu0 %v2779
    %v2781 = vpop.f32.mrf.mxu0
    %v2782 = vadd.f32 0.0, %v2781
    %v2783 = vpop.f32.mrf.mxu0
    %2784 = vdwg.mxu0
    %2785 = vmatprep.subr.mxu0 0.0
    %v2786 = vand.u32 %v64, 4294901760
    %v2787 = vsub.f32 %v64, %v2786
    %v2788 = vand.u32 %v2787, 4294901760
    %v2789 = vsub.f32 %v2787, %v2788
    %v2790 = vand.u32 %v2789, 4294901760
    %2791 = vmatpush1.msra.mxu0 %v2790
    %2792 = vmatprep.subr.mxu0 0.0
    %v2793 = vand.u32 %v63, 4294901760
    %v2794 = vsub.f32 %v63, %v2793
    %v2795 = vand.u32 %v2794, 4294901760
    %v2796 = vsub.f32 %v2794, %v2795
    %v2797 = vand.u32 %v2796, 4294901760
    %2798 = vmatpush1.msra.mxu0 %v2797
    %2799 = vmatprep.subr.mxu0 0.0
    %v2800 = vand.u32 %v62, 4294901760
    %v2801 = vsub.f32 %v62, %v2800
    %v2802 = vand.u32 %v2801, 4294901760
    %v2803 = vsub.f32 %v2801, %v2802
    %v2804 = vand.u32 %v2803, 4294901760
    %2805 = vmatpush1.msra.mxu0 %v2804
    %2806 = vmatprep.subr.mxu0 0.0
    %v2807 = vand.u32 %v61, 4294901760
    %v2808 = vsub.f32 %v61, %v2807
    %v2809 = vand.u32 %v2808, 4294901760
    %v2810 = vsub.f32 %v2808, %v2809
    %v2811 = vand.u32 %v2810, 4294901760
    %2812 = vmatpush1.msra.mxu0 %v2811
    %2813 = vmatprep.subr.mxu0 0.0
    %v2814 = vand.u32 %v60, 4294901760
    %v2815 = vsub.f32 %v60, %v2814
    %v2816 = vand.u32 %v2815, 4294901760
    %v2817 = vsub.f32 %v2815, %v2816
    %v2818 = vand.u32 %v2817, 4294901760
    %2819 = vmatpush1.msra.mxu0 %v2818
    %2820 = vmatprep.subr.mxu0 0.0
    %v2821 = vand.u32 %v59, 4294901760
    %v2822 = vsub.f32 %v59, %v2821
    %v2823 = vand.u32 %v2822, 4294901760
    %v2824 = vsub.f32 %v2822, %v2823
    %v2825 = vand.u32 %v2824, 4294901760
    %2826 = vmatpush1.msra.mxu0 %v2825
    %2827 = vmatprep.subr.mxu0 0.0
    %v2828 = vand.u32 %v58, 4294901760
    %v2829 = vsub.f32 %v58, %v2828
    %v2830 = vand.u32 %v2829, 4294901760
    %v2831 = vsub.f32 %v2829, %v2830
    %v2832 = vand.u32 %v2831, 4294901760
    %2833 = vmatpush1.msra.mxu0 %v2832
    %2834 = vmatprep.subr.mxu0 0.0
    %v2835 = vand.u32 %v57, 4294901760
    %v2836 = vsub.f32 %v57, %v2835
    %v2837 = vand.u32 %v2836, 4294901760
    %v2838 = vsub.f32 %v2836, %v2837
    %v2839 = vand.u32 %v2838, 4294901760
    %2840 = vmatpush1.msra.mxu0 %v2839
    %2841 = vmatprep.subr.mxu0 0.0
    %v2842 = vand.u32 %v56, 4294901760
    %v2843 = vsub.f32 %v56, %v2842
    %v2844 = vand.u32 %v2843, 4294901760
    %v2845 = vsub.f32 %v2843, %v2844
    %v2846 = vand.u32 %v2845, 4294901760
    %2847 = vmatpush1.msra.mxu0 %v2846
    %2848 = vmatprep.subr.mxu0 0.0
    %v2849 = vand.u32 %v55, 4294901760
    %v2850 = vsub.f32 %v55, %v2849
    %v2851 = vand.u32 %v2850, 4294901760
    %v2852 = vsub.f32 %v2850, %v2851
    %v2853 = vand.u32 %v2852, 4294901760
    %2854 = vmatpush1.msra.mxu0 %v2853
    %2855 = vmatprep.subr.mxu0 0.0
    %v2856 = vand.u32 %v54, 4294901760
    %v2857 = vsub.f32 %v54, %v2856
    %v2858 = vand.u32 %v2857, 4294901760
    %v2859 = vsub.f32 %v2857, %v2858
    %v2860 = vand.u32 %v2859, 4294901760
    %2861 = vmatpush1.msra.mxu0 %v2860
    %2862 = vmatprep.subr.mxu0 0.0
    %v2863 = vand.u32 %v53, 4294901760
    %v2864 = vsub.f32 %v53, %v2863
    %v2865 = vand.u32 %v2864, 4294901760
    %v2866 = vsub.f32 %v2864, %v2865
    %v2867 = vand.u32 %v2866, 4294901760
    %2868 = vmatpush1.msra.mxu0 %v2867
    %2869 = vmatprep.subr.mxu0 0.0
    %v2870 = vand.u32 %v52, 4294901760
    %v2871 = vsub.f32 %v52, %v2870
    %v2872 = vand.u32 %v2871, 4294901760
    %v2873 = vsub.f32 %v2871, %v2872
    %v2874 = vand.u32 %v2873, 4294901760
    %2875 = vmatpush1.msra.mxu0 %v2874
    %2876 = vmatprep.subr.mxu0 0.0
    %v2877 = vand.u32 %v51, 4294901760
    %v2878 = vsub.f32 %v51, %v2877
    %v2879 = vand.u32 %v2878, 4294901760
    %v2880 = vsub.f32 %v2878, %v2879
    %v2881 = vand.u32 %v2880, 4294901760
    %2882 = vmatpush1.msra.mxu0 %v2881
    %2883 = vmatprep.subr.mxu0 0.0
    %v2884 = vand.u32 %v50, 4294901760
    %v2885 = vsub.f32 %v50, %v2884
    %v2886 = vand.u32 %v2885, 4294901760
    %v2887 = vsub.f32 %v2885, %v2886
    %v2888 = vand.u32 %v2887, 4294901760
    %2889 = vmatpush1.msra.mxu0 %v2888
    %2890 = vmatprep.subr.mxu0 0.0
    %v2891 = vand.u32 %v49, 4294901760
    %v2892 = vsub.f32 %v49, %v2891
    %v2893 = vand.u32 %v2892, 4294901760
    %v2894 = vsub.f32 %v2892, %v2893
    %v2895 = vand.u32 %v2894, 4294901760
    %2896 = vmatpush1.msra.mxu0 %v2895
    %2897 = vmatprep.subr.mxu0 0.0
    %2898 = vmatpush2.msra.mxu0 0.0
    %2899 = vmatprep.subr.mxu0 0.0
    %2900 = vmatpush2.msra.mxu0 0.0
    %2901 = vmatprep.subr.mxu0 0.0
    %2902 = vmatpush2.msra.mxu0 0.0
    %2903 = vmatprep.subr.mxu0 0.0
    %2904 = vmatpush2.msra.mxu0 0.0
    %2905 = vmatprep.subr.mxu0 0.0
    %2906 = vmatpush2.msra.mxu0 0.0
    %2907 = vmatprep.subr.mxu0 0.0
    %2908 = vmatpush2.msra.mxu0 0.0
    %2909 = vmatprep.subr.mxu0 0.0
    %2910 = vmatpush2.msra.mxu0 0.0
    %2911 = vmatprep.subr.mxu0 0.0
    %2912 = vmatpush2.msra.mxu0 0.0
    %2913 = vmatprep.subr.mxu0 0.0
    %2914 = vmatpush2.msra.mxu0 0.0
    %2915 = vmatprep.subr.mxu0 0.0
    %2916 = vmatpush2.msra.mxu0 0.0
    %2917 = vmatprep.subr.mxu0 0.0
    %2918 = vmatpush2.msra.mxu0 0.0
    %2919 = vmatprep.subr.mxu0 0.0
    %2920 = vmatpush2.msra.mxu0 0.0
    %2921 = vmatprep.subr.mxu0 0.0
    %2922 = vmatpush2.msra.mxu0 0.0
    %2923 = vmatprep.subr.mxu0 0.0
    %2924 = vmatpush2.msra.mxu0 0.0
    %2925 = vmatprep.subr.mxu0 0.0
    %2926 = vmatpush2.msra.mxu0 0.0
    %2927 = vmatprep.subr.mxu0 0.0
    %2928 = vmatpush2.msra.mxu0 0.0
    %2929 = vmatprep.mubr.f32.mxu0 0.0
    %v2930 = vand.u32 %v2528, 4294901760
    %2931 = vmatmul.mubr.f32.gmra.mxu0 %v2930
    %v2932 = vpop.f32.mrf.mxu0
    %v2933 = vadd.f32 %v2632, %v2932
    %v2934 = vpop.f32.mrf.mxu0
    %2935 = vmatprep.mubr.f32.mxu0 0.0
    %v2936 = vand.u32 %v2529, 4294901760
    %2937 = vmatmul.mubr.f32.gmra.mxu0 %v2936
    %v2938 = vpop.f32.mrf.mxu0
    %v2939 = vadd.f32 %v2642, %v2938
    %v2940 = vpop.f32.mrf.mxu0
    %2941 = vmatprep.mubr.f32.mxu0 0.0
    %v2942 = vand.u32 %v2530, 4294901760
    %2943 = vmatmul.mubr.f32.gmra.mxu0 %v2942
    %v2944 = vpop.f32.mrf.mxu0
    %v2945 = vadd.f32 %v2652, %v2944
    %v2946 = vpop.f32.mrf.mxu0
    %2947 = vmatprep.mubr.f32.mxu0 0.0
    %v2948 = vand.u32 %v2531, 4294901760
    %2949 = vmatmul.mubr.f32.gmra.mxu0 %v2948
    %v2950 = vpop.f32.mrf.mxu0
    %v2951 = vadd.f32 %v2662, %v2950
    %v2952 = vpop.f32.mrf.mxu0
    %2953 = vmatprep.mubr.f32.mxu0 0.0
    %v2954 = vand.u32 %v2532, 4294901760
    %2955 = vmatmul.mubr.f32.gmra.mxu0 %v2954
    %v2956 = vpop.f32.mrf.mxu0
    %v2957 = vadd.f32 %v2672, %v2956
    %v2958 = vpop.f32.mrf.mxu0
    %2959 = vmatprep.mubr.f32.mxu0 0.0
    %v2960 = vand.u32 %v2533, 4294901760
    %2961 = vmatmul.mubr.f32.gmra.mxu0 %v2960
    %v2962 = vpop.f32.mrf.mxu0
    %v2963 = vadd.f32 %v2682, %v2962
    %v2964 = vpop.f32.mrf.mxu0
    %2965 = vmatprep.mubr.f32.mxu0 0.0
    %v2966 = vand.u32 %v2534, 4294901760
    %2967 = vmatmul.mubr.f32.gmra.mxu0 %v2966
    %v2968 = vpop.f32.mrf.mxu0
    %v2969 = vadd.f32 %v2692, %v2968
    %v2970 = vpop.f32.mrf.mxu0
    %2971 = vmatprep.mubr.f32.mxu0 0.0
    %v2972 = vand.u32 %v2535, 4294901760
    %2973 = vmatmul.mubr.f32.gmra.mxu0 %v2972
    %v2974 = vpop.f32.mrf.mxu0
    %v2975 = vadd.f32 %v2702, %v2974
    %v2976 = vpop.f32.mrf.mxu0
    %2977 = vmatprep.mubr.f32.mxu0 0.0
    %v2978 = vand.u32 %v2536, 4294901760
    %2979 = vmatmul.mubr.f32.gmra.mxu0 %v2978
    %v2980 = vpop.f32.mrf.mxu0
    %v2981 = vadd.f32 %v2712, %v2980
    %v2982 = vpop.f32.mrf.mxu0
    %2983 = vmatprep.mubr.f32.mxu0 0.0
    %v2984 = vand.u32 %v2537, 4294901760
    %2985 = vmatmul.mubr.f32.gmra.mxu0 %v2984
    %v2986 = vpop.f32.mrf.mxu0
    %v2987 = vadd.f32 %v2722, %v2986
    %v2988 = vpop.f32.mrf.mxu0
    %2989 = vmatprep.mubr.f32.mxu0 0.0
    %v2990 = vand.u32 %v2538, 4294901760
    %2991 = vmatmul.mubr.f32.gmra.mxu0 %v2990
    %v2992 = vpop.f32.mrf.mxu0
    %v2993 = vadd.f32 %v2732, %v2992
    %v2994 = vpop.f32.mrf.mxu0
    %2995 = vmatprep.mubr.f32.mxu0 0.0
    %v2996 = vand.u32 %v2539, 4294901760
    %2997 = vmatmul.mubr.f32.gmra.mxu0 %v2996
    %v2998 = vpop.f32.mrf.mxu0
    %v2999 = vadd.f32 %v2742, %v2998
    %v3000 = vpop.f32.mrf.mxu0
    %3001 = vmatprep.mubr.f32.mxu0 0.0
    %v3002 = vand.u32 %v2540, 4294901760
    %3003 = vmatmul.mubr.f32.gmra.mxu0 %v3002
    %v3004 = vpop.f32.mrf.mxu0
    %v3005 = vadd.f32 %v2752, %v3004
    %v3006 = vpop.f32.mrf.mxu0
    %3007 = vmatprep.mubr.f32.mxu0 0.0
    %v3008 = vand.u32 %v2541, 4294901760
    %3009 = vmatmul.mubr.f32.gmra.mxu0 %v3008
    %v3010 = vpop.f32.mrf.mxu0
    %v3011 = vadd.f32 %v2762, %v3010
    %v3012 = vpop.f32.mrf.mxu0
    %3013 = vmatprep.mubr.f32.mxu0 0.0
    %v3014 = vand.u32 %v2542, 4294901760
    %3015 = vmatmul.mubr.f32.gmra.mxu0 %v3014
    %v3016 = vpop.f32.mrf.mxu0
    %v3017 = vadd.f32 %v2772, %v3016
    %v3018 = vpop.f32.mrf.mxu0
    %3019 = vmatprep.mubr.f32.mxu0 0.0
    %v3020 = vand.u32 %v2543, 4294901760
    %3021 = vmatmul.mubr.f32.gmra.mxu0 %v3020
    %v3022 = vpop.f32.mrf.mxu0
    %v3023 = vadd.f32 %v2782, %v3022
    %v3024 = vpop.f32.mrf.mxu0
    %3025 = vdwg.mxu0
    %3026 = vmatprep.subr.mxu0 0.0
    %v3027 = vand.u32 %v64, 4294901760
    %v3028 = vsub.f32 %v64, %v3027
    %3029 = vmatpush1.msra.mxu0 %v3028
    %3030 = vmatprep.subr.mxu0 0.0
    %v3031 = vand.u32 %v63, 4294901760
    %v3032 = vsub.f32 %v63, %v3031
    %3033 = vmatpush1.msra.mxu0 %v3032
    %3034 = vmatprep.subr.mxu0 0.0
    %v3035 = vand.u32 %v62, 4294901760
    %v3036 = vsub.f32 %v62, %v3035
    %3037 = vmatpush1.msra.mxu0 %v3036
    %3038 = vmatprep.subr.mxu0 0.0
    %v3039 = vand.u32 %v61, 4294901760
    %v3040 = vsub.f32 %v61, %v3039
    %3041 = vmatpush1.msra.mxu0 %v3040
    %3042 = vmatprep.subr.mxu0 0.0
    %v3043 = vand.u32 %v60, 4294901760
    %v3044 = vsub.f32 %v60, %v3043
    %3045 = vmatpush1.msra.mxu0 %v3044
    %3046 = vmatprep.subr.mxu0 0.0
    %v3047 = vand.u32 %v59, 4294901760
    %v3048 = vsub.f32 %v59, %v3047
    %3049 = vmatpush1.msra.mxu0 %v3048
    %3050 = vmatprep.subr.mxu0 0.0
    %v3051 = vand.u32 %v58, 4294901760
    %v3052 = vsub.f32 %v58, %v3051
    %3053 = vmatpush1.msra.mxu0 %v3052
    %3054 = vmatprep.subr.mxu0 0.0
    %v3055 = vand.u32 %v57, 4294901760
    %v3056 = vsub.f32 %v57, %v3055
    %3057 = vmatpush1.msra.mxu0 %v3056
    %3058 = vmatprep.subr.mxu0 0.0
    %v3059 = vand.u32 %v56, 4294901760
    %v3060 = vsub.f32 %v56, %v3059
    %3061 = vmatpush1.msra.mxu0 %v3060
    %3062 = vmatprep.subr.mxu0 0.0
    %v3063 = vand.u32 %v55, 4294901760
    %v3064 = vsub.f32 %v55, %v3063
    %3065 = vmatpush1.msra.mxu0 %v3064
    %3066 = vmatprep.subr.mxu0 0.0
    %v3067 = vand.u32 %v54, 4294901760
    %v3068 = vsub.f32 %v54, %v3067
    %3069 = vmatpush1.msra.mxu0 %v3068
    %3070 = vmatprep.subr.mxu0 0.0
    %v3071 = vand.u32 %v53, 4294901760
    %v3072 = vsub.f32 %v53, %v3071
    %3073 = vmatpush1.msra.mxu0 %v3072
    %3074 = vmatprep.subr.mxu0 0.0
    %v3075 = vand.u32 %v52, 4294901760
    %v3076 = vsub.f32 %v52, %v3075
    %3077 = vmatpush1.msra.mxu0 %v3076
    %3078 = vmatprep.subr.mxu0 0.0
    %v3079 = vand.u32 %v51, 4294901760
    %v3080 = vsub.f32 %v51, %v3079
    %3081 = vmatpush1.msra.mxu0 %v3080
    %3082 = vmatprep.subr.mxu0 0.0
    %v3083 = vand.u32 %v50, 4294901760
    %v3084 = vsub.f32 %v50, %v3083
    %3085 = vmatpush1.msra.mxu0 %v3084
    %3086 = vmatprep.subr.mxu0 0.0
    %v3087 = vand.u32 %v49, 4294901760
    %v3088 = vsub.f32 %v49, %v3087
    %3089 = vmatpush1.msra.mxu0 %v3088
    %3090 = vmatprep.subr.mxu0 0.0
    %3091 = vmatpush2.msra.mxu0 0.0
    %3092 = vmatprep.subr.mxu0 0.0
    %3093 = vmatpush2.msra.mxu0 0.0
    %3094 = vmatprep.subr.mxu0 0.0
    %3095 = vmatpush2.msra.mxu0 0.0
    %3096 = vmatprep.subr.mxu0 0.0
    %3097 = vmatpush2.msra.mxu0 0.0
    %3098 = vmatprep.subr.mxu0 0.0
    %3099 = vmatpush2.msra.mxu0 0.0
    %3100 = vmatprep.subr.mxu0 0.0
    %3101 = vmatpush2.msra.mxu0 0.0
    %3102 = vmatprep.subr.mxu0 0.0
    %3103 = vmatpush2.msra.mxu0 0.0
    %3104 = vmatprep.subr.mxu0 0.0
    %3105 = vmatpush2.msra.mxu0 0.0
    %3106 = vmatprep.subr.mxu0 0.0
    %3107 = vmatpush2.msra.mxu0 0.0
    %3108 = vmatprep.subr.mxu0 0.0
    %3109 = vmatpush2.msra.mxu0 0.0
    %3110 = vmatprep.subr.mxu0 0.0
    %3111 = vmatpush2.msra.mxu0 0.0
    %3112 = vmatprep.subr.mxu0 0.0
    %3113 = vmatpush2.msra.mxu0 0.0
    %3114 = vmatprep.subr.mxu0 0.0
    %3115 = vmatpush2.msra.mxu0 0.0
    %3116 = vmatprep.subr.mxu0 0.0
    %3117 = vmatpush2.msra.mxu0 0.0
    %3118 = vmatprep.subr.mxu0 0.0
    %3119 = vmatpush2.msra.mxu0 0.0
    %3120 = vmatprep.subr.mxu0 0.0
    %3121 = vmatpush2.msra.mxu0 0.0
    %3122 = vmatprep.mubr.f32.mxu0 0.0
    %v3123 = vand.u32 %v2528, 4294901760
    %v3124 = vsub.f32 %v2528, %v3123
    %3125 = vmatmul.mubr.f32.gmra.mxu0 %v3124
    %v3126 = vpop.f32.mrf.mxu0
    %v3127 = vadd.f32 %v2933, %v3126
    %v3128 = vpop.f32.mrf.mxu0
    %3129 = vmatprep.mubr.f32.mxu0 0.0
    %v3130 = vand.u32 %v2529, 4294901760
    %v3131 = vsub.f32 %v2529, %v3130
    %3132 = vmatmul.mubr.f32.gmra.mxu0 %v3131
    %v3133 = vpop.f32.mrf.mxu0
    %v3134 = vadd.f32 %v2939, %v3133
    %v3135 = vpop.f32.mrf.mxu0
    %3136 = vmatprep.mubr.f32.mxu0 0.0
    %v3137 = vand.u32 %v2530, 4294901760
    %v3138 = vsub.f32 %v2530, %v3137
    %3139 = vmatmul.mubr.f32.gmra.mxu0 %v3138
    %v3140 = vpop.f32.mrf.mxu0
    %v3141 = vadd.f32 %v2945, %v3140
    %v3142 = vpop.f32.mrf.mxu0
    %3143 = vmatprep.mubr.f32.mxu0 0.0
    %v3144 = vand.u32 %v2531, 4294901760
    %v3145 = vsub.f32 %v2531, %v3144
    %3146 = vmatmul.mubr.f32.gmra.mxu0 %v3145
    %v3147 = vpop.f32.mrf.mxu0
    %v3148 = vadd.f32 %v2951, %v3147
    %v3149 = vpop.f32.mrf.mxu0
    %3150 = vmatprep.mubr.f32.mxu0 0.0
    %v3151 = vand.u32 %v2532, 4294901760
    %v3152 = vsub.f32 %v2532, %v3151
    %3153 = vmatmul.mubr.f32.gmra.mxu0 %v3152
    %v3154 = vpop.f32.mrf.mxu0
    %v3155 = vadd.f32 %v2957, %v3154
    %v3156 = vpop.f32.mrf.mxu0
    %3157 = vmatprep.mubr.f32.mxu0 0.0
    %v3158 = vand.u32 %v2533, 4294901760
    %v3159 = vsub.f32 %v2533, %v3158
    %3160 = vmatmul.mubr.f32.gmra.mxu0 %v3159
    %v3161 = vpop.f32.mrf.mxu0
    %v3162 = vadd.f32 %v2963, %v3161
    %v3163 = vpop.f32.mrf.mxu0
    %3164 = vmatprep.mubr.f32.mxu0 0.0
    %v3165 = vand.u32 %v2534, 4294901760
    %v3166 = vsub.f32 %v2534, %v3165
    %3167 = vmatmul.mubr.f32.gmra.mxu0 %v3166
    %v3168 = vpop.f32.mrf.mxu0
    %v3169 = vadd.f32 %v2969, %v3168
    %v3170 = vpop.f32.mrf.mxu0
    %3171 = vmatprep.mubr.f32.mxu0 0.0
    %v3172 = vand.u32 %v2535, 4294901760
    %v3173 = vsub.f32 %v2535, %v3172
    %3174 = vmatmul.mubr.f32.gmra.mxu0 %v3173
    %v3175 = vpop.f32.mrf.mxu0
    %v3176 = vadd.f32 %v2975, %v3175
    %v3177 = vpop.f32.mrf.mxu0
    %3178 = vmatprep.mubr.f32.mxu0 0.0
    %v3179 = vand.u32 %v2536, 4294901760
    %v3180 = vsub.f32 %v2536, %v3179
    %3181 = vmatmul.mubr.f32.gmra.mxu0 %v3180
    %v3182 = vpop.f32.mrf.mxu0
    %v3183 = vadd.f32 %v2981, %v3182
    %v3184 = vpop.f32.mrf.mxu0
    %3185 = vmatprep.mubr.f32.mxu0 0.0
    %v3186 = vand.u32 %v2537, 4294901760
    %v3187 = vsub.f32 %v2537, %v3186
    %3188 = vmatmul.mubr.f32.gmra.mxu0 %v3187
    %v3189 = vpop.f32.mrf.mxu0
    %v3190 = vadd.f32 %v2987, %v3189
    %v3191 = vpop.f32.mrf.mxu0
    %3192 = vmatprep.mubr.f32.mxu0 0.0
    %v3193 = vand.u32 %v2538, 4294901760
    %v3194 = vsub.f32 %v2538, %v3193
    %3195 = vmatmul.mubr.f32.gmra.mxu0 %v3194
    %v3196 = vpop.f32.mrf.mxu0
    %v3197 = vadd.f32 %v2993, %v3196
    %v3198 = vpop.f32.mrf.mxu0
    %3199 = vmatprep.mubr.f32.mxu0 0.0
    %v3200 = vand.u32 %v2539, 4294901760
    %v3201 = vsub.f32 %v2539, %v3200
    %3202 = vmatmul.mubr.f32.gmra.mxu0 %v3201
    %v3203 = vpop.f32.mrf.mxu0
    %v3204 = vadd.f32 %v2999, %v3203
    %v3205 = vpop.f32.mrf.mxu0
    %3206 = vmatprep.mubr.f32.mxu0 0.0
    %v3207 = vand.u32 %v2540, 4294901760
    %v3208 = vsub.f32 %v2540, %v3207
    %3209 = vmatmul.mubr.f32.gmra.mxu0 %v3208
    %v3210 = vpop.f32.mrf.mxu0
    %v3211 = vadd.f32 %v3005, %v3210
    %v3212 = vpop.f32.mrf.mxu0
    %3213 = vmatprep.mubr.f32.mxu0 0.0
    %v3214 = vand.u32 %v2541, 4294901760
    %v3215 = vsub.f32 %v2541, %v3214
    %3216 = vmatmul.mubr.f32.gmra.mxu0 %v3215
    %v3217 = vpop.f32.mrf.mxu0
    %v3218 = vadd.f32 %v3011, %v3217
    %v3219 = vpop.f32.mrf.mxu0
    %3220 = vmatprep.mubr.f32.mxu0 0.0
    %v3221 = vand.u32 %v2542, 4294901760
    %v3222 = vsub.f32 %v2542, %v3221
    %3223 = vmatmul.mubr.f32.gmra.mxu0 %v3222
    %v3224 = vpop.f32.mrf.mxu0
    %v3225 = vadd.f32 %v3017, %v3224
    %v3226 = vpop.f32.mrf.mxu0
    %3227 = vmatprep.mubr.f32.mxu0 0.0
    %v3228 = vand.u32 %v2543, 4294901760
    %v3229 = vsub.f32 %v2543, %v3228
    %3230 = vmatmul.mubr.f32.gmra.mxu0 %v3229
    %v3231 = vpop.f32.mrf.mxu0
    %v3232 = vadd.f32 %v3023, %v3231
    %v3233 = vpop.f32.mrf.mxu0
    %3234 = vdwg.mxu0
    %3235 = vmatprep.subr.mxu0 0.0
    %v3236 = vand.u32 %v64, 4294901760
    %3237 = vmatpush1.msra.mxu0 %v3236
    %3238 = vmatprep.subr.mxu0 0.0
    %v3239 = vand.u32 %v63, 4294901760
    %3240 = vmatpush1.msra.mxu0 %v3239
    %3241 = vmatprep.subr.mxu0 0.0
    %v3242 = vand.u32 %v62, 4294901760
    %3243 = vmatpush1.msra.mxu0 %v3242
    %3244 = vmatprep.subr.mxu0 0.0
    %v3245 = vand.u32 %v61, 4294901760
    %3246 = vmatpush1.msra.mxu0 %v3245
    %3247 = vmatprep.subr.mxu0 0.0
    %v3248 = vand.u32 %v60, 4294901760
    %3249 = vmatpush1.msra.mxu0 %v3248
    %3250 = vmatprep.subr.mxu0 0.0
    %v3251 = vand.u32 %v59, 4294901760
    %3252 = vmatpush1.msra.mxu0 %v3251
    %3253 = vmatprep.subr.mxu0 0.0
    %v3254 = vand.u32 %v58, 4294901760
    %3255 = vmatpush1.msra.mxu0 %v3254
    %3256 = vmatprep.subr.mxu0 0.0
    %v3257 = vand.u32 %v57, 4294901760
    %3258 = vmatpush1.msra.mxu0 %v3257
    %3259 = vmatprep.subr.mxu0 0.0
    %v3260 = vand.u32 %v56, 4294901760
    %3261 = vmatpush1.msra.mxu0 %v3260
    %3262 = vmatprep.subr.mxu0 0.0
    %v3263 = vand.u32 %v55, 4294901760
    %3264 = vmatpush1.msra.mxu0 %v3263
    %3265 = vmatprep.subr.mxu0 0.0
    %v3266 = vand.u32 %v54, 4294901760
    %3267 = vmatpush1.msra.mxu0 %v3266
    %3268 = vmatprep.subr.mxu0 0.0
    %v3269 = vand.u32 %v53, 4294901760
    %3270 = vmatpush1.msra.mxu0 %v3269
    %3271 = vmatprep.subr.mxu0 0.0
    %v3272 = vand.u32 %v52, 4294901760
    %3273 = vmatpush1.msra.mxu0 %v3272
    %3274 = vmatprep.subr.mxu0 0.0
    %v3275 = vand.u32 %v51, 4294901760
    %3276 = vmatpush1.msra.mxu0 %v3275
    %3277 = vmatprep.subr.mxu0 0.0
    %v3278 = vand.u32 %v50, 4294901760
    %3279 = vmatpush1.msra.mxu0 %v3278
    %3280 = vmatprep.subr.mxu0 0.0
    %v3281 = vand.u32 %v49, 4294901760
    %3282 = vmatpush1.msra.mxu0 %v3281
    %3283 = vmatprep.subr.mxu0 0.0
    %3284 = vmatpush2.msra.mxu0 0.0
    %3285 = vmatprep.subr.mxu0 0.0
    %3286 = vmatpush2.msra.mxu0 0.0
    %3287 = vmatprep.subr.mxu0 0.0
    %3288 = vmatpush2.msra.mxu0 0.0
    %3289 = vmatprep.subr.mxu0 0.0
    %3290 = vmatpush2.msra.mxu0 0.0
    %3291 = vmatprep.subr.mxu0 0.0
    %3292 = vmatpush2.msra.mxu0 0.0
    %3293 = vmatprep.subr.mxu0 0.0
    %3294 = vmatpush2.msra.mxu0 0.0
    %3295 = vmatprep.subr.mxu0 0.0
    %3296 = vmatpush2.msra.mxu0 0.0
    %3297 = vmatprep.subr.mxu0 0.0
    %3298 = vmatpush2.msra.mxu0 0.0
    %3299 = vmatprep.subr.mxu0 0.0
    %3300 = vmatpush2.msra.mxu0 0.0
    %3301 = vmatprep.subr.mxu0 0.0
    %3302 = vmatpush2.msra.mxu0 0.0
    %3303 = vmatprep.subr.mxu0 0.0
    %3304 = vmatpush2.msra.mxu0 0.0
    %3305 = vmatprep.subr.mxu0 0.0
    %3306 = vmatpush2.msra.mxu0 0.0
    %3307 = vmatprep.subr.mxu0 0.0
    %3308 = vmatpush2.msra.mxu0 0.0
    %3309 = vmatprep.subr.mxu0 0.0
    %3310 = vmatpush2.msra.mxu0 0.0
    %3311 = vmatprep.subr.mxu0 0.0
    %3312 = vmatpush2.msra.mxu0 0.0
    %3313 = vmatprep.subr.mxu0 0.0
    %3314 = vmatpush2.msra.mxu0 0.0
    %3315 = vmatprep.mubr.f32.mxu0 0.0
    %v3316 = vand.u32 %v2528, 4294901760
    %v3317 = vsub.f32 %v2528, %v3316
    %v3318 = vand.u32 %v3317, 4294901760
    %3319 = vmatmul.mubr.f32.gmra.mxu0 %v3318
    %v3320 = vpop.f32.mrf.mxu0
    %v3321 = vadd.f32 %v3127, %v3320
    %v3322 = vpop.f32.mrf.mxu0
    %3323 = vmatprep.mubr.f32.mxu0 0.0
    %v3324 = vand.u32 %v2529, 4294901760
    %v3325 = vsub.f32 %v2529, %v3324
    %v3326 = vand.u32 %v3325, 4294901760
    %3327 = vmatmul.mubr.f32.gmra.mxu0 %v3326
    %v3328 = vpop.f32.mrf.mxu0
    %v3329 = vadd.f32 %v3134, %v3328
    %v3330 = vpop.f32.mrf.mxu0
    %3331 = vmatprep.mubr.f32.mxu0 0.0
    %v3332 = vand.u32 %v2530, 4294901760
    %v3333 = vsub.f32 %v2530, %v3332
    %v3334 = vand.u32 %v3333, 4294901760
    %3335 = vmatmul.mubr.f32.gmra.mxu0 %v3334
    %v3336 = vpop.f32.mrf.mxu0
    %v3337 = vadd.f32 %v3141, %v3336
    %v3338 = vpop.f32.mrf.mxu0
    %3339 = vmatprep.mubr.f32.mxu0 0.0
    %v3340 = vand.u32 %v2531, 4294901760
    %v3341 = vsub.f32 %v2531, %v3340
    %v3342 = vand.u32 %v3341, 4294901760
    %3343 = vmatmul.mubr.f32.gmra.mxu0 %v3342
    %v3344 = vpop.f32.mrf.mxu0
    %v3345 = vadd.f32 %v3148, %v3344
    %v3346 = vpop.f32.mrf.mxu0
    %3347 = vmatprep.mubr.f32.mxu0 0.0
    %v3348 = vand.u32 %v2532, 4294901760
    %v3349 = vsub.f32 %v2532, %v3348
    %v3350 = vand.u32 %v3349, 4294901760
    %3351 = vmatmul.mubr.f32.gmra.mxu0 %v3350
    %v3352 = vpop.f32.mrf.mxu0
    %v3353 = vadd.f32 %v3155, %v3352
    %v3354 = vpop.f32.mrf.mxu0
    %3355 = vmatprep.mubr.f32.mxu0 0.0
    %v3356 = vand.u32 %v2533, 4294901760
    %v3357 = vsub.f32 %v2533, %v3356
    %v3358 = vand.u32 %v3357, 4294901760
    %3359 = vmatmul.mubr.f32.gmra.mxu0 %v3358
    %v3360 = vpop.f32.mrf.mxu0
    %v3361 = vadd.f32 %v3162, %v3360
    %v3362 = vpop.f32.mrf.mxu0
    %3363 = vmatprep.mubr.f32.mxu0 0.0
    %v3364 = vand.u32 %v2534, 4294901760
    %v3365 = vsub.f32 %v2534, %v3364
    %v3366 = vand.u32 %v3365, 4294901760
    %3367 = vmatmul.mubr.f32.gmra.mxu0 %v3366
    %v3368 = vpop.f32.mrf.mxu0
    %v3369 = vadd.f32 %v3169, %v3368
    %v3370 = vpop.f32.mrf.mxu0
    %3371 = vmatprep.mubr.f32.mxu0 0.0
    %v3372 = vand.u32 %v2535, 4294901760
    %v3373 = vsub.f32 %v2535, %v3372
    %v3374 = vand.u32 %v3373, 4294901760
    %3375 = vmatmul.mubr.f32.gmra.mxu0 %v3374
    %v3376 = vpop.f32.mrf.mxu0
    %v3377 = vadd.f32 %v3176, %v3376
    %v3378 = vpop.f32.mrf.mxu0
    %3379 = vmatprep.mubr.f32.mxu0 0.0
    %v3380 = vand.u32 %v2536, 4294901760
    %v3381 = vsub.f32 %v2536, %v3380
    %v3382 = vand.u32 %v3381, 4294901760
    %3383 = vmatmul.mubr.f32.gmra.mxu0 %v3382
    %v3384 = vpop.f32.mrf.mxu0
    %v3385 = vadd.f32 %v3183, %v3384
    %v3386 = vpop.f32.mrf.mxu0
    %3387 = vmatprep.mubr.f32.mxu0 0.0
    %v3388 = vand.u32 %v2537, 4294901760
    %v3389 = vsub.f32 %v2537, %v3388
    %v3390 = vand.u32 %v3389, 4294901760
    %3391 = vmatmul.mubr.f32.gmra.mxu0 %v3390
    %v3392 = vpop.f32.mrf.mxu0
    %v3393 = vadd.f32 %v3190, %v3392
    %v3394 = vpop.f32.mrf.mxu0
    %3395 = vmatprep.mubr.f32.mxu0 0.0
    %v3396 = vand.u32 %v2538, 4294901760
    %v3397 = vsub.f32 %v2538, %v3396
    %v3398 = vand.u32 %v3397, 4294901760
    %3399 = vmatmul.mubr.f32.gmra.mxu0 %v3398
    %v3400 = vpop.f32.mrf.mxu0
    %v3401 = vadd.f32 %v3197, %v3400
    %v3402 = vpop.f32.mrf.mxu0
    %3403 = vmatprep.mubr.f32.mxu0 0.0
    %v3404 = vand.u32 %v2539, 4294901760
    %v3405 = vsub.f32 %v2539, %v3404
    %v3406 = vand.u32 %v3405, 4294901760
    %3407 = vmatmul.mubr.f32.gmra.mxu0 %v3406
    %v3408 = vpop.f32.mrf.mxu0
    %v3409 = vadd.f32 %v3204, %v3408
    %v3410 = vpop.f32.mrf.mxu0
    %3411 = vmatprep.mubr.f32.mxu0 0.0
    %v3412 = vand.u32 %v2540, 4294901760
    %v3413 = vsub.f32 %v2540, %v3412
    %v3414 = vand.u32 %v3413, 4294901760
    %3415 = vmatmul.mubr.f32.gmra.mxu0 %v3414
    %v3416 = vpop.f32.mrf.mxu0
    %v3417 = vadd.f32 %v3211, %v3416
    %v3418 = vpop.f32.mrf.mxu0
    %3419 = vmatprep.mubr.f32.mxu0 0.0
    %v3420 = vand.u32 %v2541, 4294901760
    %v3421 = vsub.f32 %v2541, %v3420
    %v3422 = vand.u32 %v3421, 4294901760
    %3423 = vmatmul.mubr.f32.gmra.mxu0 %v3422
    %v3424 = vpop.f32.mrf.mxu0
    %v3425 = vadd.f32 %v3218, %v3424
    %v3426 = vpop.f32.mrf.mxu0
    %3427 = vmatprep.mubr.f32.mxu0 0.0
    %v3428 = vand.u32 %v2542, 4294901760
    %v3429 = vsub.f32 %v2542, %v3428
    %v3430 = vand.u32 %v3429, 4294901760
    %3431 = vmatmul.mubr.f32.gmra.mxu0 %v3430
    %v3432 = vpop.f32.mrf.mxu0
    %v3433 = vadd.f32 %v3225, %v3432
    %v3434 = vpop.f32.mrf.mxu0
    %3435 = vmatprep.mubr.f32.mxu0 0.0
    %v3436 = vand.u32 %v2543, 4294901760
    %v3437 = vsub.f32 %v2543, %v3436
    %v3438 = vand.u32 %v3437, 4294901760
    %3439 = vmatmul.mubr.f32.gmra.mxu0 %v3438
    %v3440 = vpop.f32.mrf.mxu0
    %v3441 = vadd.f32 %v3232, %v3440
    %v3442 = vpop.f32.mrf.mxu0
    %3443 = vdwg.mxu0
    %3444 = vmatprep.subr.mxu0 0.0
    %v3445 = vand.u32 %v64, 4294901760
    %v3446 = vsub.f32 %v64, %v3445
    %v3447 = vand.u32 %v3446, 4294901760
    %3448 = vmatpush1.msra.mxu0 %v3447
    %3449 = vmatprep.subr.mxu0 0.0
    %v3450 = vand.u32 %v63, 4294901760
    %v3451 = vsub.f32 %v63, %v3450
    %v3452 = vand.u32 %v3451, 4294901760
    %3453 = vmatpush1.msra.mxu0 %v3452
    %3454 = vmatprep.subr.mxu0 0.0
    %v3455 = vand.u32 %v62, 4294901760
    %v3456 = vsub.f32 %v62, %v3455
    %v3457 = vand.u32 %v3456, 4294901760
    %3458 = vmatpush1.msra.mxu0 %v3457
    %3459 = vmatprep.subr.mxu0 0.0
    %v3460 = vand.u32 %v61, 4294901760
    %v3461 = vsub.f32 %v61, %v3460
    %v3462 = vand.u32 %v3461, 4294901760
    %3463 = vmatpush1.msra.mxu0 %v3462
    %3464 = vmatprep.subr.mxu0 0.0
    %v3465 = vand.u32 %v60, 4294901760
    %v3466 = vsub.f32 %v60, %v3465
    %v3467 = vand.u32 %v3466, 4294901760
    %3468 = vmatpush1.msra.mxu0 %v3467
    %3469 = vmatprep.subr.mxu0 0.0
    %v3470 = vand.u32 %v59, 4294901760
    %v3471 = vsub.f32 %v59, %v3470
    %v3472 = vand.u32 %v3471, 4294901760
    %3473 = vmatpush1.msra.mxu0 %v3472
    %3474 = vmatprep.subr.mxu0 0.0
    %v3475 = vand.u32 %v58, 4294901760
    %v3476 = vsub.f32 %v58, %v3475
    %v3477 = vand.u32 %v3476, 4294901760
    %3478 = vmatpush1.msra.mxu0 %v3477
    %3479 = vmatprep.subr.mxu0 0.0
    %v3480 = vand.u32 %v57, 4294901760
    %v3481 = vsub.f32 %v57, %v3480
    %v3482 = vand.u32 %v3481, 4294901760
    %3483 = vmatpush1.msra.mxu0 %v3482
    %3484 = vmatprep.subr.mxu0 0.0
    %v3485 = vand.u32 %v56, 4294901760
    %v3486 = vsub.f32 %v56, %v3485
    %v3487 = vand.u32 %v3486, 4294901760
    %3488 = vmatpush1.msra.mxu0 %v3487
    %3489 = vmatprep.subr.mxu0 0.0
    %v3490 = vand.u32 %v55, 4294901760
    %v3491 = vsub.f32 %v55, %v3490
    %v3492 = vand.u32 %v3491, 4294901760
    %3493 = vmatpush1.msra.mxu0 %v3492
    %3494 = vmatprep.subr.mxu0 0.0
    %v3495 = vand.u32 %v54, 4294901760
    %v3496 = vsub.f32 %v54, %v3495
    %v3497 = vand.u32 %v3496, 4294901760
    %3498 = vmatpush1.msra.mxu0 %v3497
    %3499 = vmatprep.subr.mxu0 0.0
    %v3500 = vand.u32 %v53, 4294901760
    %v3501 = vsub.f32 %v53, %v3500
    %v3502 = vand.u32 %v3501, 4294901760
    %3503 = vmatpush1.msra.mxu0 %v3502
    %3504 = vmatprep.subr.mxu0 0.0
    %v3505 = vand.u32 %v52, 4294901760
    %v3506 = vsub.f32 %v52, %v3505
    %v3507 = vand.u32 %v3506, 4294901760
    %3508 = vmatpush1.msra.mxu0 %v3507
    %3509 = vmatprep.subr.mxu0 0.0
    %v3510 = vand.u32 %v51, 4294901760
    %v3511 = vsub.f32 %v51, %v3510
    %v3512 = vand.u32 %v3511, 4294901760
    %3513 = vmatpush1.msra.mxu0 %v3512
    %3514 = vmatprep.subr.mxu0 0.0
    %v3515 = vand.u32 %v50, 4294901760
    %v3516 = vsub.f32 %v50, %v3515
    %v3517 = vand.u32 %v3516, 4294901760
    %3518 = vmatpush1.msra.mxu0 %v3517
    %3519 = vmatprep.subr.mxu0 0.0
    %v3520 = vand.u32 %v49, 4294901760
    %v3521 = vsub.f32 %v49, %v3520
    %v3522 = vand.u32 %v3521, 4294901760
    %3523 = vmatpush1.msra.mxu0 %v3522
    %3524 = vmatprep.subr.mxu0 0.0
    %3525 = vmatpush2.msra.mxu0 0.0
    %3526 = vmatprep.subr.mxu0 0.0
    %3527 = vmatpush2.msra.mxu0 0.0
    %3528 = vmatprep.subr.mxu0 0.0
    %3529 = vmatpush2.msra.mxu0 0.0
    %3530 = vmatprep.subr.mxu0 0.0
    %3531 = vmatpush2.msra.mxu0 0.0
    %3532 = vmatprep.subr.mxu0 0.0
    %3533 = vmatpush2.msra.mxu0 0.0
    %3534 = vmatprep.subr.mxu0 0.0
    %3535 = vmatpush2.msra.mxu0 0.0
    %3536 = vmatprep.subr.mxu0 0.0
    %3537 = vmatpush2.msra.mxu0 0.0
    %3538 = vmatprep.subr.mxu0 0.0
    %3539 = vmatpush2.msra.mxu0 0.0
    %3540 = vmatprep.subr.mxu0 0.0
    %3541 = vmatpush2.msra.mxu0 0.0
    %3542 = vmatprep.subr.mxu0 0.0
    %3543 = vmatpush2.msra.mxu0 0.0
    %3544 = vmatprep.subr.mxu0 0.0
    %3545 = vmatpush2.msra.mxu0 0.0
    %3546 = vmatprep.subr.mxu0 0.0
    %3547 = vmatpush2.msra.mxu0 0.0
    %3548 = vmatprep.subr.mxu0 0.0
    %3549 = vmatpush2.msra.mxu0 0.0
    %3550 = vmatprep.subr.mxu0 0.0
    %3551 = vmatpush2.msra.mxu0 0.0
    %3552 = vmatprep.subr.mxu0 0.0
    %3553 = vmatpush2.msra.mxu0 0.0
    %3554 = vmatprep.subr.mxu0 0.0
    %3555 = vmatpush2.msra.mxu0 0.0
    %3556 = vmatprep.mubr.f32.mxu0 0.0
    %v3557 = vand.u32 %v2528, 4294901760
    %3558 = vmatmul.mubr.f32.gmra.mxu0 %v3557
    %v3559 = vpop.f32.mrf.mxu0
    %v3560 = vadd.f32 %v3321, %v3559
    %v3561 = vpop.f32.mrf.mxu0
    %3562 = vmatprep.mubr.f32.mxu0 0.0
    %v3563 = vand.u32 %v2529, 4294901760
    %3564 = vmatmul.mubr.f32.gmra.mxu0 %v3563
    %v3565 = vpop.f32.mrf.mxu0
    %v3566 = vadd.f32 %v3329, %v3565
    %v3567 = vpop.f32.mrf.mxu0
    %3568 = vmatprep.mubr.f32.mxu0 0.0
    %v3569 = vand.u32 %v2530, 4294901760
    %3570 = vmatmul.mubr.f32.gmra.mxu0 %v3569
    %v3571 = vpop.f32.mrf.mxu0
    %v3572 = vadd.f32 %v3337, %v3571
    %v3573 = vpop.f32.mrf.mxu0
    %3574 = vmatprep.mubr.f32.mxu0 0.0
    %v3575 = vand.u32 %v2531, 4294901760
    %3576 = vmatmul.mubr.f32.gmra.mxu0 %v3575
    %v3577 = vpop.f32.mrf.mxu0
    %v3578 = vadd.f32 %v3345, %v3577
    %v3579 = vpop.f32.mrf.mxu0
    %3580 = vmatprep.mubr.f32.mxu0 0.0
    %v3581 = vand.u32 %v2532, 4294901760
    %3582 = vmatmul.mubr.f32.gmra.mxu0 %v3581
    %v3583 = vpop.f32.mrf.mxu0
    %v3584 = vadd.f32 %v3353, %v3583
    %v3585 = vpop.f32.mrf.mxu0
    %3586 = vmatprep.mubr.f32.mxu0 0.0
    %v3587 = vand.u32 %v2533, 4294901760
    %3588 = vmatmul.mubr.f32.gmra.mxu0 %v3587
    %v3589 = vpop.f32.mrf.mxu0
    %v3590 = vadd.f32 %v3361, %v3589
    %v3591 = vpop.f32.mrf.mxu0
    %3592 = vmatprep.mubr.f32.mxu0 0.0
    %v3593 = vand.u32 %v2534, 4294901760
    %3594 = vmatmul.mubr.f32.gmra.mxu0 %v3593
    %v3595 = vpop.f32.mrf.mxu0
    %v3596 = vadd.f32 %v3369, %v3595
    %v3597 = vpop.f32.mrf.mxu0
    %3598 = vmatprep.mubr.f32.mxu0 0.0
    %v3599 = vand.u32 %v2535, 4294901760
    %3600 = vmatmul.mubr.f32.gmra.mxu0 %v3599
    %v3601 = vpop.f32.mrf.mxu0
    %v3602 = vadd.f32 %v3377, %v3601
    %v3603 = vpop.f32.mrf.mxu0
    %3604 = vmatprep.mubr.f32.mxu0 0.0
    %v3605 = vand.u32 %v2536, 4294901760
    %3606 = vmatmul.mubr.f32.gmra.mxu0 %v3605
    %v3607 = vpop.f32.mrf.mxu0
    %v3608 = vadd.f32 %v3385, %v3607
    %v3609 = vpop.f32.mrf.mxu0
    %3610 = vmatprep.mubr.f32.mxu0 0.0
    %v3611 = vand.u32 %v2537, 4294901760
    %3612 = vmatmul.mubr.f32.gmra.mxu0 %v3611
    %v3613 = vpop.f32.mrf.mxu0
    %v3614 = vadd.f32 %v3393, %v3613
    %v3615 = vpop.f32.mrf.mxu0
    %3616 = vmatprep.mubr.f32.mxu0 0.0
    %v3617 = vand.u32 %v2538, 4294901760
    %3618 = vmatmul.mubr.f32.gmra.mxu0 %v3617
    %v3619 = vpop.f32.mrf.mxu0
    %v3620 = vadd.f32 %v3401, %v3619
    %v3621 = vpop.f32.mrf.mxu0
    %3622 = vmatprep.mubr.f32.mxu0 0.0
    %v3623 = vand.u32 %v2539, 4294901760
    %3624 = vmatmul.mubr.f32.gmra.mxu0 %v3623
    %v3625 = vpop.f32.mrf.mxu0
    %v3626 = vadd.f32 %v3409, %v3625
    %v3627 = vpop.f32.mrf.mxu0
    %3628 = vmatprep.mubr.f32.mxu0 0.0
    %v3629 = vand.u32 %v2540, 4294901760
    %3630 = vmatmul.mubr.f32.gmra.mxu0 %v3629
    %v3631 = vpop.f32.mrf.mxu0
    %v3632 = vadd.f32 %v3417, %v3631
    %v3633 = vpop.f32.mrf.mxu0
    %3634 = vmatprep.mubr.f32.mxu0 0.0
    %v3635 = vand.u32 %v2541, 4294901760
    %3636 = vmatmul.mubr.f32.gmra.mxu0 %v3635
    %v3637 = vpop.f32.mrf.mxu0
    %v3638 = vadd.f32 %v3425, %v3637
    %v3639 = vpop.f32.mrf.mxu0
    %3640 = vmatprep.mubr.f32.mxu0 0.0
    %v3641 = vand.u32 %v2542, 4294901760
    %3642 = vmatmul.mubr.f32.gmra.mxu0 %v3641
    %v3643 = vpop.f32.mrf.mxu0
    %v3644 = vadd.f32 %v3433, %v3643
    %v3645 = vpop.f32.mrf.mxu0
    %3646 = vmatprep.mubr.f32.mxu0 0.0
    %v3647 = vand.u32 %v2543, 4294901760
    %3648 = vmatmul.mubr.f32.gmra.mxu0 %v3647
    %v3649 = vpop.f32.mrf.mxu0
    %v3650 = vadd.f32 %v3441, %v3649
    %v3651 = vpop.f32.mrf.mxu0
    %3652 = vdwg.mxu0
    %3653 = vmatprep.subr.mxu0 0.0
    %v3654 = vand.u32 %v64, 4294901760
    %3655 = vmatpush1.msra.mxu0 %v3654
    %3656 = vmatprep.subr.mxu0 0.0
    %v3657 = vand.u32 %v63, 4294901760
    %3658 = vmatpush1.msra.mxu0 %v3657
    %3659 = vmatprep.subr.mxu0 0.0
    %v3660 = vand.u32 %v62, 4294901760
    %3661 = vmatpush1.msra.mxu0 %v3660
    %3662 = vmatprep.subr.mxu0 0.0
    %v3663 = vand.u32 %v61, 4294901760
    %3664 = vmatpush1.msra.mxu0 %v3663
    %3665 = vmatprep.subr.mxu0 0.0
    %v3666 = vand.u32 %v60, 4294901760
    %3667 = vmatpush1.msra.mxu0 %v3666
    %3668 = vmatprep.subr.mxu0 0.0
    %v3669 = vand.u32 %v59, 4294901760
    %3670 = vmatpush1.msra.mxu0 %v3669
    %3671 = vmatprep.subr.mxu0 0.0
    %v3672 = vand.u32 %v58, 4294901760
    %3673 = vmatpush1.msra.mxu0 %v3672
    %3674 = vmatprep.subr.mxu0 0.0
    %v3675 = vand.u32 %v57, 4294901760
    %3676 = vmatpush1.msra.mxu0 %v3675
    %3677 = vmatprep.subr.mxu0 0.0
    %v3678 = vand.u32 %v56, 4294901760
    %3679 = vmatpush1.msra.mxu0 %v3678
    %3680 = vmatprep.subr.mxu0 0.0
    %v3681 = vand.u32 %v55, 4294901760
    %3682 = vmatpush1.msra.mxu0 %v3681
    %3683 = vmatprep.subr.mxu0 0.0
    %v3684 = vand.u32 %v54, 4294901760
    %3685 = vmatpush1.msra.mxu0 %v3684
    %3686 = vmatprep.subr.mxu0 0.0
    %v3687 = vand.u32 %v53, 4294901760
    %3688 = vmatpush1.msra.mxu0 %v3687
    %3689 = vmatprep.subr.mxu0 0.0
    %v3690 = vand.u32 %v52, 4294901760
    %3691 = vmatpush1.msra.mxu0 %v3690
    %3692 = vmatprep.subr.mxu0 0.0
    %v3693 = vand.u32 %v51, 4294901760
    %3694 = vmatpush1.msra.mxu0 %v3693
    %3695 = vmatprep.subr.mxu0 0.0
    %v3696 = vand.u32 %v50, 4294901760
    %3697 = vmatpush1.msra.mxu0 %v3696
    %3698 = vmatprep.subr.mxu0 0.0
    %v3699 = vand.u32 %v49, 4294901760
    %3700 = vmatpush1.msra.mxu0 %v3699
    %3701 = vmatprep.subr.mxu0 0.0
    %3702 = vmatpush2.msra.mxu0 0.0
    %3703 = vmatprep.subr.mxu0 0.0
    %3704 = vmatpush2.msra.mxu0 0.0
    %3705 = vmatprep.subr.mxu0 0.0
    %3706 = vmatpush2.msra.mxu0 0.0
    %3707 = vmatprep.subr.mxu0 0.0
    %3708 = vmatpush2.msra.mxu0 0.0
    %3709 = vmatprep.subr.mxu0 0.0
    %3710 = vmatpush2.msra.mxu0 0.0
    %3711 = vmatprep.subr.mxu0 0.0
    %3712 = vmatpush2.msra.mxu0 0.0
    %3713 = vmatprep.subr.mxu0 0.0
    %3714 = vmatpush2.msra.mxu0 0.0
    %3715 = vmatprep.subr.mxu0 0.0
    %3716 = vmatpush2.msra.mxu0 0.0
    %3717 = vmatprep.subr.mxu0 0.0
    %3718 = vmatpush2.msra.mxu0 0.0
    %3719 = vmatprep.subr.mxu0 0.0
    %3720 = vmatpush2.msra.mxu0 0.0
    %3721 = vmatprep.subr.mxu0 0.0
    %3722 = vmatpush2.msra.mxu0 0.0
    %3723 = vmatprep.subr.mxu0 0.0
    %3724 = vmatpush2.msra.mxu0 0.0
    %3725 = vmatprep.subr.mxu0 0.0
    %3726 = vmatpush2.msra.mxu0 0.0
    %3727 = vmatprep.subr.mxu0 0.0
    %3728 = vmatpush2.msra.mxu0 0.0
    %3729 = vmatprep.subr.mxu0 0.0
    %3730 = vmatpush2.msra.mxu0 0.0
    %3731 = vmatprep.subr.mxu0 0.0
    %3732 = vmatpush2.msra.mxu0 0.0
    %3733 = vmatprep.mubr.f32.mxu0 0.0
    %v3734 = vand.u32 %v2528, 4294901760
    %3735 = vmatmul.mubr.f32.gmra.mxu0 %v3734
    %v3736 = vpop.f32.mrf.mxu0
    %v3737 = vadd.f32 %v3560, %v3736
    %v3738 = vpop.f32.mrf.mxu0
    %3739 = vmatprep.mubr.f32.mxu0 0.0
    %v3740 = vand.u32 %v2529, 4294901760
    %3741 = vmatmul.mubr.f32.gmra.mxu0 %v3740
    %v3742 = vpop.f32.mrf.mxu0
    %v3743 = vadd.f32 %v3566, %v3742
    %v3744 = vpop.f32.mrf.mxu0
    %3745 = vmatprep.mubr.f32.mxu0 0.0
    %v3746 = vand.u32 %v2530, 4294901760
    %3747 = vmatmul.mubr.f32.gmra.mxu0 %v3746
    %v3748 = vpop.f32.mrf.mxu0
    %v3749 = vadd.f32 %v3572, %v3748
    %v3750 = vpop.f32.mrf.mxu0
    %3751 = vmatprep.mubr.f32.mxu0 0.0
    %v3752 = vand.u32 %v2531, 4294901760
    %3753 = vmatmul.mubr.f32.gmra.mxu0 %v3752
    %v3754 = vpop.f32.mrf.mxu0
    %v3755 = vadd.f32 %v3578, %v3754
    %v3756 = vpop.f32.mrf.mxu0
    %3757 = vmatprep.mubr.f32.mxu0 0.0
    %v3758 = vand.u32 %v2532, 4294901760
    %3759 = vmatmul.mubr.f32.gmra.mxu0 %v3758
    %v3760 = vpop.f32.mrf.mxu0
    %v3761 = vadd.f32 %v3584, %v3760
    %v3762 = vpop.f32.mrf.mxu0
    %3763 = vmatprep.mubr.f32.mxu0 0.0
    %v3764 = vand.u32 %v2533, 4294901760
    %3765 = vmatmul.mubr.f32.gmra.mxu0 %v3764
    %v3766 = vpop.f32.mrf.mxu0
    %v3767 = vadd.f32 %v3590, %v3766
    %v3768 = vpop.f32.mrf.mxu0
    %3769 = vmatprep.mubr.f32.mxu0 0.0
    %v3770 = vand.u32 %v2534, 4294901760
    %3771 = vmatmul.mubr.f32.gmra.mxu0 %v3770
    %v3772 = vpop.f32.mrf.mxu0
    %v3773 = vadd.f32 %v3596, %v3772
    %v3774 = vpop.f32.mrf.mxu0
    %3775 = vmatprep.mubr.f32.mxu0 0.0
    %v3776 = vand.u32 %v2535, 4294901760
    %3777 = vmatmul.mubr.f32.gmra.mxu0 %v3776
    %v3778 = vpop.f32.mrf.mxu0
    %v3779 = vadd.f32 %v3602, %v3778
    %v3780 = vpop.f32.mrf.mxu0
    %3781 = vmatprep.mubr.f32.mxu0 0.0
    %v3782 = vand.u32 %v2536, 4294901760
    %3783 = vmatmul.mubr.f32.gmra.mxu0 %v3782
    %v3784 = vpop.f32.mrf.mxu0
    %v3785 = vadd.f32 %v3608, %v3784
    %v3786 = vpop.f32.mrf.mxu0
    %3787 = vmatprep.mubr.f32.mxu0 0.0
    %v3788 = vand.u32 %v2537, 4294901760
    %3789 = vmatmul.mubr.f32.gmra.mxu0 %v3788
    %v3790 = vpop.f32.mrf.mxu0
    %v3791 = vadd.f32 %v3614, %v3790
    %v3792 = vpop.f32.mrf.mxu0
    %3793 = vmatprep.mubr.f32.mxu0 0.0
    %v3794 = vand.u32 %v2538, 4294901760
    %3795 = vmatmul.mubr.f32.gmra.mxu0 %v3794
    %v3796 = vpop.f32.mrf.mxu0
    %v3797 = vadd.f32 %v3620, %v3796
    %v3798 = vpop.f32.mrf.mxu0
    %3799 = vmatprep.mubr.f32.mxu0 0.0
    %v3800 = vand.u32 %v2539, 4294901760
    %3801 = vmatmul.mubr.f32.gmra.mxu0 %v3800
    %v3802 = vpop.f32.mrf.mxu0
    %v3803 = vadd.f32 %v3626, %v3802
    %v3804 = vpop.f32.mrf.mxu0
    %3805 = vmatprep.mubr.f32.mxu0 0.0
    %v3806 = vand.u32 %v2540, 4294901760
    %3807 = vmatmul.mubr.f32.gmra.mxu0 %v3806
    %v3808 = vpop.f32.mrf.mxu0
    %v3809 = vadd.f32 %v3632, %v3808
    %v3810 = vpop.f32.mrf.mxu0
    %3811 = vmatprep.mubr.f32.mxu0 0.0
    %v3812 = vand.u32 %v2541, 4294901760
    %3813 = vmatmul.mubr.f32.gmra.mxu0 %v3812
    %v3814 = vpop.f32.mrf.mxu0
    %v3815 = vadd.f32 %v3638, %v3814
    %v3816 = vpop.f32.mrf.mxu0
    %3817 = vmatprep.mubr.f32.mxu0 0.0
    %v3818 = vand.u32 %v2542, 4294901760
    %3819 = vmatmul.mubr.f32.gmra.mxu0 %v3818
    %v3820 = vpop.f32.mrf.mxu0
    %v3821 = vadd.f32 %v3644, %v3820
    %v3822 = vpop.f32.mrf.mxu0
    %3823 = vmatprep.mubr.f32.mxu0 0.0
    %v3824 = vand.u32 %v2543, 4294901760
    %3825 = vmatmul.mubr.f32.gmra.mxu0 %v3824
    %v3826 = vpop.f32.mrf.mxu0
    %v3827 = vadd.f32 %v3650, %v3826
    %v3828 = vpop.f32.mrf.mxu0
    %3829 = vdwg.mxu0
    %v3830 = vmul.f32 %v3737, 0.03125
    %v3831 = vmul.f32 %v3743, 0.03125
    %v3832 = vmul.f32 %v3749, 0.03125
    %v3833 = vmul.f32 %v3755, 0.03125
    %v3834 = vmul.f32 %v3761, 0.03125
    %v3835 = vmul.f32 %v3767, 0.03125
    %v3836 = vmul.f32 %v3773, 0.03125
    %v3837 = vmul.f32 %v3779, 0.03125
    %v3838 = vmul.f32 %v3785, 0.03125
    %v3839 = vmul.f32 %v3791, 0.03125
    %v3840 = vmul.f32 %v3797, 0.03125
    %v3841 = vmul.f32 %v3803, 0.03125
    %v3842 = vmul.f32 %v3809, 0.03125
    %v3843 = vmul.f32 %v3815, 0.03125
    %v3844 = vmul.f32 %v3821, 0.03125
    %v3845 = vmul.f32 %v3827, 0.03125
    %v3847 = vsel %vm1368, %v3830, 0
    %v3850 = vsel %vm1368, %v3831, 0
    %v3853 = vsel %vm1368, %v3832, 0
    %v3856 = vsel %vm1368, %v3833, 0
    %v3859 = vsel %vm1368, %v3834, 0
    %v3862 = vsel %vm1368, %v3835, 0
    %v3865 = vsel %vm1368, %v3836, 0
    %v3868 = vsel %vm1368, %v3837, 0
    %v3871 = vsel %vm1368, %v3838, 0
    %v3874 = vsel %vm1368, %v3839, 0
    %v3877 = vsel %vm1368, %v3840, 0
    %v3880 = vsel %vm1368, %v3841, 0
    %v3883 = vsel %vm1368, %v3842, 0
    %v3886 = vsel %vm1368, %v3843, 0
    %v3889 = vsel %vm1368, %v3844, 0
    %v3892 = vsel %vm1368, %v3845, 0
    %3894 = vmatprep.subr.mxu0 0.0
    %3895 = vmatpush1.msra.mxu0 0.0
    %3896 = vmatprep.subr.mxu0 0.0
    %3897 = vmatpush1.msra.mxu0 0.0
    %3898 = vmatprep.subr.mxu0 0.0
    %3899 = vmatpush1.msra.mxu0 0.0
    %3900 = vmatprep.subr.mxu0 0.0
    %3901 = vmatpush1.msra.mxu0 0.0
    %3902 = vmatprep.subr.mxu0 0.0
    %3903 = vmatpush1.msra.mxu0 0.0
    %3904 = vmatprep.subr.mxu0 0.0
    %3905 = vmatpush1.msra.mxu0 0.0
    %3906 = vmatprep.subr.mxu0 0.0
    %3907 = vmatpush1.msra.mxu0 0.0
    %3908 = vmatprep.subr.mxu0 0.0
    %3909 = vmatpush1.msra.mxu0 0.0
    %3910 = vmatprep.subr.mxu0 0.0
    %3911 = vmatpush1.msra.mxu0 0.0
    %3912 = vmatprep.subr.mxu0 0.0
    %3913 = vmatpush1.msra.mxu0 0.0
    %3914 = vmatprep.subr.mxu0 0.0
    %3915 = vmatpush1.msra.mxu0 0.0
    %3916 = vmatprep.subr.mxu0 0.0
    %3917 = vmatpush1.msra.mxu0 0.0
    %3918 = vmatprep.subr.mxu0 0.0
    %3919 = vmatpush1.msra.mxu0 0.0
    %3920 = vmatprep.subr.mxu0 0.0
    %3921 = vmatpush1.msra.mxu0 0.0
    %3922 = vmatprep.subr.mxu0 0.0
    %3923 = vmatpush1.msra.mxu0 0.0
    %3924 = vmatprep.subr.mxu0 0.0
    %v3925 = vand.u32 %v1419, 4294901760
    %3926 = vmatpush1.msra.mxu0 %v3925
    %3927 = vmatprep.subr.mxu0 0.0
    %3928 = vmatpush2.msra.mxu0 0.0
    %3929 = vmatprep.subr.mxu0 0.0
    %3930 = vmatpush2.msra.mxu0 0.0
    %3931 = vmatprep.subr.mxu0 0.0
    %3932 = vmatpush2.msra.mxu0 0.0
    %3933 = vmatprep.subr.mxu0 0.0
    %3934 = vmatpush2.msra.mxu0 0.0
    %3935 = vmatprep.subr.mxu0 0.0
    %3936 = vmatpush2.msra.mxu0 0.0
    %3937 = vmatprep.subr.mxu0 0.0
    %3938 = vmatpush2.msra.mxu0 0.0
    %3939 = vmatprep.subr.mxu0 0.0
    %3940 = vmatpush2.msra.mxu0 0.0
    %3941 = vmatprep.subr.mxu0 0.0
    %3942 = vmatpush2.msra.mxu0 0.0
    %3943 = vmatprep.subr.mxu0 0.0
    %3944 = vmatpush2.msra.mxu0 0.0
    %3945 = vmatprep.subr.mxu0 0.0
    %3946 = vmatpush2.msra.mxu0 0.0
    %3947 = vmatprep.subr.mxu0 0.0
    %3948 = vmatpush2.msra.mxu0 0.0
    %3949 = vmatprep.subr.mxu0 0.0
    %3950 = vmatpush2.msra.mxu0 0.0
    %3951 = vmatprep.subr.mxu0 0.0
    %3952 = vmatpush2.msra.mxu0 0.0
    %3953 = vmatprep.subr.mxu0 0.0
    %3954 = vmatpush2.msra.mxu0 0.0
    %3955 = vmatprep.subr.mxu0 0.0
    %3956 = vmatpush2.msra.mxu0 0.0
    %3957 = vmatprep.subr.mxu0 0.0
    %3958 = vmatpush2.msra.mxu0 0.0
    %3959 = vmatprep.mubr.f32.mxu0 0.0
    %v3960 = vand.u32 %v3847, 4294901760
    %v3961 = vsub.f32 %v3847, %v3960
    %v3962 = vand.u32 %v3961, 4294901760
    %v3963 = vsub.f32 %v3961, %v3962
    %v3964 = vand.u32 %v3963, 4294901760
    %3965 = vmatmul.mubr.f32.gmra.mxu0 %v3964
    %v3966 = vpop.f32.mrf.mxu0
    %v3967 = vadd.f32 1e-06, %v3966
    %v3968 = vpop.f32.mrf.mxu0
    %3969 = vmatprep.mubr.f32.mxu0 0.0
    %v3970 = vand.u32 %v3850, 4294901760
    %v3971 = vsub.f32 %v3850, %v3970
    %v3972 = vand.u32 %v3971, 4294901760
    %v3973 = vsub.f32 %v3971, %v3972
    %v3974 = vand.u32 %v3973, 4294901760
    %3975 = vmatmul.mubr.f32.gmra.mxu0 %v3974
    %v3976 = vpop.f32.mrf.mxu0
    %v3977 = vadd.f32 1e-06, %v3976
    %v3978 = vpop.f32.mrf.mxu0
    %3979 = vmatprep.mubr.f32.mxu0 0.0
    %v3980 = vand.u32 %v3853, 4294901760
    %v3981 = vsub.f32 %v3853, %v3980
    %v3982 = vand.u32 %v3981, 4294901760
    %v3983 = vsub.f32 %v3981, %v3982
    %v3984 = vand.u32 %v3983, 4294901760
    %3985 = vmatmul.mubr.f32.gmra.mxu0 %v3984
    %v3986 = vpop.f32.mrf.mxu0
    %v3987 = vadd.f32 1e-06, %v3986
    %v3988 = vpop.f32.mrf.mxu0
    %3989 = vmatprep.mubr.f32.mxu0 0.0
    %v3990 = vand.u32 %v3856, 4294901760
    %v3991 = vsub.f32 %v3856, %v3990
    %v3992 = vand.u32 %v3991, 4294901760
    %v3993 = vsub.f32 %v3991, %v3992
    %v3994 = vand.u32 %v3993, 4294901760
    %3995 = vmatmul.mubr.f32.gmra.mxu0 %v3994
    %v3996 = vpop.f32.mrf.mxu0
    %v3997 = vadd.f32 1e-06, %v3996
    %v3998 = vpop.f32.mrf.mxu0
    %3999 = vmatprep.mubr.f32.mxu0 0.0
    %v4000 = vand.u32 %v3859, 4294901760
    %v4001 = vsub.f32 %v3859, %v4000
    %v4002 = vand.u32 %v4001, 4294901760
    %v4003 = vsub.f32 %v4001, %v4002
    %v4004 = vand.u32 %v4003, 4294901760
    %4005 = vmatmul.mubr.f32.gmra.mxu0 %v4004
    %v4006 = vpop.f32.mrf.mxu0
    %v4007 = vadd.f32 1e-06, %v4006
    %v4008 = vpop.f32.mrf.mxu0
    %4009 = vmatprep.mubr.f32.mxu0 0.0
    %v4010 = vand.u32 %v3862, 4294901760
    %v4011 = vsub.f32 %v3862, %v4010
    %v4012 = vand.u32 %v4011, 4294901760
    %v4013 = vsub.f32 %v4011, %v4012
    %v4014 = vand.u32 %v4013, 4294901760
    %4015 = vmatmul.mubr.f32.gmra.mxu0 %v4014
    %v4016 = vpop.f32.mrf.mxu0
    %v4017 = vadd.f32 1e-06, %v4016
    %v4018 = vpop.f32.mrf.mxu0
    %4019 = vmatprep.mubr.f32.mxu0 0.0
    %v4020 = vand.u32 %v3865, 4294901760
    %v4021 = vsub.f32 %v3865, %v4020
    %v4022 = vand.u32 %v4021, 4294901760
    %v4023 = vsub.f32 %v4021, %v4022
    %v4024 = vand.u32 %v4023, 4294901760
    %4025 = vmatmul.mubr.f32.gmra.mxu0 %v4024
    %v4026 = vpop.f32.mrf.mxu0
    %v4027 = vadd.f32 1e-06, %v4026
    %v4028 = vpop.f32.mrf.mxu0
    %4029 = vmatprep.mubr.f32.mxu0 0.0
    %v4030 = vand.u32 %v3868, 4294901760
    %v4031 = vsub.f32 %v3868, %v4030
    %v4032 = vand.u32 %v4031, 4294901760
    %v4033 = vsub.f32 %v4031, %v4032
    %v4034 = vand.u32 %v4033, 4294901760
    %4035 = vmatmul.mubr.f32.gmra.mxu0 %v4034
    %v4036 = vpop.f32.mrf.mxu0
    %v4037 = vadd.f32 1e-06, %v4036
    %v4038 = vpop.f32.mrf.mxu0
    %4039 = vmatprep.mubr.f32.mxu0 0.0
    %v4040 = vand.u32 %v3871, 4294901760
    %v4041 = vsub.f32 %v3871, %v4040
    %v4042 = vand.u32 %v4041, 4294901760
    %v4043 = vsub.f32 %v4041, %v4042
    %v4044 = vand.u32 %v4043, 4294901760
    %4045 = vmatmul.mubr.f32.gmra.mxu0 %v4044
    %v4046 = vpop.f32.mrf.mxu0
    %v4047 = vadd.f32 1e-06, %v4046
    %v4048 = vpop.f32.mrf.mxu0
    %4049 = vmatprep.mubr.f32.mxu0 0.0
    %v4050 = vand.u32 %v3874, 4294901760
    %v4051 = vsub.f32 %v3874, %v4050
    %v4052 = vand.u32 %v4051, 4294901760
    %v4053 = vsub.f32 %v4051, %v4052
    %v4054 = vand.u32 %v4053, 4294901760
    %4055 = vmatmul.mubr.f32.gmra.mxu0 %v4054
    %v4056 = vpop.f32.mrf.mxu0
    %v4057 = vadd.f32 1e-06, %v4056
    %v4058 = vpop.f32.mrf.mxu0
    %4059 = vmatprep.mubr.f32.mxu0 0.0
    %v4060 = vand.u32 %v3877, 4294901760
    %v4061 = vsub.f32 %v3877, %v4060
    %v4062 = vand.u32 %v4061, 4294901760
    %v4063 = vsub.f32 %v4061, %v4062
    %v4064 = vand.u32 %v4063, 4294901760
    %4065 = vmatmul.mubr.f32.gmra.mxu0 %v4064
    %v4066 = vpop.f32.mrf.mxu0
    %v4067 = vadd.f32 1e-06, %v4066
    %v4068 = vpop.f32.mrf.mxu0
    %4069 = vmatprep.mubr.f32.mxu0 0.0
    %v4070 = vand.u32 %v3880, 4294901760
    %v4071 = vsub.f32 %v3880, %v4070
    %v4072 = vand.u32 %v4071, 4294901760
    %v4073 = vsub.f32 %v4071, %v4072
    %v4074 = vand.u32 %v4073, 4294901760
    %4075 = vmatmul.mubr.f32.gmra.mxu0 %v4074
    %v4076 = vpop.f32.mrf.mxu0
    %v4077 = vadd.f32 1e-06, %v4076
    %v4078 = vpop.f32.mrf.mxu0
    %4079 = vmatprep.mubr.f32.mxu0 0.0
    %v4080 = vand.u32 %v3883, 4294901760
    %v4081 = vsub.f32 %v3883, %v4080
    %v4082 = vand.u32 %v4081, 4294901760
    %v4083 = vsub.f32 %v4081, %v4082
    %v4084 = vand.u32 %v4083, 4294901760
    %4085 = vmatmul.mubr.f32.gmra.mxu0 %v4084
    %v4086 = vpop.f32.mrf.mxu0
    %v4087 = vadd.f32 1e-06, %v4086
    %v4088 = vpop.f32.mrf.mxu0
    %4089 = vmatprep.mubr.f32.mxu0 0.0
    %v4090 = vand.u32 %v3886, 4294901760
    %v4091 = vsub.f32 %v3886, %v4090
    %v4092 = vand.u32 %v4091, 4294901760
    %v4093 = vsub.f32 %v4091, %v4092
    %v4094 = vand.u32 %v4093, 4294901760
    %4095 = vmatmul.mubr.f32.gmra.mxu0 %v4094
    %v4096 = vpop.f32.mrf.mxu0
    %v4097 = vadd.f32 1e-06, %v4096
    %v4098 = vpop.f32.mrf.mxu0
    %4099 = vmatprep.mubr.f32.mxu0 0.0
    %v4100 = vand.u32 %v3889, 4294901760
    %v4101 = vsub.f32 %v3889, %v4100
    %v4102 = vand.u32 %v4101, 4294901760
    %v4103 = vsub.f32 %v4101, %v4102
    %v4104 = vand.u32 %v4103, 4294901760
    %4105 = vmatmul.mubr.f32.gmra.mxu0 %v4104
    %v4106 = vpop.f32.mrf.mxu0
    %v4107 = vadd.f32 1e-06, %v4106
    %v4108 = vpop.f32.mrf.mxu0
    %4109 = vmatprep.mubr.f32.mxu0 0.0
    %v4110 = vand.u32 %v3892, 4294901760
    %v4111 = vsub.f32 %v3892, %v4110
    %v4112 = vand.u32 %v4111, 4294901760
    %v4113 = vsub.f32 %v4111, %v4112
    %v4114 = vand.u32 %v4113, 4294901760
    %4115 = vmatmul.mubr.f32.gmra.mxu0 %v4114
    %v4116 = vpop.f32.mrf.mxu0
    %v4117 = vadd.f32 1e-06, %v4116
    %v4118 = vpop.f32.mrf.mxu0
    %4119 = vdwg.mxu0
    %4120 = vmatprep.subr.mxu0 0.0
    %4121 = vmatpush1.msra.mxu0 0.0
    %4122 = vmatprep.subr.mxu0 0.0
    %4123 = vmatpush1.msra.mxu0 0.0
    %4124 = vmatprep.subr.mxu0 0.0
    %4125 = vmatpush1.msra.mxu0 0.0
    %4126 = vmatprep.subr.mxu0 0.0
    %4127 = vmatpush1.msra.mxu0 0.0
    %4128 = vmatprep.subr.mxu0 0.0
    %4129 = vmatpush1.msra.mxu0 0.0
    %4130 = vmatprep.subr.mxu0 0.0
    %4131 = vmatpush1.msra.mxu0 0.0
    %4132 = vmatprep.subr.mxu0 0.0
    %4133 = vmatpush1.msra.mxu0 0.0
    %4134 = vmatprep.subr.mxu0 0.0
    %4135 = vmatpush1.msra.mxu0 0.0
    %4136 = vmatprep.subr.mxu0 0.0
    %4137 = vmatpush1.msra.mxu0 0.0
    %4138 = vmatprep.subr.mxu0 0.0
    %4139 = vmatpush1.msra.mxu0 0.0
    %4140 = vmatprep.subr.mxu0 0.0
    %4141 = vmatpush1.msra.mxu0 0.0
    %4142 = vmatprep.subr.mxu0 0.0
    %4143 = vmatpush1.msra.mxu0 0.0
    %4144 = vmatprep.subr.mxu0 0.0
    %4145 = vmatpush1.msra.mxu0 0.0
    %4146 = vmatprep.subr.mxu0 0.0
    %4147 = vmatpush1.msra.mxu0 0.0
    %4148 = vmatprep.subr.mxu0 0.0
    %4149 = vmatpush1.msra.mxu0 0.0
    %4150 = vmatprep.subr.mxu0 0.0
    %v4151 = vand.u32 %v1419, 4294901760
    %v4152 = vsub.f32 %v1419, %v4151
    %v4153 = vand.u32 %v4152, 4294901760
    %v4154 = vsub.f32 %v4152, %v4153
    %v4155 = vand.u32 %v4154, 4294901760
    %4156 = vmatpush1.msra.mxu0 %v4155
    %4157 = vmatprep.subr.mxu0 0.0
    %4158 = vmatpush2.msra.mxu0 0.0
    %4159 = vmatprep.subr.mxu0 0.0
    %4160 = vmatpush2.msra.mxu0 0.0
    %4161 = vmatprep.subr.mxu0 0.0
    %4162 = vmatpush2.msra.mxu0 0.0
    %4163 = vmatprep.subr.mxu0 0.0
    %4164 = vmatpush2.msra.mxu0 0.0
    %4165 = vmatprep.subr.mxu0 0.0
    %4166 = vmatpush2.msra.mxu0 0.0
    %4167 = vmatprep.subr.mxu0 0.0
    %4168 = vmatpush2.msra.mxu0 0.0
    %4169 = vmatprep.subr.mxu0 0.0
    %4170 = vmatpush2.msra.mxu0 0.0
    %4171 = vmatprep.subr.mxu0 0.0
    %4172 = vmatpush2.msra.mxu0 0.0
    %4173 = vmatprep.subr.mxu0 0.0
    %4174 = vmatpush2.msra.mxu0 0.0
    %4175 = vmatprep.subr.mxu0 0.0
    %4176 = vmatpush2.msra.mxu0 0.0
    %4177 = vmatprep.subr.mxu0 0.0
    %4178 = vmatpush2.msra.mxu0 0.0
    %4179 = vmatprep.subr.mxu0 0.0
    %4180 = vmatpush2.msra.mxu0 0.0
    %4181 = vmatprep.subr.mxu0 0.0
    %4182 = vmatpush2.msra.mxu0 0.0
    %4183 = vmatprep.subr.mxu0 0.0
    %4184 = vmatpush2.msra.mxu0 0.0
    %4185 = vmatprep.subr.mxu0 0.0
    %4186 = vmatpush2.msra.mxu0 0.0
    %4187 = vmatprep.subr.mxu0 0.0
    %4188 = vmatpush2.msra.mxu0 0.0
    %4189 = vmatprep.mubr.f32.mxu0 0.0
    %v4190 = vand.u32 %v3847, 4294901760
    %4191 = vmatmul.mubr.f32.gmra.mxu0 %v4190
    %v4192 = vpop.f32.mrf.mxu0
    %v4193 = vadd.f32 %v3967, %v4192
    %v4194 = vpop.f32.mrf.mxu0
    %4195 = vmatprep.mubr.f32.mxu0 0.0
    %v4196 = vand.u32 %v3850, 4294901760
    %4197 = vmatmul.mubr.f32.gmra.mxu0 %v4196
    %v4198 = vpop.f32.mrf.mxu0
    %v4199 = vadd.f32 %v3977, %v4198
    %v4200 = vpop.f32.mrf.mxu0
    %4201 = vmatprep.mubr.f32.mxu0 0.0
    %v4202 = vand.u32 %v3853, 4294901760
    %4203 = vmatmul.mubr.f32.gmra.mxu0 %v4202
    %v4204 = vpop.f32.mrf.mxu0
    %v4205 = vadd.f32 %v3987, %v4204
    %v4206 = vpop.f32.mrf.mxu0
    %4207 = vmatprep.mubr.f32.mxu0 0.0
    %v4208 = vand.u32 %v3856, 4294901760
    %4209 = vmatmul.mubr.f32.gmra.mxu0 %v4208
    %v4210 = vpop.f32.mrf.mxu0
    %v4211 = vadd.f32 %v3997, %v4210
    %v4212 = vpop.f32.mrf.mxu0
    %4213 = vmatprep.mubr.f32.mxu0 0.0
    %v4214 = vand.u32 %v3859, 4294901760
    %4215 = vmatmul.mubr.f32.gmra.mxu0 %v4214
    %v4216 = vpop.f32.mrf.mxu0
    %v4217 = vadd.f32 %v4007, %v4216
    %v4218 = vpop.f32.mrf.mxu0
    %4219 = vmatprep.mubr.f32.mxu0 0.0
    %v4220 = vand.u32 %v3862, 4294901760
    %4221 = vmatmul.mubr.f32.gmra.mxu0 %v4220
    %v4222 = vpop.f32.mrf.mxu0
    %v4223 = vadd.f32 %v4017, %v4222
    %v4224 = vpop.f32.mrf.mxu0
    %4225 = vmatprep.mubr.f32.mxu0 0.0
    %v4226 = vand.u32 %v3865, 4294901760
    %4227 = vmatmul.mubr.f32.gmra.mxu0 %v4226
    %v4228 = vpop.f32.mrf.mxu0
    %v4229 = vadd.f32 %v4027, %v4228
    %v4230 = vpop.f32.mrf.mxu0
    %4231 = vmatprep.mubr.f32.mxu0 0.0
    %v4232 = vand.u32 %v3868, 4294901760
    %4233 = vmatmul.mubr.f32.gmra.mxu0 %v4232
    %v4234 = vpop.f32.mrf.mxu0
    %v4235 = vadd.f32 %v4037, %v4234
    %v4236 = vpop.f32.mrf.mxu0
    %4237 = vmatprep.mubr.f32.mxu0 0.0
    %v4238 = vand.u32 %v3871, 4294901760
    %4239 = vmatmul.mubr.f32.gmra.mxu0 %v4238
    %v4240 = vpop.f32.mrf.mxu0
    %v4241 = vadd.f32 %v4047, %v4240
    %v4242 = vpop.f32.mrf.mxu0
    %4243 = vmatprep.mubr.f32.mxu0 0.0
    %v4244 = vand.u32 %v3874, 4294901760
    %4245 = vmatmul.mubr.f32.gmra.mxu0 %v4244
    %v4246 = vpop.f32.mrf.mxu0
    %v4247 = vadd.f32 %v4057, %v4246
    %v4248 = vpop.f32.mrf.mxu0
    %4249 = vmatprep.mubr.f32.mxu0 0.0
    %v4250 = vand.u32 %v3877, 4294901760
    %4251 = vmatmul.mubr.f32.gmra.mxu0 %v4250
    %v4252 = vpop.f32.mrf.mxu0
    %v4253 = vadd.f32 %v4067, %v4252
    %v4254 = vpop.f32.mrf.mxu0
    %4255 = vmatprep.mubr.f32.mxu0 0.0
    %v4256 = vand.u32 %v3880, 4294901760
    %4257 = vmatmul.mubr.f32.gmra.mxu0 %v4256
    %v4258 = vpop.f32.mrf.mxu0
    %v4259 = vadd.f32 %v4077, %v4258
    %v4260 = vpop.f32.mrf.mxu0
    %4261 = vmatprep.mubr.f32.mxu0 0.0
    %v4262 = vand.u32 %v3883, 4294901760
    %4263 = vmatmul.mubr.f32.gmra.mxu0 %v4262
    %v4264 = vpop.f32.mrf.mxu0
    %v4265 = vadd.f32 %v4087, %v4264
    %v4266 = vpop.f32.mrf.mxu0
    %4267 = vmatprep.mubr.f32.mxu0 0.0
    %v4268 = vand.u32 %v3886, 4294901760
    %4269 = vmatmul.mubr.f32.gmra.mxu0 %v4268
    %v4270 = vpop.f32.mrf.mxu0
    %v4271 = vadd.f32 %v4097, %v4270
    %v4272 = vpop.f32.mrf.mxu0
    %4273 = vmatprep.mubr.f32.mxu0 0.0
    %v4274 = vand.u32 %v3889, 4294901760
    %4275 = vmatmul.mubr.f32.gmra.mxu0 %v4274
    %v4276 = vpop.f32.mrf.mxu0
    %v4277 = vadd.f32 %v4107, %v4276
    %v4278 = vpop.f32.mrf.mxu0
    %4279 = vmatprep.mubr.f32.mxu0 0.0
    %v4280 = vand.u32 %v3892, 4294901760
    %4281 = vmatmul.mubr.f32.gmra.mxu0 %v4280
    %v4282 = vpop.f32.mrf.mxu0
    %v4283 = vadd.f32 %v4117, %v4282
    %v4284 = vpop.f32.mrf.mxu0
    %4285 = vdwg.mxu0
    %4286 = vmatprep.subr.mxu0 0.0
    %4287 = vmatpush1.msra.mxu0 0.0
    %4288 = vmatprep.subr.mxu0 0.0
    %4289 = vmatpush1.msra.mxu0 0.0
    %4290 = vmatprep.subr.mxu0 0.0
    %4291 = vmatpush1.msra.mxu0 0.0
    %4292 = vmatprep.subr.mxu0 0.0
    %4293 = vmatpush1.msra.mxu0 0.0
    %4294 = vmatprep.subr.mxu0 0.0
    %4295 = vmatpush1.msra.mxu0 0.0
    %4296 = vmatprep.subr.mxu0 0.0
    %4297 = vmatpush1.msra.mxu0 0.0
    %4298 = vmatprep.subr.mxu0 0.0
    %4299 = vmatpush1.msra.mxu0 0.0
    %4300 = vmatprep.subr.mxu0 0.0
    %4301 = vmatpush1.msra.mxu0 0.0
    %4302 = vmatprep.subr.mxu0 0.0
    %4303 = vmatpush1.msra.mxu0 0.0
    %4304 = vmatprep.subr.mxu0 0.0
    %4305 = vmatpush1.msra.mxu0 0.0
    %4306 = vmatprep.subr.mxu0 0.0
    %4307 = vmatpush1.msra.mxu0 0.0
    %4308 = vmatprep.subr.mxu0 0.0
    %4309 = vmatpush1.msra.mxu0 0.0
    %4310 = vmatprep.subr.mxu0 0.0
    %4311 = vmatpush1.msra.mxu0 0.0
    %4312 = vmatprep.subr.mxu0 0.0
    %4313 = vmatpush1.msra.mxu0 0.0
    %4314 = vmatprep.subr.mxu0 0.0
    %4315 = vmatpush1.msra.mxu0 0.0
    %4316 = vmatprep.subr.mxu0 0.0
    %v4317 = vand.u32 %v1419, 4294901760
    %v4318 = vsub.f32 %v1419, %v4317
    %4319 = vmatpush1.msra.mxu0 %v4318
    %4320 = vmatprep.subr.mxu0 0.0
    %4321 = vmatpush2.msra.mxu0 0.0
    %4322 = vmatprep.subr.mxu0 0.0
    %4323 = vmatpush2.msra.mxu0 0.0
    %4324 = vmatprep.subr.mxu0 0.0
    %4325 = vmatpush2.msra.mxu0 0.0
    %4326 = vmatprep.subr.mxu0 0.0
    %4327 = vmatpush2.msra.mxu0 0.0
    %4328 = vmatprep.subr.mxu0 0.0
    %4329 = vmatpush2.msra.mxu0 0.0
    %4330 = vmatprep.subr.mxu0 0.0
    %4331 = vmatpush2.msra.mxu0 0.0
    %4332 = vmatprep.subr.mxu0 0.0
    %4333 = vmatpush2.msra.mxu0 0.0
    %4334 = vmatprep.subr.mxu0 0.0
    %4335 = vmatpush2.msra.mxu0 0.0
    %4336 = vmatprep.subr.mxu0 0.0
    %4337 = vmatpush2.msra.mxu0 0.0
    %4338 = vmatprep.subr.mxu0 0.0
    %4339 = vmatpush2.msra.mxu0 0.0
    %4340 = vmatprep.subr.mxu0 0.0
    %4341 = vmatpush2.msra.mxu0 0.0
    %4342 = vmatprep.subr.mxu0 0.0
    %4343 = vmatpush2.msra.mxu0 0.0
    %4344 = vmatprep.subr.mxu0 0.0
    %4345 = vmatpush2.msra.mxu0 0.0
    %4346 = vmatprep.subr.mxu0 0.0
    %4347 = vmatpush2.msra.mxu0 0.0
    %4348 = vmatprep.subr.mxu0 0.0
    %4349 = vmatpush2.msra.mxu0 0.0
    %4350 = vmatprep.subr.mxu0 0.0
    %4351 = vmatpush2.msra.mxu0 0.0
    %4352 = vmatprep.mubr.f32.mxu0 0.0
    %v4353 = vand.u32 %v3847, 4294901760
    %v4354 = vsub.f32 %v3847, %v4353
    %4355 = vmatmul.mubr.f32.gmra.mxu0 %v4354
    %v4356 = vpop.f32.mrf.mxu0
    %v4357 = vadd.f32 %v4193, %v4356
    %v4358 = vpop.f32.mrf.mxu0
    %4359 = vmatprep.mubr.f32.mxu0 0.0
    %v4360 = vand.u32 %v3850, 4294901760
    %v4361 = vsub.f32 %v3850, %v4360
    %4362 = vmatmul.mubr.f32.gmra.mxu0 %v4361
    %v4363 = vpop.f32.mrf.mxu0
    %v4364 = vadd.f32 %v4199, %v4363
    %v4365 = vpop.f32.mrf.mxu0
    %4366 = vmatprep.mubr.f32.mxu0 0.0
    %v4367 = vand.u32 %v3853, 4294901760
    %v4368 = vsub.f32 %v3853, %v4367
    %4369 = vmatmul.mubr.f32.gmra.mxu0 %v4368
    %v4370 = vpop.f32.mrf.mxu0
    %v4371 = vadd.f32 %v4205, %v4370
    %v4372 = vpop.f32.mrf.mxu0
    %4373 = vmatprep.mubr.f32.mxu0 0.0
    %v4374 = vand.u32 %v3856, 4294901760
    %v4375 = vsub.f32 %v3856, %v4374
    %4376 = vmatmul.mubr.f32.gmra.mxu0 %v4375
    %v4377 = vpop.f32.mrf.mxu0
    %v4378 = vadd.f32 %v4211, %v4377
    %v4379 = vpop.f32.mrf.mxu0
    %4380 = vmatprep.mubr.f32.mxu0 0.0
    %v4381 = vand.u32 %v3859, 4294901760
    %v4382 = vsub.f32 %v3859, %v4381
    %4383 = vmatmul.mubr.f32.gmra.mxu0 %v4382
    %v4384 = vpop.f32.mrf.mxu0
    %v4385 = vadd.f32 %v4217, %v4384
    %v4386 = vpop.f32.mrf.mxu0
    %4387 = vmatprep.mubr.f32.mxu0 0.0
    %v4388 = vand.u32 %v3862, 4294901760
    %v4389 = vsub.f32 %v3862, %v4388
    %4390 = vmatmul.mubr.f32.gmra.mxu0 %v4389
    %v4391 = vpop.f32.mrf.mxu0
    %v4392 = vadd.f32 %v4223, %v4391
    %v4393 = vpop.f32.mrf.mxu0
    %4394 = vmatprep.mubr.f32.mxu0 0.0
    %v4395 = vand.u32 %v3865, 4294901760
    %v4396 = vsub.f32 %v3865, %v4395
    %4397 = vmatmul.mubr.f32.gmra.mxu0 %v4396
    %v4398 = vpop.f32.mrf.mxu0
    %v4399 = vadd.f32 %v4229, %v4398
    %v4400 = vpop.f32.mrf.mxu0
    %4401 = vmatprep.mubr.f32.mxu0 0.0
    %v4402 = vand.u32 %v3868, 4294901760
    %v4403 = vsub.f32 %v3868, %v4402
    %4404 = vmatmul.mubr.f32.gmra.mxu0 %v4403
    %v4405 = vpop.f32.mrf.mxu0
    %v4406 = vadd.f32 %v4235, %v4405
    %v4407 = vpop.f32.mrf.mxu0
    %4408 = vmatprep.mubr.f32.mxu0 0.0
    %v4409 = vand.u32 %v3871, 4294901760
    %v4410 = vsub.f32 %v3871, %v4409
    %4411 = vmatmul.mubr.f32.gmra.mxu0 %v4410
    %v4412 = vpop.f32.mrf.mxu0
    %v4413 = vadd.f32 %v4241, %v4412
    %v4414 = vpop.f32.mrf.mxu0
    %4415 = vmatprep.mubr.f32.mxu0 0.0
    %v4416 = vand.u32 %v3874, 4294901760
    %v4417 = vsub.f32 %v3874, %v4416
    %4418 = vmatmul.mubr.f32.gmra.mxu0 %v4417
    %v4419 = vpop.f32.mrf.mxu0
    %v4420 = vadd.f32 %v4247, %v4419
    %v4421 = vpop.f32.mrf.mxu0
    %4422 = vmatprep.mubr.f32.mxu0 0.0
    %v4423 = vand.u32 %v3877, 4294901760
    %v4424 = vsub.f32 %v3877, %v4423
    %4425 = vmatmul.mubr.f32.gmra.mxu0 %v4424
    %v4426 = vpop.f32.mrf.mxu0
    %v4427 = vadd.f32 %v4253, %v4426
    %v4428 = vpop.f32.mrf.mxu0
    %4429 = vmatprep.mubr.f32.mxu0 0.0
    %v4430 = vand.u32 %v3880, 4294901760
    %v4431 = vsub.f32 %v3880, %v4430
    %4432 = vmatmul.mubr.f32.gmra.mxu0 %v4431
    %v4433 = vpop.f32.mrf.mxu0
    %v4434 = vadd.f32 %v4259, %v4433
    %v4435 = vpop.f32.mrf.mxu0
    %4436 = vmatprep.mubr.f32.mxu0 0.0
    %v4437 = vand.u32 %v3883, 4294901760
    %v4438 = vsub.f32 %v3883, %v4437
    %4439 = vmatmul.mubr.f32.gmra.mxu0 %v4438
    %v4440 = vpop.f32.mrf.mxu0
    %v4441 = vadd.f32 %v4265, %v4440
    %v4442 = vpop.f32.mrf.mxu0
    %4443 = vmatprep.mubr.f32.mxu0 0.0
    %v4444 = vand.u32 %v3886, 4294901760
    %v4445 = vsub.f32 %v3886, %v4444
    %4446 = vmatmul.mubr.f32.gmra.mxu0 %v4445
    %v4447 = vpop.f32.mrf.mxu0
    %v4448 = vadd.f32 %v4271, %v4447
    %v4449 = vpop.f32.mrf.mxu0
    %4450 = vmatprep.mubr.f32.mxu0 0.0
    %v4451 = vand.u32 %v3889, 4294901760
    %v4452 = vsub.f32 %v3889, %v4451
    %4453 = vmatmul.mubr.f32.gmra.mxu0 %v4452
    %v4454 = vpop.f32.mrf.mxu0
    %v4455 = vadd.f32 %v4277, %v4454
    %v4456 = vpop.f32.mrf.mxu0
    %4457 = vmatprep.mubr.f32.mxu0 0.0
    %v4458 = vand.u32 %v3892, 4294901760
    %v4459 = vsub.f32 %v3892, %v4458
    %4460 = vmatmul.mubr.f32.gmra.mxu0 %v4459
    %v4461 = vpop.f32.mrf.mxu0
    %v4462 = vadd.f32 %v4283, %v4461
    %v4463 = vpop.f32.mrf.mxu0
    %4464 = vdwg.mxu0
    %4465 = vmatprep.subr.mxu0 0.0
    %4466 = vmatpush1.msra.mxu0 0.0
    %4467 = vmatprep.subr.mxu0 0.0
    %4468 = vmatpush1.msra.mxu0 0.0
    %4469 = vmatprep.subr.mxu0 0.0
    %4470 = vmatpush1.msra.mxu0 0.0
    %4471 = vmatprep.subr.mxu0 0.0
    %4472 = vmatpush1.msra.mxu0 0.0
    %4473 = vmatprep.subr.mxu0 0.0
    %4474 = vmatpush1.msra.mxu0 0.0
    %4475 = vmatprep.subr.mxu0 0.0
    %4476 = vmatpush1.msra.mxu0 0.0
    %4477 = vmatprep.subr.mxu0 0.0
    %4478 = vmatpush1.msra.mxu0 0.0
    %4479 = vmatprep.subr.mxu0 0.0
    %4480 = vmatpush1.msra.mxu0 0.0
    %4481 = vmatprep.subr.mxu0 0.0
    %4482 = vmatpush1.msra.mxu0 0.0
    %4483 = vmatprep.subr.mxu0 0.0
    %4484 = vmatpush1.msra.mxu0 0.0
    %4485 = vmatprep.subr.mxu0 0.0
    %4486 = vmatpush1.msra.mxu0 0.0
    %4487 = vmatprep.subr.mxu0 0.0
    %4488 = vmatpush1.msra.mxu0 0.0
    %4489 = vmatprep.subr.mxu0 0.0
    %4490 = vmatpush1.msra.mxu0 0.0
    %4491 = vmatprep.subr.mxu0 0.0
    %4492 = vmatpush1.msra.mxu0 0.0
    %4493 = vmatprep.subr.mxu0 0.0
    %4494 = vmatpush1.msra.mxu0 0.0
    %4495 = vmatprep.subr.mxu0 0.0
    %v4496 = vand.u32 %v1419, 4294901760
    %4497 = vmatpush1.msra.mxu0 %v4496
    %4498 = vmatprep.subr.mxu0 0.0
    %4499 = vmatpush2.msra.mxu0 0.0
    %4500 = vmatprep.subr.mxu0 0.0
    %4501 = vmatpush2.msra.mxu0 0.0
    %4502 = vmatprep.subr.mxu0 0.0
    %4503 = vmatpush2.msra.mxu0 0.0
    %4504 = vmatprep.subr.mxu0 0.0
    %4505 = vmatpush2.msra.mxu0 0.0
    %4506 = vmatprep.subr.mxu0 0.0
    %4507 = vmatpush2.msra.mxu0 0.0
    %4508 = vmatprep.subr.mxu0 0.0
    %4509 = vmatpush2.msra.mxu0 0.0
    %4510 = vmatprep.subr.mxu0 0.0
    %4511 = vmatpush2.msra.mxu0 0.0
    %4512 = vmatprep.subr.mxu0 0.0
    %4513 = vmatpush2.msra.mxu0 0.0
    %4514 = vmatprep.subr.mxu0 0.0
    %4515 = vmatpush2.msra.mxu0 0.0
    %4516 = vmatprep.subr.mxu0 0.0
    %4517 = vmatpush2.msra.mxu0 0.0
    %4518 = vmatprep.subr.mxu0 0.0
    %4519 = vmatpush2.msra.mxu0 0.0
    %4520 = vmatprep.subr.mxu0 0.0
    %4521 = vmatpush2.msra.mxu0 0.0
    %4522 = vmatprep.subr.mxu0 0.0
    %4523 = vmatpush2.msra.mxu0 0.0
    %4524 = vmatprep.subr.mxu0 0.0
    %4525 = vmatpush2.msra.mxu0 0.0
    %4526 = vmatprep.subr.mxu0 0.0
    %4527 = vmatpush2.msra.mxu0 0.0
    %4528 = vmatprep.subr.mxu0 0.0
    %4529 = vmatpush2.msra.mxu0 0.0
    %4530 = vmatprep.mubr.f32.mxu0 0.0
    %v4531 = vand.u32 %v3847, 4294901760
    %v4532 = vsub.f32 %v3847, %v4531
    %v4533 = vand.u32 %v4532, 4294901760
    %4534 = vmatmul.mubr.f32.gmra.mxu0 %v4533
    %v4535 = vpop.f32.mrf.mxu0
    %v4536 = vadd.f32 %v4357, %v4535
    %v4537 = vpop.f32.mrf.mxu0
    %4538 = vmatprep.mubr.f32.mxu0 0.0
    %v4539 = vand.u32 %v3850, 4294901760
    %v4540 = vsub.f32 %v3850, %v4539
    %v4541 = vand.u32 %v4540, 4294901760
    %4542 = vmatmul.mubr.f32.gmra.mxu0 %v4541
    %v4543 = vpop.f32.mrf.mxu0
    %v4544 = vadd.f32 %v4364, %v4543
    %v4545 = vpop.f32.mrf.mxu0
    %4546 = vmatprep.mubr.f32.mxu0 0.0
    %v4547 = vand.u32 %v3853, 4294901760
    %v4548 = vsub.f32 %v3853, %v4547
    %v4549 = vand.u32 %v4548, 4294901760
    %4550 = vmatmul.mubr.f32.gmra.mxu0 %v4549
    %v4551 = vpop.f32.mrf.mxu0
    %v4552 = vadd.f32 %v4371, %v4551
    %v4553 = vpop.f32.mrf.mxu0
    %4554 = vmatprep.mubr.f32.mxu0 0.0
    %v4555 = vand.u32 %v3856, 4294901760
    %v4556 = vsub.f32 %v3856, %v4555
    %v4557 = vand.u32 %v4556, 4294901760
    %4558 = vmatmul.mubr.f32.gmra.mxu0 %v4557
    %v4559 = vpop.f32.mrf.mxu0
    %v4560 = vadd.f32 %v4378, %v4559
    %v4561 = vpop.f32.mrf.mxu0
    %4562 = vmatprep.mubr.f32.mxu0 0.0
    %v4563 = vand.u32 %v3859, 4294901760
    %v4564 = vsub.f32 %v3859, %v4563
    %v4565 = vand.u32 %v4564, 4294901760
    %4566 = vmatmul.mubr.f32.gmra.mxu0 %v4565
    %v4567 = vpop.f32.mrf.mxu0
    %v4568 = vadd.f32 %v4385, %v4567
    %v4569 = vpop.f32.mrf.mxu0
    %4570 = vmatprep.mubr.f32.mxu0 0.0
    %v4571 = vand.u32 %v3862, 4294901760
    %v4572 = vsub.f32 %v3862, %v4571
    %v4573 = vand.u32 %v4572, 4294901760
    %4574 = vmatmul.mubr.f32.gmra.mxu0 %v4573
    %v4575 = vpop.f32.mrf.mxu0
    %v4576 = vadd.f32 %v4392, %v4575
    %v4577 = vpop.f32.mrf.mxu0
    %4578 = vmatprep.mubr.f32.mxu0 0.0
    %v4579 = vand.u32 %v3865, 4294901760
    %v4580 = vsub.f32 %v3865, %v4579
    %v4581 = vand.u32 %v4580, 4294901760
    %4582 = vmatmul.mubr.f32.gmra.mxu0 %v4581
    %v4583 = vpop.f32.mrf.mxu0
    %v4584 = vadd.f32 %v4399, %v4583
    %v4585 = vpop.f32.mrf.mxu0
    %4586 = vmatprep.mubr.f32.mxu0 0.0
    %v4587 = vand.u32 %v3868, 4294901760
    %v4588 = vsub.f32 %v3868, %v4587
    %v4589 = vand.u32 %v4588, 4294901760
    %4590 = vmatmul.mubr.f32.gmra.mxu0 %v4589
    %v4591 = vpop.f32.mrf.mxu0
    %v4592 = vadd.f32 %v4406, %v4591
    %v4593 = vpop.f32.mrf.mxu0
    %4594 = vmatprep.mubr.f32.mxu0 0.0
    %v4595 = vand.u32 %v3871, 4294901760
    %v4596 = vsub.f32 %v3871, %v4595
    %v4597 = vand.u32 %v4596, 4294901760
    %4598 = vmatmul.mubr.f32.gmra.mxu0 %v4597
    %v4599 = vpop.f32.mrf.mxu0
    %v4600 = vadd.f32 %v4413, %v4599
    %v4601 = vpop.f32.mrf.mxu0
    %4602 = vmatprep.mubr.f32.mxu0 0.0
    %v4603 = vand.u32 %v3874, 4294901760
    %v4604 = vsub.f32 %v3874, %v4603
    %v4605 = vand.u32 %v4604, 4294901760
    %4606 = vmatmul.mubr.f32.gmra.mxu0 %v4605
    %v4607 = vpop.f32.mrf.mxu0
    %v4608 = vadd.f32 %v4420, %v4607
    %v4609 = vpop.f32.mrf.mxu0
    %4610 = vmatprep.mubr.f32.mxu0 0.0
    %v4611 = vand.u32 %v3877, 4294901760
    %v4612 = vsub.f32 %v3877, %v4611
    %v4613 = vand.u32 %v4612, 4294901760
    %4614 = vmatmul.mubr.f32.gmra.mxu0 %v4613
    %v4615 = vpop.f32.mrf.mxu0
    %v4616 = vadd.f32 %v4427, %v4615
    %v4617 = vpop.f32.mrf.mxu0
    %4618 = vmatprep.mubr.f32.mxu0 0.0
    %v4619 = vand.u32 %v3880, 4294901760
    %v4620 = vsub.f32 %v3880, %v4619
    %v4621 = vand.u32 %v4620, 4294901760
    %4622 = vmatmul.mubr.f32.gmra.mxu0 %v4621
    %v4623 = vpop.f32.mrf.mxu0
    %v4624 = vadd.f32 %v4434, %v4623
    %v4625 = vpop.f32.mrf.mxu0
    %4626 = vmatprep.mubr.f32.mxu0 0.0
    %v4627 = vand.u32 %v3883, 4294901760
    %v4628 = vsub.f32 %v3883, %v4627
    %v4629 = vand.u32 %v4628, 4294901760
    %4630 = vmatmul.mubr.f32.gmra.mxu0 %v4629
    %v4631 = vpop.f32.mrf.mxu0
    %v4632 = vadd.f32 %v4441, %v4631
    %v4633 = vpop.f32.mrf.mxu0
    %4634 = vmatprep.mubr.f32.mxu0 0.0
    %v4635 = vand.u32 %v3886, 4294901760
    %v4636 = vsub.f32 %v3886, %v4635
    %v4637 = vand.u32 %v4636, 4294901760
    %4638 = vmatmul.mubr.f32.gmra.mxu0 %v4637
    %v4639 = vpop.f32.mrf.mxu0
    %v4640 = vadd.f32 %v4448, %v4639
    %v4641 = vpop.f32.mrf.mxu0
    %4642 = vmatprep.mubr.f32.mxu0 0.0
    %v4643 = vand.u32 %v3889, 4294901760
    %v4644 = vsub.f32 %v3889, %v4643
    %v4645 = vand.u32 %v4644, 4294901760
    %4646 = vmatmul.mubr.f32.gmra.mxu0 %v4645
    %v4647 = vpop.f32.mrf.mxu0
    %v4648 = vadd.f32 %v4455, %v4647
    %v4649 = vpop.f32.mrf.mxu0
    %4650 = vmatprep.mubr.f32.mxu0 0.0
    %v4651 = vand.u32 %v3892, 4294901760
    %v4652 = vsub.f32 %v3892, %v4651
    %v4653 = vand.u32 %v4652, 4294901760
    %4654 = vmatmul.mubr.f32.gmra.mxu0 %v4653
    %v4655 = vpop.f32.mrf.mxu0
    %v4656 = vadd.f32 %v4462, %v4655
    %v4657 = vpop.f32.mrf.mxu0
    %4658 = vdwg.mxu0
    %4659 = vmatprep.subr.mxu0 0.0
    %4660 = vmatpush1.msra.mxu0 0.0
    %4661 = vmatprep.subr.mxu0 0.0
    %4662 = vmatpush1.msra.mxu0 0.0
    %4663 = vmatprep.subr.mxu0 0.0
    %4664 = vmatpush1.msra.mxu0 0.0
    %4665 = vmatprep.subr.mxu0 0.0
    %4666 = vmatpush1.msra.mxu0 0.0
    %4667 = vmatprep.subr.mxu0 0.0
    %4668 = vmatpush1.msra.mxu0 0.0
    %4669 = vmatprep.subr.mxu0 0.0
    %4670 = vmatpush1.msra.mxu0 0.0
    %4671 = vmatprep.subr.mxu0 0.0
    %4672 = vmatpush1.msra.mxu0 0.0
    %4673 = vmatprep.subr.mxu0 0.0
    %4674 = vmatpush1.msra.mxu0 0.0
    %4675 = vmatprep.subr.mxu0 0.0
    %4676 = vmatpush1.msra.mxu0 0.0
    %4677 = vmatprep.subr.mxu0 0.0
    %4678 = vmatpush1.msra.mxu0 0.0
    %4679 = vmatprep.subr.mxu0 0.0
    %4680 = vmatpush1.msra.mxu0 0.0
    %4681 = vmatprep.subr.mxu0 0.0
    %4682 = vmatpush1.msra.mxu0 0.0
    %4683 = vmatprep.subr.mxu0 0.0
    %4684 = vmatpush1.msra.mxu0 0.0
    %4685 = vmatprep.subr.mxu0 0.0
    %4686 = vmatpush1.msra.mxu0 0.0
    %4687 = vmatprep.subr.mxu0 0.0
    %4688 = vmatpush1.msra.mxu0 0.0
    %4689 = vmatprep.subr.mxu0 0.0
    %v4690 = vand.u32 %v1419, 4294901760
    %v4691 = vsub.f32 %v1419, %v4690
    %v4692 = vand.u32 %v4691, 4294901760
    %4693 = vmatpush1.msra.mxu0 %v4692
    %4694 = vmatprep.subr.mxu0 0.0
    %4695 = vmatpush2.msra.mxu0 0.0
    %4696 = vmatprep.subr.mxu0 0.0
    %4697 = vmatpush2.msra.mxu0 0.0
    %4698 = vmatprep.subr.mxu0 0.0
    %4699 = vmatpush2.msra.mxu0 0.0
    %4700 = vmatprep.subr.mxu0 0.0
    %4701 = vmatpush2.msra.mxu0 0.0
    %4702 = vmatprep.subr.mxu0 0.0
    %4703 = vmatpush2.msra.mxu0 0.0
    %4704 = vmatprep.subr.mxu0 0.0
    %4705 = vmatpush2.msra.mxu0 0.0
    %4706 = vmatprep.subr.mxu0 0.0
    %4707 = vmatpush2.msra.mxu0 0.0
    %4708 = vmatprep.subr.mxu0 0.0
    %4709 = vmatpush2.msra.mxu0 0.0
    %4710 = vmatprep.subr.mxu0 0.0
    %4711 = vmatpush2.msra.mxu0 0.0
    %4712 = vmatprep.subr.mxu0 0.0
    %4713 = vmatpush2.msra.mxu0 0.0
    %4714 = vmatprep.subr.mxu0 0.0
    %4715 = vmatpush2.msra.mxu0 0.0
    %4716 = vmatprep.subr.mxu0 0.0
    %4717 = vmatpush2.msra.mxu0 0.0
    %4718 = vmatprep.subr.mxu0 0.0
    %4719 = vmatpush2.msra.mxu0 0.0
    %4720 = vmatprep.subr.mxu0 0.0
    %4721 = vmatpush2.msra.mxu0 0.0
    %4722 = vmatprep.subr.mxu0 0.0
    %4723 = vmatpush2.msra.mxu0 0.0
    %4724 = vmatprep.subr.mxu0 0.0
    %4725 = vmatpush2.msra.mxu0 0.0
    %4726 = vmatprep.mubr.f32.mxu0 0.0
    %v4727 = vand.u32 %v3847, 4294901760
    %4728 = vmatmul.mubr.f32.gmra.mxu0 %v4727
    %v4729 = vpop.f32.mrf.mxu0
    %v4730 = vadd.f32 %v4536, %v4729
    %v4731 = vpop.f32.mrf.mxu0
    %4732 = vmatprep.mubr.f32.mxu0 0.0
    %v4733 = vand.u32 %v3850, 4294901760
    %4734 = vmatmul.mubr.f32.gmra.mxu0 %v4733
    %v4735 = vpop.f32.mrf.mxu0
    %v4736 = vadd.f32 %v4544, %v4735
    %v4737 = vpop.f32.mrf.mxu0
    %4738 = vmatprep.mubr.f32.mxu0 0.0
    %v4739 = vand.u32 %v3853, 4294901760
    %4740 = vmatmul.mubr.f32.gmra.mxu0 %v4739
    %v4741 = vpop.f32.mrf.mxu0
    %v4742 = vadd.f32 %v4552, %v4741
    %v4743 = vpop.f32.mrf.mxu0
    %4744 = vmatprep.mubr.f32.mxu0 0.0
    %v4745 = vand.u32 %v3856, 4294901760
    %4746 = vmatmul.mubr.f32.gmra.mxu0 %v4745
    %v4747 = vpop.f32.mrf.mxu0
    %v4748 = vadd.f32 %v4560, %v4747
    %v4749 = vpop.f32.mrf.mxu0
    %4750 = vmatprep.mubr.f32.mxu0 0.0
    %v4751 = vand.u32 %v3859, 4294901760
    %4752 = vmatmul.mubr.f32.gmra.mxu0 %v4751
    %v4753 = vpop.f32.mrf.mxu0
    %v4754 = vadd.f32 %v4568, %v4753
    %v4755 = vpop.f32.mrf.mxu0
    %4756 = vmatprep.mubr.f32.mxu0 0.0
    %v4757 = vand.u32 %v3862, 4294901760
    %4758 = vmatmul.mubr.f32.gmra.mxu0 %v4757
    %v4759 = vpop.f32.mrf.mxu0
    %v4760 = vadd.f32 %v4576, %v4759
    %v4761 = vpop.f32.mrf.mxu0
    %4762 = vmatprep.mubr.f32.mxu0 0.0
    %v4763 = vand.u32 %v3865, 4294901760
    %4764 = vmatmul.mubr.f32.gmra.mxu0 %v4763
    %v4765 = vpop.f32.mrf.mxu0
    %v4766 = vadd.f32 %v4584, %v4765
    %v4767 = vpop.f32.mrf.mxu0
    %4768 = vmatprep.mubr.f32.mxu0 0.0
    %v4769 = vand.u32 %v3868, 4294901760
    %4770 = vmatmul.mubr.f32.gmra.mxu0 %v4769
    %v4771 = vpop.f32.mrf.mxu0
    %v4772 = vadd.f32 %v4592, %v4771
    %v4773 = vpop.f32.mrf.mxu0
    %4774 = vmatprep.mubr.f32.mxu0 0.0
    %v4775 = vand.u32 %v3871, 4294901760
    %4776 = vmatmul.mubr.f32.gmra.mxu0 %v4775
    %v4777 = vpop.f32.mrf.mxu0
    %v4778 = vadd.f32 %v4600, %v4777
    %v4779 = vpop.f32.mrf.mxu0
    %4780 = vmatprep.mubr.f32.mxu0 0.0
    %v4781 = vand.u32 %v3874, 4294901760
    %4782 = vmatmul.mubr.f32.gmra.mxu0 %v4781
    %v4783 = vpop.f32.mrf.mxu0
    %v4784 = vadd.f32 %v4608, %v4783
    %v4785 = vpop.f32.mrf.mxu0
    %4786 = vmatprep.mubr.f32.mxu0 0.0
    %v4787 = vand.u32 %v3877, 4294901760
    %4788 = vmatmul.mubr.f32.gmra.mxu0 %v4787
    %v4789 = vpop.f32.mrf.mxu0
    %v4790 = vadd.f32 %v4616, %v4789
    %v4791 = vpop.f32.mrf.mxu0
    %4792 = vmatprep.mubr.f32.mxu0 0.0
    %v4793 = vand.u32 %v3880, 4294901760
    %4794 = vmatmul.mubr.f32.gmra.mxu0 %v4793
    %v4795 = vpop.f32.mrf.mxu0
    %v4796 = vadd.f32 %v4624, %v4795
    %v4797 = vpop.f32.mrf.mxu0
    %4798 = vmatprep.mubr.f32.mxu0 0.0
    %v4799 = vand.u32 %v3883, 4294901760
    %4800 = vmatmul.mubr.f32.gmra.mxu0 %v4799
    %v4801 = vpop.f32.mrf.mxu0
    %v4802 = vadd.f32 %v4632, %v4801
    %v4803 = vpop.f32.mrf.mxu0
    %4804 = vmatprep.mubr.f32.mxu0 0.0
    %v4805 = vand.u32 %v3886, 4294901760
    %4806 = vmatmul.mubr.f32.gmra.mxu0 %v4805
    %v4807 = vpop.f32.mrf.mxu0
    %v4808 = vadd.f32 %v4640, %v4807
    %v4809 = vpop.f32.mrf.mxu0
    %4810 = vmatprep.mubr.f32.mxu0 0.0
    %v4811 = vand.u32 %v3889, 4294901760
    %4812 = vmatmul.mubr.f32.gmra.mxu0 %v4811
    %v4813 = vpop.f32.mrf.mxu0
    %v4814 = vadd.f32 %v4648, %v4813
    %v4815 = vpop.f32.mrf.mxu0
    %4816 = vmatprep.mubr.f32.mxu0 0.0
    %v4817 = vand.u32 %v3892, 4294901760
    %4818 = vmatmul.mubr.f32.gmra.mxu0 %v4817
    %v4819 = vpop.f32.mrf.mxu0
    %v4820 = vadd.f32 %v4656, %v4819
    %v4821 = vpop.f32.mrf.mxu0
    %4822 = vdwg.mxu0
    %4823 = vmatprep.subr.mxu0 0.0
    %4824 = vmatpush1.msra.mxu0 0.0
    %4825 = vmatprep.subr.mxu0 0.0
    %4826 = vmatpush1.msra.mxu0 0.0
    %4827 = vmatprep.subr.mxu0 0.0
    %4828 = vmatpush1.msra.mxu0 0.0
    %4829 = vmatprep.subr.mxu0 0.0
    %4830 = vmatpush1.msra.mxu0 0.0
    %4831 = vmatprep.subr.mxu0 0.0
    %4832 = vmatpush1.msra.mxu0 0.0
    %4833 = vmatprep.subr.mxu0 0.0
    %4834 = vmatpush1.msra.mxu0 0.0
    %4835 = vmatprep.subr.mxu0 0.0
    %4836 = vmatpush1.msra.mxu0 0.0
    %4837 = vmatprep.subr.mxu0 0.0
    %4838 = vmatpush1.msra.mxu0 0.0
    %4839 = vmatprep.subr.mxu0 0.0
    %4840 = vmatpush1.msra.mxu0 0.0
    %4841 = vmatprep.subr.mxu0 0.0
    %4842 = vmatpush1.msra.mxu0 0.0
    %4843 = vmatprep.subr.mxu0 0.0
    %4844 = vmatpush1.msra.mxu0 0.0
    %4845 = vmatprep.subr.mxu0 0.0
    %4846 = vmatpush1.msra.mxu0 0.0
    %4847 = vmatprep.subr.mxu0 0.0
    %4848 = vmatpush1.msra.mxu0 0.0
    %4849 = vmatprep.subr.mxu0 0.0
    %4850 = vmatpush1.msra.mxu0 0.0
    %4851 = vmatprep.subr.mxu0 0.0
    %4852 = vmatpush1.msra.mxu0 0.0
    %4853 = vmatprep.subr.mxu0 0.0
    %v4854 = vand.u32 %v1419, 4294901760
    %4855 = vmatpush1.msra.mxu0 %v4854
    %4856 = vmatprep.subr.mxu0 0.0
    %4857 = vmatpush2.msra.mxu0 0.0
    %4858 = vmatprep.subr.mxu0 0.0
    %4859 = vmatpush2.msra.mxu0 0.0
    %4860 = vmatprep.subr.mxu0 0.0
    %4861 = vmatpush2.msra.mxu0 0.0
    %4862 = vmatprep.subr.mxu0 0.0
    %4863 = vmatpush2.msra.mxu0 0.0
    %4864 = vmatprep.subr.mxu0 0.0
    %4865 = vmatpush2.msra.mxu0 0.0
    %4866 = vmatprep.subr.mxu0 0.0
    %4867 = vmatpush2.msra.mxu0 0.0
    %4868 = vmatprep.subr.mxu0 0.0
    %4869 = vmatpush2.msra.mxu0 0.0
    %4870 = vmatprep.subr.mxu0 0.0
    %4871 = vmatpush2.msra.mxu0 0.0
    %4872 = vmatprep.subr.mxu0 0.0
    %4873 = vmatpush2.msra.mxu0 0.0
    %4874 = vmatprep.subr.mxu0 0.0
    %4875 = vmatpush2.msra.mxu0 0.0
    %4876 = vmatprep.subr.mxu0 0.0
    %4877 = vmatpush2.msra.mxu0 0.0
    %4878 = vmatprep.subr.mxu0 0.0
    %4879 = vmatpush2.msra.mxu0 0.0
    %4880 = vmatprep.subr.mxu0 0.0
    %4881 = vmatpush2.msra.mxu0 0.0
    %4882 = vmatprep.subr.mxu0 0.0
    %4883 = vmatpush2.msra.mxu0 0.0
    %4884 = vmatprep.subr.mxu0 0.0
    %4885 = vmatpush2.msra.mxu0 0.0
    %4886 = vmatprep.subr.mxu0 0.0
    %4887 = vmatpush2.msra.mxu0 0.0
    %4888 = vmatprep.mubr.f32.mxu0 0.0
    %v4889 = vand.u32 %v3847, 4294901760
    %4890 = vmatmul.mubr.f32.gmra.mxu0 %v4889
    %v4891 = vpop.f32.mrf.mxu0
    %v4892 = vadd.f32 %v4730, %v4891
    %v4893 = vpop.f32.mrf.mxu0
    %4894 = vmatprep.mubr.f32.mxu0 0.0
    %v4895 = vand.u32 %v3850, 4294901760
    %4896 = vmatmul.mubr.f32.gmra.mxu0 %v4895
    %v4897 = vpop.f32.mrf.mxu0
    %v4898 = vadd.f32 %v4736, %v4897
    %v4899 = vpop.f32.mrf.mxu0
    %4900 = vmatprep.mubr.f32.mxu0 0.0
    %v4901 = vand.u32 %v3853, 4294901760
    %4902 = vmatmul.mubr.f32.gmra.mxu0 %v4901
    %v4903 = vpop.f32.mrf.mxu0
    %v4904 = vadd.f32 %v4742, %v4903
    %v4905 = vpop.f32.mrf.mxu0
    %4906 = vmatprep.mubr.f32.mxu0 0.0
    %v4907 = vand.u32 %v3856, 4294901760
    %4908 = vmatmul.mubr.f32.gmra.mxu0 %v4907
    %v4909 = vpop.f32.mrf.mxu0
    %v4910 = vadd.f32 %v4748, %v4909
    %v4911 = vpop.f32.mrf.mxu0
    %4912 = vmatprep.mubr.f32.mxu0 0.0
    %v4913 = vand.u32 %v3859, 4294901760
    %4914 = vmatmul.mubr.f32.gmra.mxu0 %v4913
    %v4915 = vpop.f32.mrf.mxu0
    %v4916 = vadd.f32 %v4754, %v4915
    %v4917 = vpop.f32.mrf.mxu0
    %4918 = vmatprep.mubr.f32.mxu0 0.0
    %v4919 = vand.u32 %v3862, 4294901760
    %4920 = vmatmul.mubr.f32.gmra.mxu0 %v4919
    %v4921 = vpop.f32.mrf.mxu0
    %v4922 = vadd.f32 %v4760, %v4921
    %v4923 = vpop.f32.mrf.mxu0
    %4924 = vmatprep.mubr.f32.mxu0 0.0
    %v4925 = vand.u32 %v3865, 4294901760
    %4926 = vmatmul.mubr.f32.gmra.mxu0 %v4925
    %v4927 = vpop.f32.mrf.mxu0
    %v4928 = vadd.f32 %v4766, %v4927
    %v4929 = vpop.f32.mrf.mxu0
    %4930 = vmatprep.mubr.f32.mxu0 0.0
    %v4931 = vand.u32 %v3868, 4294901760
    %4932 = vmatmul.mubr.f32.gmra.mxu0 %v4931
    %v4933 = vpop.f32.mrf.mxu0
    %v4934 = vadd.f32 %v4772, %v4933
    %v4935 = vpop.f32.mrf.mxu0
    %4936 = vmatprep.mubr.f32.mxu0 0.0
    %v4937 = vand.u32 %v3871, 4294901760
    %4938 = vmatmul.mubr.f32.gmra.mxu0 %v4937
    %v4939 = vpop.f32.mrf.mxu0
    %v4940 = vadd.f32 %v4778, %v4939
    %v4941 = vpop.f32.mrf.mxu0
    %4942 = vmatprep.mubr.f32.mxu0 0.0
    %v4943 = vand.u32 %v3874, 4294901760
    %4944 = vmatmul.mubr.f32.gmra.mxu0 %v4943
    %v4945 = vpop.f32.mrf.mxu0
    %v4946 = vadd.f32 %v4784, %v4945
    %v4947 = vpop.f32.mrf.mxu0
    %4948 = vmatprep.mubr.f32.mxu0 0.0
    %v4949 = vand.u32 %v3877, 4294901760
    %4950 = vmatmul.mubr.f32.gmra.mxu0 %v4949
    %v4951 = vpop.f32.mrf.mxu0
    %v4952 = vadd.f32 %v4790, %v4951
    %v4953 = vpop.f32.mrf.mxu0
    %4954 = vmatprep.mubr.f32.mxu0 0.0
    %v4955 = vand.u32 %v3880, 4294901760
    %4956 = vmatmul.mubr.f32.gmra.mxu0 %v4955
    %v4957 = vpop.f32.mrf.mxu0
    %v4958 = vadd.f32 %v4796, %v4957
    %v4959 = vpop.f32.mrf.mxu0
    %4960 = vmatprep.mubr.f32.mxu0 0.0
    %v4961 = vand.u32 %v3883, 4294901760
    %4962 = vmatmul.mubr.f32.gmra.mxu0 %v4961
    %v4963 = vpop.f32.mrf.mxu0
    %v4964 = vadd.f32 %v4802, %v4963
    %v4965 = vpop.f32.mrf.mxu0
    %4966 = vmatprep.mubr.f32.mxu0 0.0
    %v4967 = vand.u32 %v3886, 4294901760
    %4968 = vmatmul.mubr.f32.gmra.mxu0 %v4967
    %v4969 = vpop.f32.mrf.mxu0
    %v4970 = vadd.f32 %v4808, %v4969
    %v4971 = vpop.f32.mrf.mxu0
    %4972 = vmatprep.mubr.f32.mxu0 0.0
    %v4973 = vand.u32 %v3889, 4294901760
    %4974 = vmatmul.mubr.f32.gmra.mxu0 %v4973
    %v4975 = vpop.f32.mrf.mxu0
    %v4976 = vadd.f32 %v4814, %v4975
    %v4977 = vpop.f32.mrf.mxu0
    %4978 = vmatprep.mubr.f32.mxu0 0.0
    %v4979 = vand.u32 %v3892, 4294901760
    %4980 = vmatmul.mubr.f32.gmra.mxu0 %v4979
    %v4981 = vpop.f32.mrf.mxu0
    %v4982 = vadd.f32 %v4820, %v4981
    %v4983 = vpop.f32.mrf.mxu0
    %4984 = vdwg.mxu0
    %v4985 = vrsqrt.pop %v4892
    %v4986 = vrsqrt.pop %v4898
    %v4987 = vrsqrt.pop %v4904
    %v4988 = vrsqrt.pop %v4910
    %v4989 = vrsqrt.pop %v4916
    %v4990 = vrsqrt.pop %v4922
    %v4991 = vrsqrt.pop %v4928
    %v4992 = vrsqrt.pop %v4934
    %v4993 = vrsqrt.pop %v4940
    %v4994 = vrsqrt.pop %v4946
    %v4995 = vrsqrt.pop %v4952
    %v4996 = vrsqrt.pop %v4958
    %v4997 = vrsqrt.pop %v4964
    %v4998 = vrsqrt.pop %v4970
    %v4999 = vrsqrt.pop %v4976
    %v5000 = vrsqrt.pop %v4982
    %v5001 = vmul.f32 %v2512, %v4985
    %v5002 = vmul.f32 %v2513, %v4986
    %v5003 = vmul.f32 %v2514, %v4987
    %v5004 = vmul.f32 %v2515, %v4988
    %v5005 = vmul.f32 %v2516, %v4989
    %v5006 = vmul.f32 %v2517, %v4990
    %v5007 = vmul.f32 %v2518, %v4991
    %v5008 = vmul.f32 %v2519, %v4992
    %v5009 = vmul.f32 %v2520, %v4993
    %v5010 = vmul.f32 %v2521, %v4994
    %v5011 = vmul.f32 %v2522, %v4995
    %v5012 = vmul.f32 %v2523, %v4996
    %v5013 = vmul.f32 %v2524, %v4997
    %v5014 = vmul.f32 %v2525, %v4998
    %v5015 = vmul.f32 %v2526, %v4999
    %v5016 = vmul.f32 %v2527, %v5000
    %v5017 = vld [vmem:[%s1] sm:$0x1]
    %v5019 = vlaneseq
    %v5020 = vshrl.u32 %v5019, 7
    %v5021 = vsub.s32 0, %v5020
    %v5022 = vrot.slane %v5017, %v5021
    %v5024 = vmul.f32 %v5001, %v5022
    %v5025 = vmul.f32 %v5002, %v5022
    %v5026 = vmul.f32 %v5003, %v5022
    %v5027 = vmul.f32 %v5004, %v5022
    %v5028 = vmul.f32 %v5005, %v5022
    %v5029 = vmul.f32 %v5006, %v5022
    %v5030 = vmul.f32 %v5007, %v5022
    %v5031 = vmul.f32 %v5008, %v5022
    %v5032 = vmul.f32 %v5009, %v5022
    %v5033 = vmul.f32 %v5010, %v5022
    %v5034 = vmul.f32 %v5011, %v5022
    %v5035 = vmul.f32 %v5012, %v5022
    %v5036 = vmul.f32 %v5013, %v5022
    %v5037 = vmul.f32 %v5014, %v5022
    %v5038 = vmul.f32 %v5015, %v5022
    %v5039 = vmul.f32 %v5016, %v5022
    %v5040 = vld [vmem:[#allocation2] sm:$0x1]
    %v5042 = vlaneseq
    %v5043 = vshrl.u32 %v5042, 7
    %v5044 = vsub.s32 0, %v5043
    %v5045 = vrot.slane %v5040, %v5044
    %v5047 = vadd.f32 %v5024, %v5045
    %v5048 = vadd.f32 %v5025, %v5045
    %v5049 = vadd.f32 %v5026, %v5045
    %v5050 = vadd.f32 %v5027, %v5045
    %v5051 = vadd.f32 %v5028, %v5045
    %v5052 = vadd.f32 %v5029, %v5045
    %v5053 = vadd.f32 %v5030, %v5045
    %v5054 = vadd.f32 %v5031, %v5045
    %v5055 = vadd.f32 %v5032, %v5045
    %v5056 = vadd.f32 %v5033, %v5045
    %v5057 = vadd.f32 %v5034, %v5045
    %v5058 = vadd.f32 %v5035, %v5045
    %v5059 = vadd.f32 %v5036, %v5045
    %v5060 = vadd.f32 %v5037, %v5045
    %v5061 = vadd.f32 %v5038, %v5045
    %v5062 = vadd.f32 %v5039, %v5045
    %5063 = vst [vmem:[#allocation5] sm:$0xff] %v5047
    %5064 = vst [vmem:[#allocation5 + $0x8] sm:$0xff] %v5048
    %5065 = vst [vmem:[#allocation5 + $0x10] sm:$0xff] %v5049
    %5066 = vst [vmem:[#allocation5 + $0x18] sm:$0xff] %v5050
    %5067 = vst [vmem:[#allocation5 + $0x20] sm:$0xff] %v5051
    %5068 = vst [vmem:[#allocation5 + $0x28] sm:$0xff] %v5052
    %5069 = vst [vmem:[#allocation5 + $0x30] sm:$0xff] %v5053
    %5070 = vst [vmem:[#allocation5 + $0x38] sm:$0xff] %v5054
    %5071 = vst [vmem:[#allocation5 + $0x40] sm:$0xff] %v5055
    %5072 = vst [vmem:[#allocation5 + $0x48] sm:$0xff] %v5056
    %5073 = vst [vmem:[#allocation5 + $0x50] sm:$0xff] %v5057
    %5074 = vst [vmem:[#allocation5 + $0x58] sm:$0xff] %v5058
    %5075 = vst [vmem:[#allocation5 + $0x60] sm:$0xff] %v5059
    %5076 = vst [vmem:[#allocation5 + $0x68] sm:$0xff] %v5060
    %5077 = vst [vmem:[#allocation5 + $0x70] sm:$0xff] %v5061
    %5078 = vst [vmem:[#allocation5 + $0x78] sm:$0xff] %v5062
    // Predicated region
    $region26: #{tpu_custom_call.1} parent=1 // pred_check
      _
    $region27: #{tpu_custom_call.1} parent=1 // pred_check_branch
      %5080 = sbr.rel (0) target = $region29
    $region28: #{tpu_custom_call.1} parent=1 // pred_region
      %s5082 = ssub.s32 2048, 2048
      %5083 = vsyncadd [#allocation4], %s5082
      %s5084 = sshll.u32 [#allocation5], 4
      %s5085 = int_to_ptr.vmem [resolvable:$true] %s5084
      %5090 = dma.vmem_to_hbm [thread:$0]  %s5085, 2048, %s5, [#allocation4], 128, 128, 8
    $region29: #{tpu_custom_call.1} parent=1 // pred_fallthru
      _
    // Predicated region
    $region30: #{tpu_custom_call.1} parent=1 // pred_check
      _
    $region31: #{tpu_custom_call.1} parent=1 // pred_check_branch
      %5092 = sbr.rel (0) target = $region33
    $region32: #{tpu_custom_call.1} parent=1 // pred_region
      %5093 = dma.done [#allocation4], 2048
    $region33: #{tpu_custom_call.1} parent=1 // pred_fallthru
      _
    %5094 = vsyncpa [#allocation3], 1
    %5095 = vsyncpa [#allocation4], 1

</llo_original>
